<compile_context>
chip_gen: v6e
topology: v6e:2x2x1
jax: 0.10.0
libtpu: 0.0.40
codegen_flags: <defaults>
</compile_context>

<pallas_src>
import math

import jax
import jax.numpy as jnp
import numpy as np
from jax import lax
from jax.experimental import pallas as pl
from jax.experimental.pallas import tpu as pltpu

# ---------------- model hyper-parameters (small, consistent with module) ----
N_LAYERS = 2
D_MODEL = 32
N_HEADS = 4
D_FF = 64
D_HEAD = D_MODEL // N_HEADS
BATCH = 2
SEQ = 8
LN_EPS = 1e-5

LANES = 128            # lane-dense packing width of the parameter slab
ROWS_PER_LAYER = 72    # 32 [Wqkv|Wo] + 32 [W1|W2a|W2b] + 8 bias/LN rows (padded)


# ---------------- in-kernel helpers -----------------------------------------
def _layer_norm(x, gamma, beta):
    # x: (B*S, D); gamma/beta: (1, D).  Biased variance, like nn.LayerNorm.
    mean = jnp.mean(x, axis=-1, keepdims=True)
    c = x - mean
    var = jnp.mean(c * c, axis=-1, keepdims=True)
    return c * lax.rsqrt(var + LN_EPS) * gamma + beta


def _split_heads(t):
    # (B*S, D) -> (B*H, S, DH)
    return (t.reshape(BATCH, SEQ, N_HEADS, D_HEAD)
             .transpose(0, 2, 1, 3)
             .reshape(BATCH * N_HEADS, SEQ, D_HEAD))


def _one_layer(x, params):
    """One encoder layer. x: (B*S, D) f32; params: (72, 128) packed slab."""
    D = D_MODEL

    # ---- static unpack of the lane-dense per-layer slab ----
    rowA = params[0:32, :]                       # [Wqkv (32x96) | Wo (32x32)]
    wqkv = rowA[:, 0:3 * D]
    wo = rowA[:, 3 * D:4 * D]
    rowB = params[32:64, :]                      # [W1 (32x64) | W2a | W2b]
    w1 = rowB[:, 0:D_FF]
    w2a = rowB[:, D_FF:D_FF + D]                 # W2[:32, :]
    w2b = rowB[:, D_FF + D:D_FF + 2 * D]         # W2[32:, :]
    b0 = params[64:65, :]                        # [bq|bk|bv|bo]
    bqkv = b0[:, 0:3 * D]
    bo = b0[:, 3 * D:4 * D]
    b1r = params[65:66, :]                       # [g1|be1|b1]
    g1 = b1r[:, 0:D]
    be1 = b1r[:, D:2 * D]
    b1 = b1r[:, 2 * D:2 * D + D_FF]
    b2r = params[66:67, :]                       # [b2|g2|be2|pad]
    b2 = b2r[:, 0:D]
    g2 = b2r[:, D:2 * D]
    be2 = b2r[:, 2 * D:3 * D]

    # --- fused QKV projection: one (B*S, D) x (D, 3D) matmul (+ fused bias) ---
    qkv = jnp.dot(x, wqkv, preferred_element_type=jnp.float32) + bqkv
    qh = _split_heads(qkv[:, 0:D])                               # (BH, S, DH)
    kt = jnp.swapaxes(_split_heads(qkv[:, D:2 * D]), 1, 2)       # (BH, DH, S) hoisted transpose
    vh = _split_heads(qkv[:, 2 * D:3 * D])                       # (BH, S, DH)

    # --- multi-head self-attention: single batched contraction over B*H ---
    scale = 1.0 / math.sqrt(D_HEAD)
    s = jnp.einsum("nqd,ndk->nqk", qh, kt,
                   preferred_element_type=jnp.float32) * scale   # (BH, S, S)
    s = s - jnp.max(s, axis=-1, keepdims=True)
    e = jnp.exp(s)
    p = e / jnp.sum(e, axis=-1, keepdims=True)                   # exact softmax
    oh = jnp.einsum("nqk,nkd->nqd", p, vh,
                    preferred_element_type=jnp.float32)          # (BH, S, DH)
    merged = (oh.reshape(BATCH, N_HEADS, SEQ, D_HEAD)
                .transpose(0, 2, 1, 3)
                .reshape(BATCH * SEQ, D))                        # (B*S, D)
    # ONE output projection (16,32)@(32,32)
    attn = jnp.dot(merged, wo, preferred_element_type=jnp.float32) + bo

    # --- residual + LayerNorm 1 (dropout = identity in eval) ---
    y1 = _layer_norm(x + attn, g1, be1)

    # --- feed-forward: Linear -> ReLU -> Linear (W2 split along K, f32 acc) ---
    h1 = jnp.maximum(jnp.dot(y1, w1, preferred_element_type=jnp.float32) + b1, 0.0)
    ff = (jnp.dot(h1[:, 0:D], w2a, preferred_element_type=jnp.float32)
          + jnp.dot(h1[:, D:D_FF], w2b, preferred_element_type=jnp.float32)
          + b2)

    # --- residual + LayerNorm 2 ---
    return _layer_norm(y1 + ff, g2, be2)


# ---------------- Pallas kernel: whole encoder (all layers fused) -----------
def encoder_kernel(x_ref, p_ref, o_ref):
    x = x_ref[...].astype(jnp.float32)            # (B*S, D)
    params = p_ref[...]                           # (N_LAYERS*72, 128)
    for layer in range(N_LAYERS):                 # static unroll over layers
        off = layer * ROWS_PER_LAYER
        x = _one_layer(x, params[off:off + ROWS_PER_LAYER, :])
    o_ref[...] = x.astype(o_ref.dtype)


def encoder_forward(x, param_slab):
    """x: (B, S, D) float32; param_slab: (N_LAYERS*72, 128) packed weights."""
    B, S, D = x.shape
    vmem = pltpu.MemorySpace.VMEM
    out = pl.pallas_call(
        encoder_kernel,
        out_shape=jax.ShapeDtypeStruct((B * S, D), x.dtype),
        in_specs=[pl.BlockSpec(memory_space=vmem),
                  pl.BlockSpec(memory_space=vmem)],
        out_specs=pl.BlockSpec(memory_space=vmem),
    )(x.reshape(B * S, D), param_slab)
    return out.reshape(B, S, D)


# ---------------- deterministic parameter init (unpacked, PyTorch-like) -----
def init_layer_params(key):
    ks = jax.random.split(key, 8)

    def lin(k, din, dout):
        w = (jax.random.normal(k, (din, dout), jnp.float32) / np.sqrt(din)).astype(jnp.float32)
        b = jax.random.normal(jax.random.fold_in(k, 1), (1, dout), jnp.float32) * 0.01
        return w, b

    wq, bq = lin(ks[0], D_MODEL, D_MODEL)
    wk, bk = lin(ks[1], D_MODEL, D_MODEL)
    wv, bv = lin(ks[2], D_MODEL, D_MODEL)
    wo, bo = lin(ks[3], D_MODEL, D_MODEL)
    w1, b1 = lin(ks[4], D_MODEL, D_FF)
    w2, b2 = lin(ks[5], D_FF, D_MODEL)
    g1 = jnp.ones((1, D_MODEL), jnp.float32)
    be1 = jnp.zeros((1, D_MODEL), jnp.float32)
    g2 = jnp.ones((1, D_MODEL), jnp.float32)
    be2 = jnp.zeros((1, D_MODEL), jnp.float32)
    return (wq, bq, wk, bk, wv, bv, wo, bo, g1, be1, w1, b1, w2, b2, g2, be2)


def pack_layer_params(p):
    """Pack one layer's params into a lane-dense (72, 128) f32 slab."""
    (wq, bq, wk, bk, wv, bv, wo, bo, g1, be1, w1, b1, w2, b2, g2, be2) = p
    rowA = jnp.concatenate([wq, wk, wv, wo], axis=1)                     # (32, 128)
    rowB = jnp.concatenate([w1, w2[:D_MODEL, :], w2[D_MODEL:, :]], axis=1)  # (32, 128)
    bias0 = jnp.concatenate([bq, bk, bv, bo], axis=1)                    # (1, 128)
    bias1 = jnp.concatenate([g1, be1, b1], axis=1)                       # (1, 128)
    bias2 = jnp.concatenate([b2, g2, be2,
                             jnp.zeros((1, D_MODEL), jnp.float32)], axis=1)  # (1, 128)
    pad = jnp.zeros((5, LANES), jnp.float32)
    return jnp.concatenate([rowA, rowB, bias0, bias1, bias2, pad], axis=0)   # (72, 128)


def pack_all_layers(all_params):
    return jnp.concatenate([pack_layer_params(p) for p in all_params], axis=0)


# ---------------- pure-JAX reference (for correctness check) ----------------
def reference_layer(x, params):
    (wq, bq, wk, bk, wv, bv, wo, bo, g1, be1, w1, b1, w2, b2, g2, be2) = params

    def ln(z, g, b):
        m = jnp.mean(z, -1, keepdims=True)
        v = jnp.mean((z - m) ** 2, -1, keepdims=True)
        return (z - m) / jnp.sqrt(v + LN_EPS) * g + b

    B, S, D = x.shape
    q = x @ wq + bq
    k = x @ wk + bk
    v = x @ wv + bv
    qh = q.reshape(B, S, N_HEADS, D_HEAD).transpose(0, 2, 1, 3)
    kh = k.reshape(B, S, N_HEADS, D_HEAD).transpose(0, 2, 1, 3)
    vh = v.reshape(B, S, N_HEADS, D_HEAD).transpose(0, 2, 1, 3)
    s = jnp.einsum("bhqd,bhkd->bhqk", qh, kh) / math.sqrt(D_HEAD)
    p = jax.nn.softmax(s, axis=-1)
    a = jnp.einsum("bhqk,bhkd->bhqd", p, vh).transpose(0, 2, 1, 3).reshape(B, S, D)
    a = a @ wo + bo
    y1 = ln(x + a, g1, be1)
    ff = jnp.maximum(y1 @ w1 + b1, 0.0) @ w2 + b2
    return ln(y1 + ff, g2, be2)


def reference_forward(x, all_params):
    for p in all_params:
        x = reference_layer(x, p)
    return x


# ---------------- main -------------------------------------------------------
if __name__ == "__main__":
    root = jax.random.PRNGKey(0)
    xkey, pkey = jax.random.split(root)

    x = jax.random.normal(xkey, (BATCH, SEQ, D_MODEL), jnp.float32)
    raw_params = [init_layer_params(jax.random.fold_in(pkey, i)) for i in range(N_LAYERS)]
    param_slab = pack_all_layers(raw_params)          # (144, 128) f32

    out = jax.block_until_ready(encoder_forward(x, param_slab))
    ref = jax.block_until_ready(reference_forward(x, raw_params))

    np.testing.assert_allclose(np.asarray(out), np.asarray(ref), rtol=2e-3, atol=2e-3)

    print("KERNEL_OK")
</pallas_src>

<mosaic_0001>
module attributes {stable_mosaic.version = 11 : i64} {
  func.func @encoder_kernel(%arg0: memref<16x32xf32, #tpu.memory_space<vmem>>, %arg1: memref<144x128xf32, #tpu.memory_space<vmem>>, %arg2: memref<16x32xf32, #tpu.memory_space<vmem>>) attributes {dimension_semantics = [], scalar_prefetch = 0 : i64, scratch_operands = 0 : i64, tpu.core_type = #tpu.core_type<tc>} {
    %c0 = arith.constant 0 : index
    %c0_0 = arith.constant 0 : index
    %0 = vector.load %arg0[%c0, %c0_0] : memref<16x32xf32, #tpu.memory_space<vmem>>, vector<16x32xf32>
    %c0_1 = arith.constant 0 : index
    %c0_2 = arith.constant 0 : index
    %1 = vector.load %arg1[%c0_1, %c0_2] : memref<144x128xf32, #tpu.memory_space<vmem>>, vector<144x128xf32>
    %2 = vector.extract_strided_slice %1 {offsets = [0, 0], sizes = [72, 128], strides = [1, 1]} : vector<144x128xf32> to vector<72x128xf32>
    %3 = vector.extract_strided_slice %2 {offsets = [0, 0], sizes = [32, 128], strides = [1, 1]} : vector<72x128xf32> to vector<32x128xf32>
    %4 = vector.extract_strided_slice %3 {offsets = [0, 0], sizes = [32, 96], strides = [1, 1]} : vector<32x128xf32> to vector<32x96xf32>
    %5 = vector.extract_strided_slice %3 {offsets = [0, 96], sizes = [32, 32], strides = [1, 1]} : vector<32x128xf32> to vector<32x32xf32>
    %6 = vector.extract_strided_slice %2 {offsets = [32, 0], sizes = [32, 128], strides = [1, 1]} : vector<72x128xf32> to vector<32x128xf32>
    %7 = vector.extract_strided_slice %6 {offsets = [0, 0], sizes = [32, 64], strides = [1, 1]} : vector<32x128xf32> to vector<32x64xf32>
    %8 = vector.extract_strided_slice %6 {offsets = [0, 64], sizes = [32, 32], strides = [1, 1]} : vector<32x128xf32> to vector<32x32xf32>
    %9 = vector.extract_strided_slice %6 {offsets = [0, 96], sizes = [32, 32], strides = [1, 1]} : vector<32x128xf32> to vector<32x32xf32>
    %10 = vector.extract_strided_slice %2 {offsets = [64, 0], sizes = [1, 128], strides = [1, 1]} : vector<72x128xf32> to vector<1x128xf32>
    %11 = vector.extract_strided_slice %10 {offsets = [0, 0], sizes = [1, 96], strides = [1, 1]} : vector<1x128xf32> to vector<1x96xf32>
    %12 = vector.extract_strided_slice %10 {offsets = [0, 96], sizes = [1, 32], strides = [1, 1]} : vector<1x128xf32> to vector<1x32xf32>
    %13 = vector.extract_strided_slice %2 {offsets = [65, 0], sizes = [1, 128], strides = [1, 1]} : vector<72x128xf32> to vector<1x128xf32>
    %14 = vector.extract_strided_slice %13 {offsets = [0, 0], sizes = [1, 32], strides = [1, 1]} : vector<1x128xf32> to vector<1x32xf32>
    %15 = vector.extract_strided_slice %13 {offsets = [0, 32], sizes = [1, 32], strides = [1, 1]} : vector<1x128xf32> to vector<1x32xf32>
    %16 = vector.extract_strided_slice %13 {offsets = [0, 64], sizes = [1, 64], strides = [1, 1]} : vector<1x128xf32> to vector<1x64xf32>
    %17 = vector.extract_strided_slice %2 {offsets = [66, 0], sizes = [1, 128], strides = [1, 1]} : vector<72x128xf32> to vector<1x128xf32>
    %18 = vector.extract_strided_slice %17 {offsets = [0, 0], sizes = [1, 32], strides = [1, 1]} : vector<1x128xf32> to vector<1x32xf32>
    %19 = vector.extract_strided_slice %17 {offsets = [0, 32], sizes = [1, 32], strides = [1, 1]} : vector<1x128xf32> to vector<1x32xf32>
    %20 = vector.extract_strided_slice %17 {offsets = [0, 64], sizes = [1, 32], strides = [1, 1]} : vector<1x128xf32> to vector<1x32xf32>
    %cst = arith.constant dense<0.000000e+00> : vector<16x96xf32>
    %21 = tpu.matmul %0, %4, %cst {dimension_numbers = #tpu.dot_dimension_numbers<[1], [0], [0], [1], [0, 0, 1, 1], [], []>} : vector<16x32xf32>, vector<32x96xf32>, vector<16x96xf32> -> vector<16x96xf32>
    %22 = vector.broadcast %11 : vector<1x96xf32> to vector<16x96xf32>
    %23 = arith.addf %21, %22 : vector<16x96xf32>
    %24 = vector.extract_strided_slice %23 {offsets = [0, 0], sizes = [16, 32], strides = [1, 1]} : vector<16x96xf32> to vector<16x32xf32>
    %25 = vector.shape_cast %24 : vector<16x32xf32> to vector<2x8x4x8xf32>
    %26 = tpu.transpose %25, [0, 2, 1, 3] : vector<2x8x4x8xf32> -> vector<2x4x8x8xf32>
    %27 = vector.shape_cast %26 : vector<2x4x8x8xf32> to vector<8x8x8xf32>
    %28 = vector.extract_strided_slice %23 {offsets = [0, 32], sizes = [16, 32], strides = [1, 1]} : vector<16x96xf32> to vector<16x32xf32>
    %29 = vector.shape_cast %28 : vector<16x32xf32> to vector<2x8x4x8xf32>
    %30 = tpu.transpose %29, [0, 2, 1, 3] : vector<2x8x4x8xf32> -> vector<2x4x8x8xf32>
    %31 = vector.shape_cast %30 : vector<2x4x8x8xf32> to vector<8x8x8xf32>
    %32 = tpu.transpose %31, [0, 2, 1] : vector<8x8x8xf32> -> vector<8x8x8xf32>
    %33 = vector.extract_strided_slice %23 {offsets = [0, 64], sizes = [16, 32], strides = [1, 1]} : vector<16x96xf32> to vector<16x32xf32>
    %34 = vector.shape_cast %33 : vector<16x32xf32> to vector<2x8x4x8xf32>
    %35 = tpu.transpose %34, [0, 2, 1, 3] : vector<2x8x4x8xf32> -> vector<2x4x8x8xf32>
    %36 = vector.shape_cast %35 : vector<2x4x8x8xf32> to vector<8x8x8xf32>
    "tpu.trace_start"() <{level = 10 : i32, message = "nqd,ndk->nqk"}> : () -> ()
    %cst_3 = arith.constant dense<0.000000e+00> : vector<8x8x8xf32>
    %37 = tpu.matmul %27, %32, %cst_3 {dimension_numbers = #tpu.dot_dimension_numbers<[2], [1], [1], [2], [0, 0, 0, 1, 1, 2], [0], [0]>} : vector<8x8x8xf32>, vector<8x8x8xf32>, vector<8x8x8xf32> -> vector<8x8x8xf32>
    "tpu.trace_stop"() : () -> ()
    %cst_4 = arith.constant 0.353553385 : f32
    %38 = vector.broadcast %cst_4 : f32 to vector<8x8x8xf32>
    %39 = arith.mulf %37, %38 : vector<8x8x8xf32>
    %cst_5 = arith.constant dense<0xFF800000> : vector<8x8xf32>
    %40 = vector.multi_reduction <maximumf>, %39, %cst_5 [2] : vector<8x8x8xf32> to vector<8x8xf32>
    %41 = vector.shape_cast %40 : vector<8x8xf32> to vector<8x8x1xf32>
    %42 = vector.broadcast %41 : vector<8x8x1xf32> to vector<8x8x8xf32>
    %43 = arith.subf %39, %42 : vector<8x8x8xf32>
    %44 = math.exp %43 : vector<8x8x8xf32>
    %cst_6 = arith.constant dense<0.000000e+00> : vector<8x8xf32>
    %45 = vector.multi_reduction <add>, %44, %cst_6 [2] : vector<8x8x8xf32> to vector<8x8xf32>
    %46 = vector.shape_cast %45 : vector<8x8xf32> to vector<8x8x1xf32>
    %47 = vector.broadcast %46 : vector<8x8x1xf32> to vector<8x8x8xf32>
    %48 = arith.divf %44, %47 : vector<8x8x8xf32>
    "tpu.trace_start"() <{level = 10 : i32, message = "nqk,nkd->nqd"}> : () -> ()
    %cst_7 = arith.constant dense<0.000000e+00> : vector<8x8x8xf32>
    %49 = tpu.matmul %48, %36, %cst_7 {dimension_numbers = #tpu.dot_dimension_numbers<[2], [1], [1], [2], [0, 0, 0, 1, 1, 2], [0], [0]>} : vector<8x8x8xf32>, vector<8x8x8xf32>, vector<8x8x8xf32> -> vector<8x8x8xf32>
    "tpu.trace_stop"() : () -> ()
    %50 = vector.shape_cast %49 : vector<8x8x8xf32> to vector<2x4x8x8xf32>
    %51 = tpu.transpose %50, [0, 2, 1, 3] : vector<2x4x8x8xf32> -> vector<2x8x4x8xf32>
    %52 = vector.shape_cast %51 : vector<2x8x4x8xf32> to vector<16x32xf32>
    %cst_8 = arith.constant dense<0.000000e+00> : vector<16x32xf32>
    %53 = tpu.matmul %52, %5, %cst_8 {dimension_numbers = #tpu.dot_dimension_numbers<[1], [0], [0], [1], [0, 0, 1, 1], [], []>} : vector<16x32xf32>, vector<32x32xf32>, vector<16x32xf32> -> vector<16x32xf32>
    %54 = vector.broadcast %12 : vector<1x32xf32> to vector<16x32xf32>
    %55 = arith.addf %53, %54 : vector<16x32xf32>
    %56 = arith.addf %0, %55 : vector<16x32xf32>
    %cst_9 = arith.constant dense<0.000000e+00> : vector<16xf32>
    %57 = vector.multi_reduction <add>, %56, %cst_9 [1] : vector<16x32xf32> to vector<16xf32>
    %58 = vector.shape_cast %57 : vector<16xf32> to vector<16x1xf32>
    %cst_10 = arith.constant 3.200000e+01 : f32
    %59 = vector.broadcast %cst_10 : f32 to vector<16x1xf32>
    %60 = arith.divf %58, %59 : vector<16x1xf32>
    %61 = vector.broadcast %60 : vector<16x1xf32> to vector<16x32xf32>
    %62 = arith.subf %56, %61 : vector<16x32xf32>
    %63 = arith.mulf %62, %62 : vector<16x32xf32>
    %cst_11 = arith.constant dense<0.000000e+00> : vector<16xf32>
    %64 = vector.multi_reduction <add>, %63, %cst_11 [1] : vector<16x32xf32> to vector<16xf32>
    %65 = vector.shape_cast %64 : vector<16xf32> to vector<16x1xf32>
    %cst_12 = arith.constant 3.200000e+01 : f32
    %66 = vector.broadcast %cst_12 : f32 to vector<16x1xf32>
    %67 = arith.divf %65, %66 : vector<16x1xf32>
    %cst_13 = arith.constant 9.99999974E-6 : f32
    %68 = vector.broadcast %cst_13 : f32 to vector<16x1xf32>
    %69 = arith.addf %67, %68 : vector<16x1xf32>
    %70 = math.rsqrt %69 : vector<16x1xf32>
    %71 = vector.broadcast %70 : vector<16x1xf32> to vector<16x32xf32>
    %72 = arith.mulf %62, %71 : vector<16x32xf32>
    %73 = vector.broadcast %14 : vector<1x32xf32> to vector<16x32xf32>
    %74 = arith.mulf %72, %73 : vector<16x32xf32>
    %75 = vector.broadcast %15 : vector<1x32xf32> to vector<16x32xf32>
    %76 = arith.addf %74, %75 : vector<16x32xf32>
    %cst_14 = arith.constant dense<0.000000e+00> : vector<16x64xf32>
    %77 = tpu.matmul %76, %7, %cst_14 {dimension_numbers = #tpu.dot_dimension_numbers<[1], [0], [0], [1], [0, 0, 1, 1], [], []>} : vector<16x32xf32>, vector<32x64xf32>, vector<16x64xf32> -> vector<16x64xf32>
    %78 = vector.broadcast %16 : vector<1x64xf32> to vector<16x64xf32>
    %79 = arith.addf %77, %78 : vector<16x64xf32>
    %cst_15 = arith.constant 0.000000e+00 : f32
    %80 = vector.broadcast %cst_15 : f32 to vector<16x64xf32>
    %81 = arith.maximumf %79, %80 : vector<16x64xf32>
    %82 = vector.extract_strided_slice %81 {offsets = [0, 0], sizes = [16, 32], strides = [1, 1]} : vector<16x64xf32> to vector<16x32xf32>
    %cst_16 = arith.constant dense<0.000000e+00> : vector<16x32xf32>
    %83 = tpu.matmul %82, %8, %cst_16 {dimension_numbers = #tpu.dot_dimension_numbers<[1], [0], [0], [1], [0, 0, 1, 1], [], []>} : vector<16x32xf32>, vector<32x32xf32>, vector<16x32xf32> -> vector<16x32xf32>
    %84 = vector.extract_strided_slice %81 {offsets = [0, 32], sizes = [16, 32], strides = [1, 1]} : vector<16x64xf32> to vector<16x32xf32>
    %cst_17 = arith.constant dense<0.000000e+00> : vector<16x32xf32>
    %85 = tpu.matmul %84, %9, %cst_17 {dimension_numbers = #tpu.dot_dimension_numbers<[1], [0], [0], [1], [0, 0, 1, 1], [], []>} : vector<16x32xf32>, vector<32x32xf32>, vector<16x32xf32> -> vector<16x32xf32>
    %86 = arith.addf %83, %85 : vector<16x32xf32>
    %87 = vector.broadcast %18 : vector<1x32xf32> to vector<16x32xf32>
    %88 = arith.addf %86, %87 : vector<16x32xf32>
    %89 = arith.addf %76, %88 : vector<16x32xf32>
    %cst_18 = arith.constant dense<0.000000e+00> : vector<16xf32>
    %90 = vector.multi_reduction <add>, %89, %cst_18 [1] : vector<16x32xf32> to vector<16xf32>
    %91 = vector.shape_cast %90 : vector<16xf32> to vector<16x1xf32>
    %cst_19 = arith.constant 3.200000e+01 : f32
    %92 = vector.broadcast %cst_19 : f32 to vector<16x1xf32>
    %93 = arith.divf %91, %92 : vector<16x1xf32>
    %94 = vector.broadcast %93 : vector<16x1xf32> to vector<16x32xf32>
    %95 = arith.subf %89, %94 : vector<16x32xf32>
    %96 = arith.mulf %95, %95 : vector<16x32xf32>
    %cst_20 = arith.constant dense<0.000000e+00> : vector<16xf32>
    %97 = vector.multi_reduction <add>, %96, %cst_20 [1] : vector<16x32xf32> to vector<16xf32>
    %98 = vector.shape_cast %97 : vector<16xf32> to vector<16x1xf32>
    %cst_21 = arith.constant 3.200000e+01 : f32
    %99 = vector.broadcast %cst_21 : f32 to vector<16x1xf32>
    %100 = arith.divf %98, %99 : vector<16x1xf32>
    %cst_22 = arith.constant 9.99999974E-6 : f32
    %101 = vector.broadcast %cst_22 : f32 to vector<16x1xf32>
    %102 = arith.addf %100, %101 : vector<16x1xf32>
    %103 = math.rsqrt %102 : vector<16x1xf32>
    %104 = vector.broadcast %103 : vector<16x1xf32> to vector<16x32xf32>
    %105 = arith.mulf %95, %104 : vector<16x32xf32>
    %106 = vector.broadcast %19 : vector<1x32xf32> to vector<16x32xf32>
    %107 = arith.mulf %105, %106 : vector<16x32xf32>
    %108 = vector.broadcast %20 : vector<1x32xf32> to vector<16x32xf32>
    %109 = arith.addf %107, %108 : vector<16x32xf32>
    %110 = vector.extract_strided_slice %1 {offsets = [72, 0], sizes = [72, 128], strides = [1, 1]} : vector<144x128xf32> to vector<72x128xf32>
    %111 = vector.extract_strided_slice %110 {offsets = [0, 0], sizes = [32, 128], strides = [1, 1]} : vector<72x128xf32> to vector<32x128xf32>
    %112 = vector.extract_strided_slice %111 {offsets = [0, 0], sizes = [32, 96], strides = [1, 1]} : vector<32x128xf32> to vector<32x96xf32>
    %113 = vector.extract_strided_slice %111 {offsets = [0, 96], sizes = [32, 32], strides = [1, 1]} : vector<32x128xf32> to vector<32x32xf32>
    %114 = vector.extract_strided_slice %110 {offsets = [32, 0], sizes = [32, 128], strides = [1, 1]} : vector<72x128xf32> to vector<32x128xf32>
    %115 = vector.extract_strided_slice %114 {offsets = [0, 0], sizes = [32, 64], strides = [1, 1]} : vector<32x128xf32> to vector<32x64xf32>
    %116 = vector.extract_strided_slice %114 {offsets = [0, 64], sizes = [32, 32], strides = [1, 1]} : vector<32x128xf32> to vector<32x32xf32>
    %117 = vector.extract_strided_slice %114 {offsets = [0, 96], sizes = [32, 32], strides = [1, 1]} : vector<32x128xf32> to vector<32x32xf32>
    %118 = vector.extract_strided_slice %110 {offsets = [64, 0], sizes = [1, 128], strides = [1, 1]} : vector<72x128xf32> to vector<1x128xf32>
    %119 = vector.extract_strided_slice %118 {offsets = [0, 0], sizes = [1, 96], strides = [1, 1]} : vector<1x128xf32> to vector<1x96xf32>
    %120 = vector.extract_strided_slice %118 {offsets = [0, 96], sizes = [1, 32], strides = [1, 1]} : vector<1x128xf32> to vector<1x32xf32>
    %121 = vector.extract_strided_slice %110 {offsets = [65, 0], sizes = [1, 128], strides = [1, 1]} : vector<72x128xf32> to vector<1x128xf32>
    %122 = vector.extract_strided_slice %121 {offsets = [0, 0], sizes = [1, 32], strides = [1, 1]} : vector<1x128xf32> to vector<1x32xf32>
    %123 = vector.extract_strided_slice %121 {offsets = [0, 32], sizes = [1, 32], strides = [1, 1]} : vector<1x128xf32> to vector<1x32xf32>
    %124 = vector.extract_strided_slice %121 {offsets = [0, 64], sizes = [1, 64], strides = [1, 1]} : vector<1x128xf32> to vector<1x64xf32>
    %125 = vector.extract_strided_slice %110 {offsets = [66, 0], sizes = [1, 128], strides = [1, 1]} : vector<72x128xf32> to vector<1x128xf32>
    %126 = vector.extract_strided_slice %125 {offsets = [0, 0], sizes = [1, 32], strides = [1, 1]} : vector<1x128xf32> to vector<1x32xf32>
    %127 = vector.extract_strided_slice %125 {offsets = [0, 32], sizes = [1, 32], strides = [1, 1]} : vector<1x128xf32> to vector<1x32xf32>
    %128 = vector.extract_strided_slice %125 {offsets = [0, 64], sizes = [1, 32], strides = [1, 1]} : vector<1x128xf32> to vector<1x32xf32>
    %cst_23 = arith.constant dense<0.000000e+00> : vector<16x96xf32>
    %129 = tpu.matmul %109, %112, %cst_23 {dimension_numbers = #tpu.dot_dimension_numbers<[1], [0], [0], [1], [0, 0, 1, 1], [], []>} : vector<16x32xf32>, vector<32x96xf32>, vector<16x96xf32> -> vector<16x96xf32>
    %130 = vector.broadcast %119 : vector<1x96xf32> to vector<16x96xf32>
    %131 = arith.addf %129, %130 : vector<16x96xf32>
    %132 = vector.extract_strided_slice %131 {offsets = [0, 0], sizes = [16, 32], strides = [1, 1]} : vector<16x96xf32> to vector<16x32xf32>
    %133 = vector.shape_cast %132 : vector<16x32xf32> to vector<2x8x4x8xf32>
    %134 = tpu.transpose %133, [0, 2, 1, 3] : vector<2x8x4x8xf32> -> vector<2x4x8x8xf32>
    %135 = vector.shape_cast %134 : vector<2x4x8x8xf32> to vector<8x8x8xf32>
    %136 = vector.extract_strided_slice %131 {offsets = [0, 32], sizes = [16, 32], strides = [1, 1]} : vector<16x96xf32> to vector<16x32xf32>
    %137 = vector.shape_cast %136 : vector<16x32xf32> to vector<2x8x4x8xf32>
    %138 = tpu.transpose %137, [0, 2, 1, 3] : vector<2x8x4x8xf32> -> vector<2x4x8x8xf32>
    %139 = vector.shape_cast %138 : vector<2x4x8x8xf32> to vector<8x8x8xf32>
    %140 = tpu.transpose %139, [0, 2, 1] : vector<8x8x8xf32> -> vector<8x8x8xf32>
    %141 = vector.extract_strided_slice %131 {offsets = [0, 64], sizes = [16, 32], strides = [1, 1]} : vector<16x96xf32> to vector<16x32xf32>
    %142 = vector.shape_cast %141 : vector<16x32xf32> to vector<2x8x4x8xf32>
    %143 = tpu.transpose %142, [0, 2, 1, 3] : vector<2x8x4x8xf32> -> vector<2x4x8x8xf32>
    %144 = vector.shape_cast %143 : vector<2x4x8x8xf32> to vector<8x8x8xf32>
    "tpu.trace_start"() <{level = 10 : i32, message = "nqd,ndk->nqk"}> : () -> ()
    %cst_24 = arith.constant dense<0.000000e+00> : vector<8x8x8xf32>
    %145 = tpu.matmul %135, %140, %cst_24 {dimension_numbers = #tpu.dot_dimension_numbers<[2], [1], [1], [2], [0, 0, 0, 1, 1, 2], [0], [0]>} : vector<8x8x8xf32>, vector<8x8x8xf32>, vector<8x8x8xf32> -> vector<8x8x8xf32>
    "tpu.trace_stop"() : () -> ()
    %cst_25 = arith.constant 0.353553385 : f32
    %146 = vector.broadcast %cst_25 : f32 to vector<8x8x8xf32>
    %147 = arith.mulf %145, %146 : vector<8x8x8xf32>
    %cst_26 = arith.constant dense<0xFF800000> : vector<8x8xf32>
    %148 = vector.multi_reduction <maximumf>, %147, %cst_26 [2] : vector<8x8x8xf32> to vector<8x8xf32>
    %149 = vector.shape_cast %148 : vector<8x8xf32> to vector<8x8x1xf32>
    %150 = vector.broadcast %149 : vector<8x8x1xf32> to vector<8x8x8xf32>
    %151 = arith.subf %147, %150 : vector<8x8x8xf32>
    %152 = math.exp %151 : vector<8x8x8xf32>
    %cst_27 = arith.constant dense<0.000000e+00> : vector<8x8xf32>
    %153 = vector.multi_reduction <add>, %152, %cst_27 [2] : vector<8x8x8xf32> to vector<8x8xf32>
    %154 = vector.shape_cast %153 : vector<8x8xf32> to vector<8x8x1xf32>
    %155 = vector.broadcast %154 : vector<8x8x1xf32> to vector<8x8x8xf32>
    %156 = arith.divf %152, %155 : vector<8x8x8xf32>
    "tpu.trace_start"() <{level = 10 : i32, message = "nqk,nkd->nqd"}> : () -> ()
    %cst_28 = arith.constant dense<0.000000e+00> : vector<8x8x8xf32>
    %157 = tpu.matmul %156, %144, %cst_28 {dimension_numbers = #tpu.dot_dimension_numbers<[2], [1], [1], [2], [0, 0, 0, 1, 1, 2], [0], [0]>} : vector<8x8x8xf32>, vector<8x8x8xf32>, vector<8x8x8xf32> -> vector<8x8x8xf32>
    "tpu.trace_stop"() : () -> ()
    %158 = vector.shape_cast %157 : vector<8x8x8xf32> to vector<2x4x8x8xf32>
    %159 = tpu.transpose %158, [0, 2, 1, 3] : vector<2x4x8x8xf32> -> vector<2x8x4x8xf32>
    %160 = vector.shape_cast %159 : vector<2x8x4x8xf32> to vector<16x32xf32>
    %cst_29 = arith.constant dense<0.000000e+00> : vector<16x32xf32>
    %161 = tpu.matmul %160, %113, %cst_29 {dimension_numbers = #tpu.dot_dimension_numbers<[1], [0], [0], [1], [0, 0, 1, 1], [], []>} : vector<16x32xf32>, vector<32x32xf32>, vector<16x32xf32> -> vector<16x32xf32>
    %162 = vector.broadcast %120 : vector<1x32xf32> to vector<16x32xf32>
    %163 = arith.addf %161, %162 : vector<16x32xf32>
    %164 = arith.addf %109, %163 : vector<16x32xf32>
    %cst_30 = arith.constant dense<0.000000e+00> : vector<16xf32>
    %165 = vector.multi_reduction <add>, %164, %cst_30 [1] : vector<16x32xf32> to vector<16xf32>
    %166 = vector.shape_cast %165 : vector<16xf32> to vector<16x1xf32>
    %cst_31 = arith.constant 3.200000e+01 : f32
    %167 = vector.broadcast %cst_31 : f32 to vector<16x1xf32>
    %168 = arith.divf %166, %167 : vector<16x1xf32>
    %169 = vector.broadcast %168 : vector<16x1xf32> to vector<16x32xf32>
    %170 = arith.subf %164, %169 : vector<16x32xf32>
    %171 = arith.mulf %170, %170 : vector<16x32xf32>
    %cst_32 = arith.constant dense<0.000000e+00> : vector<16xf32>
    %172 = vector.multi_reduction <add>, %171, %cst_32 [1] : vector<16x32xf32> to vector<16xf32>
    %173 = vector.shape_cast %172 : vector<16xf32> to vector<16x1xf32>
    %cst_33 = arith.constant 3.200000e+01 : f32
    %174 = vector.broadcast %cst_33 : f32 to vector<16x1xf32>
    %175 = arith.divf %173, %174 : vector<16x1xf32>
    %cst_34 = arith.constant 9.99999974E-6 : f32
    %176 = vector.broadcast %cst_34 : f32 to vector<16x1xf32>
    %177 = arith.addf %175, %176 : vector<16x1xf32>
    %178 = math.rsqrt %177 : vector<16x1xf32>
    %179 = vector.broadcast %178 : vector<16x1xf32> to vector<16x32xf32>
    %180 = arith.mulf %170, %179 : vector<16x32xf32>
    %181 = vector.broadcast %122 : vector<1x32xf32> to vector<16x32xf32>
    %182 = arith.mulf %180, %181 : vector<16x32xf32>
    %183 = vector.broadcast %123 : vector<1x32xf32> to vector<16x32xf32>
    %184 = arith.addf %182, %183 : vector<16x32xf32>
    %cst_35 = arith.constant dense<0.000000e+00> : vector<16x64xf32>
    %185 = tpu.matmul %184, %115, %cst_35 {dimension_numbers = #tpu.dot_dimension_numbers<[1], [0], [0], [1], [0, 0, 1, 1], [], []>} : vector<16x32xf32>, vector<32x64xf32>, vector<16x64xf32> -> vector<16x64xf32>
    %186 = vector.broadcast %124 : vector<1x64xf32> to vector<16x64xf32>
    %187 = arith.addf %185, %186 : vector<16x64xf32>
    %cst_36 = arith.constant 0.000000e+00 : f32
    %188 = vector.broadcast %cst_36 : f32 to vector<16x64xf32>
    %189 = arith.maximumf %187, %188 : vector<16x64xf32>
    %190 = vector.extract_strided_slice %189 {offsets = [0, 0], sizes = [16, 32], strides = [1, 1]} : vector<16x64xf32> to vector<16x32xf32>
    %cst_37 = arith.constant dense<0.000000e+00> : vector<16x32xf32>
    %191 = tpu.matmul %190, %116, %cst_37 {dimension_numbers = #tpu.dot_dimension_numbers<[1], [0], [0], [1], [0, 0, 1, 1], [], []>} : vector<16x32xf32>, vector<32x32xf32>, vector<16x32xf32> -> vector<16x32xf32>
    %192 = vector.extract_strided_slice %189 {offsets = [0, 32], sizes = [16, 32], strides = [1, 1]} : vector<16x64xf32> to vector<16x32xf32>
    %cst_38 = arith.constant dense<0.000000e+00> : vector<16x32xf32>
    %193 = tpu.matmul %192, %117, %cst_38 {dimension_numbers = #tpu.dot_dimension_numbers<[1], [0], [0], [1], [0, 0, 1, 1], [], []>} : vector<16x32xf32>, vector<32x32xf32>, vector<16x32xf32> -> vector<16x32xf32>
    %194 = arith.addf %191, %193 : vector<16x32xf32>
    %195 = vector.broadcast %126 : vector<1x32xf32> to vector<16x32xf32>
    %196 = arith.addf %194, %195 : vector<16x32xf32>
    %197 = arith.addf %184, %196 : vector<16x32xf32>
    %cst_39 = arith.constant dense<0.000000e+00> : vector<16xf32>
    %198 = vector.multi_reduction <add>, %197, %cst_39 [1] : vector<16x32xf32> to vector<16xf32>
    %199 = vector.shape_cast %198 : vector<16xf32> to vector<16x1xf32>
    %cst_40 = arith.constant 3.200000e+01 : f32
    %200 = vector.broadcast %cst_40 : f32 to vector<16x1xf32>
    %201 = arith.divf %199, %200 : vector<16x1xf32>
    %202 = vector.broadcast %201 : vector<16x1xf32> to vector<16x32xf32>
    %203 = arith.subf %197, %202 : vector<16x32xf32>
    %204 = arith.mulf %203, %203 : vector<16x32xf32>
    %cst_41 = arith.constant dense<0.000000e+00> : vector<16xf32>
    %205 = vector.multi_reduction <add>, %204, %cst_41 [1] : vector<16x32xf32> to vector<16xf32>
    %206 = vector.shape_cast %205 : vector<16xf32> to vector<16x1xf32>
    %cst_42 = arith.constant 3.200000e+01 : f32
    %207 = vector.broadcast %cst_42 : f32 to vector<16x1xf32>
    %208 = arith.divf %206, %207 : vector<16x1xf32>
    %cst_43 = arith.constant 9.99999974E-6 : f32
    %209 = vector.broadcast %cst_43 : f32 to vector<16x1xf32>
    %210 = arith.addf %208, %209 : vector<16x1xf32>
    %211 = math.rsqrt %210 : vector<16x1xf32>
    %212 = vector.broadcast %211 : vector<16x1xf32> to vector<16x32xf32>
    %213 = arith.mulf %203, %212 : vector<16x32xf32>
    %214 = vector.broadcast %127 : vector<1x32xf32> to vector<16x32xf32>
    %215 = arith.mulf %213, %214 : vector<16x32xf32>
    %216 = vector.broadcast %128 : vector<1x32xf32> to vector<16x32xf32>
    %217 = arith.addf %215, %216 : vector<16x32xf32>
    %c0_44 = arith.constant 0 : index
    %c0_45 = arith.constant 0 : index
    %218 = vector.load %arg2[%c0_44, %c0_45] : memref<16x32xf32, #tpu.memory_space<vmem>>, vector<16x32xf32>
    tpu.vector_store %arg2[%c0_44, %c0_45], %217 {strides = array<i32>} : memref<16x32xf32, #tpu.memory_space<vmem>>, vector<16x32xf32>,
    return
  }
}

</mosaic_0001>

<llo_original>
// kernel: tpu_custom_call.1
$region0: #{tpu_custom_call.1}
  #allocation0 [shape = 'u32[]', space=smem, size = 0x4, offset = 0x4, fixed_abs, tag = 'smem constant byte address 0x4 - core index']
  #allocation1 [shape = 'u32[144,128]{1,0:T(1,128)}', space=vmem, size = 0x12000, scoped, tag = 'internal scratch']
  %s0 = inlined_call_operand.hbm [shape: f32[16,32], index: 0, kind: input, shape index: {}]
  %s1 = inlined_call_operand.hbm [shape: f32[144,128], index: 1, kind: input, shape index: {}]
  %s2 = inlined_call_operand.hbm [shape: f32[16,32], index: 2, kind: output, shape index: {}]
  %s3 = sld [smem:[#allocation0]]
  $region26: #{tpu_custom_call.1} parent=0
    _
  %s5 = ssub.s32 1, %s3
  %s6 = scalar_select 0, %s5, %s3
  $region1: #{tpu_custom_call.1} parent=0
    #allocation2 [shape = 'u8[8192]{0}', space=vmem, size = 0x2000, scoped, tag = 'input window, operand 0, single buffered']
    #allocation3 [shape = 's32[1]{0}', space=sflag, size = 0x4, scoped, tag = 'scoped memory for tpu_custom_call.1']
    #allocation4 [shape = 's32[1]{0}', space=sflag, size = 0x4, scoped, tag = 'scoped memory for tpu_custom_call.1']
    #allocation5 [shape = 'u8[73728]{0}', space=vmem, size = 0x12000, scoped, tag = 'input window, operand 1, single buffered']
    #allocation6 [shape = 's32[1]{0}', space=sflag, size = 0x4, scoped, tag = 'scoped memory for tpu_custom_call.1']
    #allocation7 [shape = 'u8[8192]{0}', space=vmem, size = 0x2000, scoped, tag = 'output window, operand 0, single buffered']
    %7 = vsyncpa [#allocation3], 0
    %8 = vsyncpa [#allocation6], 0
    %9 = vsyncpa [#allocation4], 0
    // Predicated region
    $region2: #{tpu_custom_call.1} parent=1 // pred_check
      _
    $region3: #{tpu_custom_call.1} parent=1 // pred_check_branch
      %11 = sbr.rel (0) target = $region5
    $region4: #{tpu_custom_call.1} parent=1 // pred_region
      %s13 = ssub.s32 256, 256
      %14 = vsyncadd [#allocation3], %s13
      %s15 = sshll.u32 [#allocation2], 4
      %s16 = int_to_ptr.vmem [resolvable:$true] %s15
      %21 = dma.hbm_to_vmem [thread:$0]  %s0, 256, %s16, [#allocation3], 128, 128, 8
    $region5: #{tpu_custom_call.1} parent=1 // pred_fallthru
      _
    // Predicated region
    $region6: #{tpu_custom_call.1} parent=1 // pred_check
      _
    $region7: #{tpu_custom_call.1} parent=1 // pred_check_branch
      %23 = sbr.rel (0) target = $region9
    $region8: #{tpu_custom_call.1} parent=1 // pred_region
      %s25 = ssub.s32 2304, 2304
      %26 = vsyncadd [#allocation6], %s25
      %s27 = sshll.u32 [#allocation5], 4
      %s28 = int_to_ptr.vmem [resolvable:$true] %s27
      %33 = dma.hbm_to_vmem [thread:$0]  %s1, 2304, %s28, [#allocation6], 128, 128, 8
    $region9: #{tpu_custom_call.1} parent=1 // pred_fallthru
      _
    // Predicated region
    $region10: #{tpu_custom_call.1} parent=1 // pred_check
      _
    $region11: #{tpu_custom_call.1} parent=1 // pred_check_branch
      %35 = sbr.rel (0) target = $region13
    $region12: #{tpu_custom_call.1} parent=1 // pred_region
      %36 = dma.done [#allocation3], 256
    $region13: #{tpu_custom_call.1} parent=1 // pred_fallthru
      _
    // Predicated region
    $region14: #{tpu_custom_call.1} parent=1 // pred_check
      _
    $region15: #{tpu_custom_call.1} parent=1 // pred_check_branch
      %38 = sbr.rel (0) target = $region17
    $region16: #{tpu_custom_call.1} parent=1 // pred_region
      %39 = dma.done [#allocation6], 2304
    $region17: #{tpu_custom_call.1} parent=1 // pred_fallthru
      _
    %v40 = vld [vmem:[#allocation2] sm:$0xff]
    %v41 = vld [vmem:[#allocation2 + $0x8] sm:$0xff]
    %v42 = vld [vmem:[#allocation5] sm:$0xff]
    %v43 = vld [vmem:[#allocation5 + $0x8] sm:$0xff]
    %v44 = vld [vmem:[#allocation5 + $0x10] sm:$0xff]
    %v45 = vld [vmem:[#allocation5 + $0x18] sm:$0xff]
    %v46 = vld [vmem:[#allocation5 + $0x20] sm:$0xff]
    %v47 = vld [vmem:[#allocation5 + $0x28] sm:$0xff]
    %v48 = vld [vmem:[#allocation5 + $0x30] sm:$0xff]
    %v49 = vld [vmem:[#allocation5 + $0x38] sm:$0xff]
    %v50 = vld [vmem:[#allocation5 + $0x40] sm:$0xff]
    %v51 = vld [vmem:[#allocation5 + $0x48] sm:$0xff]
    %v52 = vld [vmem:[#allocation5 + $0x50] sm:$0xff]
    %v53 = vld [vmem:[#allocation5 + $0x58] sm:$0xff]
    %v54 = vld [vmem:[#allocation5 + $0x60] sm:$0xff]
    %v55 = vld [vmem:[#allocation5 + $0x68] sm:$0xff]
    %v56 = vld [vmem:[#allocation5 + $0x70] sm:$0xff]
    %v57 = vld [vmem:[#allocation5 + $0x78] sm:$0xff]
    %v58 = vld [vmem:[#allocation5 + $0x80] sm:$0xff]
    %v59 = vld [vmem:[#allocation5 + $0x88] sm:$0xff]
    %v60 = vlaneseq
    %v61 = vshrl.u32 %v60, 7
    %v62 = vsub.s32 0, %v61
    %v63 = vrot.slane %v50, %v62
    %vm64 = vcmask 261120
    %v66 = vsel %vm64, %v40, 0
    %v69 = vsel %vm64, %v41, 0
    %71 = vmatprep.subr.mxu0 0.0
    %72 = vmatpush1.msra.mxu0 0.0
    %73 = vmatprep.subr.mxu0 0.0
    %74 = vmatpush1.msra.mxu0 0.0
    %75 = vmatprep.subr.mxu0 0.0
    %76 = vmatpush1.msra.mxu0 0.0
    %77 = vmatprep.subr.mxu0 0.0
    %78 = vmatpush1.msra.mxu0 0.0
    %79 = vmatprep.subr.mxu0 0.0
    %80 = vmatpush1.msra.mxu0 0.0
    %81 = vmatprep.subr.mxu0 0.0
    %82 = vmatpush1.msra.mxu0 0.0
    %83 = vmatprep.subr.mxu0 0.0
    %84 = vmatpush1.msra.mxu0 0.0
    %85 = vmatprep.subr.mxu0 0.0
    %86 = vmatpush1.msra.mxu0 0.0
    %87 = vmatprep.subr.mxu0 0.0
    %88 = vmatpush1.msra.mxu0 0.0
    %89 = vmatprep.subr.mxu0 0.0
    %90 = vmatpush1.msra.mxu0 0.0
    %91 = vmatprep.subr.mxu0 0.0
    %92 = vmatpush1.msra.mxu0 0.0
    %93 = vmatprep.subr.mxu0 0.0
    %94 = vmatpush1.msra.mxu0 0.0
    %95 = vmatprep.subr.mxu0 0.0
    %96 = vmatpush1.msra.mxu0 %v45
    %97 = vmatprep.subr.mxu0 0.0
    %98 = vmatpush1.msra.mxu0 %v44
    %99 = vmatprep.subr.mxu0 0.0
    %100 = vmatpush1.msra.mxu0 %v43
    %101 = vmatprep.subr.mxu0 0.0
    %102 = vmatpush1.msra.mxu0 %v42
    %103 = vmatprep.subr.mxu0 0.0
    %104 = vmatpush2.msra.mxu0 0.0
    %105 = vmatprep.subr.mxu0 0.0
    %106 = vmatpush2.msra.mxu0 0.0
    %107 = vmatprep.subr.mxu0 0.0
    %108 = vmatpush2.msra.mxu0 0.0
    %109 = vmatprep.subr.mxu0 0.0
    %110 = vmatpush2.msra.mxu0 0.0
    %111 = vmatprep.subr.mxu0 0.0
    %112 = vmatpush2.msra.mxu0 0.0
    %113 = vmatprep.subr.mxu0 0.0
    %114 = vmatpush2.msra.mxu0 0.0
    %115 = vmatprep.subr.mxu0 0.0
    %116 = vmatpush2.msra.mxu0 0.0
    %117 = vmatprep.subr.mxu0 0.0
    %118 = vmatpush2.msra.mxu0 0.0
    %119 = vmatprep.subr.mxu0 0.0
    %120 = vmatpush2.msra.mxu0 0.0
    %121 = vmatprep.subr.mxu0 0.0
    %122 = vmatpush2.msra.mxu0 0.0
    %123 = vmatprep.subr.mxu0 0.0
    %124 = vmatpush2.msra.mxu0 0.0
    %125 = vmatprep.subr.mxu0 0.0
    %126 = vmatpush2.msra.mxu0 0.0
    %127 = vmatprep.subr.mxu0 0.0
    %128 = vmatpush2.msra.mxu0 0.0
    %129 = vmatprep.subr.mxu0 0.0
    %130 = vmatpush2.msra.mxu0 0.0
    %131 = vmatprep.subr.mxu0 0.0
    %132 = vmatpush2.msra.mxu0 0.0
    %133 = vmatprep.subr.mxu0 0.0
    %134 = vmatpush2.msra.mxu0 0.0
    %135 = vmatprep.mubr.f32.mxu0 0.0
    %136 = vmatmul.mubr.f32.gmra.mxu0 %v66
    %v137 = vpop.f32.mrf.mxu0
    %v138 = vadd.f32 %v63, %v137
    %v139 = vpop.f32.mrf.mxu0
    %140 = vmatprep.mubr.f32.mxu0 0.0
    %141 = vmatmul.mubr.f32.gmra.mxu0 %v69
    %v142 = vpop.f32.mrf.mxu0
    %v143 = vadd.f32 %v63, %v142
    %v144 = vpop.f32.mrf.mxu0
    %145 = vdwg.mxu0
    %148 = vrot.lane.b32.xlu0 %v138, 120
    %v149 = vpop.permute.xlu0 %148
    %150 = vrot.lane.b32.xlu0 %v143, 120
    %v151 = vpop.permute.xlu0 %150
    %154 = vrot.lane.b32.xlu0 %v138, 112
    %v155 = vpop.permute.xlu0 %154
    %156 = vrot.lane.b32.xlu0 %v143, 112
    %v157 = vpop.permute.xlu0 %156
    %160 = vrot.lane.b32.xlu0 %v138, 104
    %v161 = vpop.permute.xlu0 %160
    %162 = vrot.lane.b32.xlu0 %v143, 104
    %v163 = vpop.permute.xlu0 %162
    %v166 = vcombine.low %v138, %v155
    %v167 = vcombine.high %v138, %v155
    %v169 = vunpack.c.l.s4 1983009808
    %v170 = vunpack.c.0.s8 %v169
    %v171 = vlaneseq
    %v172 = vshrl.u32 %v171, 7
    %v173 = vsub.s32 %v170, %v172
    %v174 = vrot.slane %v166, %v173
    %v176 = vunpack.c.l.s4 1983009808
    %v177 = vunpack.c.0.s8 %v176
    %v178 = vlaneseq
    %v179 = vshrl.u32 %v178, 7
    %v180 = vsub.s32 %v177, %v179
    %v181 = vrot.slane %v167, %v180
    %v182 = vcombine.low %v149, %v161
    %v183 = vcombine.high %v149, %v161
    %v185 = vunpack.c.l.s4 1983009808
    %v186 = vunpack.c.0.s8 %v185
    %v187 = vlaneseq
    %v188 = vshrl.u32 %v187, 7
    %v189 = vsub.s32 %v186, %v188
    %v190 = vrot.slane %v182, %v189
    %v192 = vunpack.c.l.s4 1983009808
    %v193 = vunpack.c.0.s8 %v192
    %v194 = vlaneseq
    %v195 = vshrl.u32 %v194, 7
    %v196 = vsub.s32 %v193, %v195
    %v197 = vrot.slane %v183, %v196
    %v198 = vcombine.low %v174, %v190
    %v199 = vcombine.high %v174, %v190
    %v201 = vunpack.c.l.s4 1934713408
    %v202 = vunpack.c.0.s8 %v201
    %v203 = vlaneseq
    %v204 = vshrl.u32 %v203, 7
    %v205 = vsub.s32 %v202, %v204
    %v206 = vrot.slane %v198, %v205
    %v208 = vunpack.c.l.s4 1934713408
    %v209 = vunpack.c.0.s8 %v208
    %v210 = vlaneseq
    %v211 = vshrl.u32 %v210, 7
    %v212 = vsub.s32 %v209, %v211
    %v213 = vrot.slane %v199, %v212
    %v214 = vcombine.low %v181, %v197
    %v215 = vcombine.high %v181, %v197
    %v217 = vunpack.c.l.s4 1934713408
    %v218 = vunpack.c.0.s8 %v217
    %v219 = vlaneseq
    %v220 = vshrl.u32 %v219, 7
    %v221 = vsub.s32 %v218, %v220
    %v222 = vrot.slane %v214, %v221
    %v224 = vunpack.c.l.s4 1934713408
    %v225 = vunpack.c.0.s8 %v224
    %v226 = vlaneseq
    %v227 = vshrl.u32 %v226, 7
    %v228 = vsub.s32 %v225, %v227
    %v229 = vrot.slane %v215, %v228
    %v230 = vcombine.high %v206, 0.0
    %v231 = vcombine.high %v213, 0.0
    %v232 = vcombine.high %v222, 0.0
    %v233 = vcombine.high %v229, 0.0
    %v234 = vcombine.low %v143, %v157
    %v235 = vcombine.high %v143, %v157
    %v237 = vunpack.c.l.s4 1983009808
    %v238 = vunpack.c.0.s8 %v237
    %v239 = vlaneseq
    %v240 = vshrl.u32 %v239, 7
    %v241 = vsub.s32 %v238, %v240
    %v242 = vrot.slane %v234, %v241
    %v244 = vunpack.c.l.s4 1983009808
    %v245 = vunpack.c.0.s8 %v244
    %v246 = vlaneseq
    %v247 = vshrl.u32 %v246, 7
    %v248 = vsub.s32 %v245, %v247
    %v249 = vrot.slane %v235, %v248
    %v250 = vcombine.low %v151, %v163
    %v251 = vcombine.high %v151, %v163
    %v253 = vunpack.c.l.s4 1983009808
    %v254 = vunpack.c.0.s8 %v253
    %v255 = vlaneseq
    %v256 = vshrl.u32 %v255, 7
    %v257 = vsub.s32 %v254, %v256
    %v258 = vrot.slane %v250, %v257
    %v260 = vunpack.c.l.s4 1983009808
    %v261 = vunpack.c.0.s8 %v260
    %v262 = vlaneseq
    %v263 = vshrl.u32 %v262, 7
    %v264 = vsub.s32 %v261, %v263
    %v265 = vrot.slane %v251, %v264
    %v266 = vcombine.low %v242, %v258
    %v267 = vcombine.high %v242, %v258
    %v269 = vunpack.c.l.s4 1934713408
    %v270 = vunpack.c.0.s8 %v269
    %v271 = vlaneseq
    %v272 = vshrl.u32 %v271, 7
    %v273 = vsub.s32 %v270, %v272
    %v274 = vrot.slane %v266, %v273
    %v276 = vunpack.c.l.s4 1934713408
    %v277 = vunpack.c.0.s8 %v276
    %v278 = vlaneseq
    %v279 = vshrl.u32 %v278, 7
    %v280 = vsub.s32 %v277, %v279
    %v281 = vrot.slane %v267, %v280
    %v282 = vcombine.low %v249, %v265
    %v283 = vcombine.high %v249, %v265
    %v285 = vunpack.c.l.s4 1934713408
    %v286 = vunpack.c.0.s8 %v285
    %v287 = vlaneseq
    %v288 = vshrl.u32 %v287, 7
    %v289 = vsub.s32 %v286, %v288
    %v290 = vrot.slane %v282, %v289
    %v292 = vunpack.c.l.s4 1934713408
    %v293 = vunpack.c.0.s8 %v292
    %v294 = vlaneseq
    %v295 = vshrl.u32 %v294, 7
    %v296 = vsub.s32 %v293, %v295
    %v297 = vrot.slane %v283, %v296
    %v298 = vcombine.high %v274, 0.0
    %v299 = vcombine.high %v281, 0.0
    %v300 = vcombine.high %v290, 0.0
    %v301 = vcombine.high %v297, 0.0
    %v302 = vcombine.low %v206, %v213
    %v304 = vunpack.c.l.s4 1983009808
    %v305 = vunpack.c.0.s8 %v304
    %v306 = vlaneseq
    %v307 = vshrl.u32 %v306, 7
    %v308 = vsub.s32 %v305, %v307
    %v309 = vrot.slane %v302, %v308
    %v310 = vcombine.low %v230, %v231
    %v312 = vunpack.c.l.s4 1983009808
    %v313 = vunpack.c.0.s8 %v312
    %v314 = vlaneseq
    %v315 = vshrl.u32 %v314, 7
    %v316 = vsub.s32 %v313, %v315
    %v317 = vrot.slane %v310, %v316
    %v318 = vcombine.low %v222, %v229
    %v320 = vunpack.c.l.s4 1983009808
    %v321 = vunpack.c.0.s8 %v320
    %v322 = vlaneseq
    %v323 = vshrl.u32 %v322, 7
    %v324 = vsub.s32 %v321, %v323
    %v325 = vrot.slane %v318, %v324
    %v326 = vcombine.low %v232, %v233
    %v328 = vunpack.c.l.s4 1983009808
    %v329 = vunpack.c.0.s8 %v328
    %v330 = vlaneseq
    %v331 = vshrl.u32 %v330, 7
    %v332 = vsub.s32 %v329, %v331
    %v333 = vrot.slane %v326, %v332
    %v334 = vcombine.low %v309, %v317
    %v335 = vcombine.high %v309, %v317
    %v337 = vunpack.c.l.s4 1934713408
    %v338 = vunpack.c.0.s8 %v337
    %v339 = vlaneseq
    %v340 = vshrl.u32 %v339, 7
    %v341 = vsub.s32 %v338, %v340
    %v342 = vrot.slane %v334, %v341
    %v344 = vunpack.c.l.s4 1934713408
    %v345 = vunpack.c.0.s8 %v344
    %v346 = vlaneseq
    %v347 = vshrl.u32 %v346, 7
    %v348 = vsub.s32 %v345, %v347
    %v349 = vrot.slane %v335, %v348
    %v350 = vcombine.low %v325, %v333
    %v351 = vcombine.high %v325, %v333
    %v353 = vunpack.c.l.s4 1934713408
    %v354 = vunpack.c.0.s8 %v353
    %v355 = vlaneseq
    %v356 = vshrl.u32 %v355, 7
    %v357 = vsub.s32 %v354, %v356
    %v358 = vrot.slane %v350, %v357
    %v360 = vunpack.c.l.s4 1934713408
    %v361 = vunpack.c.0.s8 %v360
    %v362 = vlaneseq
    %v363 = vshrl.u32 %v362, 7
    %v364 = vsub.s32 %v361, %v363
    %v365 = vrot.slane %v351, %v364
    %v366 = vcombine.low %v342, %v358
    %v367 = vcombine.high %v342, %v358
    %v368 = vcombine.low %v349, %v365
    %v369 = vcombine.high %v349, %v365
    %v370 = vcombine.low %v274, %v281
    %v372 = vunpack.c.l.s4 1983009808
    %v373 = vunpack.c.0.s8 %v372
    %v374 = vlaneseq
    %v375 = vshrl.u32 %v374, 7
    %v376 = vsub.s32 %v373, %v375
    %v377 = vrot.slane %v370, %v376
    %v378 = vcombine.low %v298, %v299
    %v380 = vunpack.c.l.s4 1983009808
    %v381 = vunpack.c.0.s8 %v380
    %v382 = vlaneseq
    %v383 = vshrl.u32 %v382, 7
    %v384 = vsub.s32 %v381, %v383
    %v385 = vrot.slane %v378, %v384
    %v386 = vcombine.low %v290, %v297
    %v388 = vunpack.c.l.s4 1983009808
    %v389 = vunpack.c.0.s8 %v388
    %v390 = vlaneseq
    %v391 = vshrl.u32 %v390, 7
    %v392 = vsub.s32 %v389, %v391
    %v393 = vrot.slane %v386, %v392
    %v394 = vcombine.low %v300, %v301
    %v396 = vunpack.c.l.s4 1983009808
    %v397 = vunpack.c.0.s8 %v396
    %v398 = vlaneseq
    %v399 = vshrl.u32 %v398, 7
    %v400 = vsub.s32 %v397, %v399
    %v401 = vrot.slane %v394, %v400
    %v402 = vcombine.low %v377, %v385
    %v403 = vcombine.high %v377, %v385
    %v405 = vunpack.c.l.s4 1934713408
    %v406 = vunpack.c.0.s8 %v405
    %v407 = vlaneseq
    %v408 = vshrl.u32 %v407, 7
    %v409 = vsub.s32 %v406, %v408
    %v410 = vrot.slane %v402, %v409
    %v412 = vunpack.c.l.s4 1934713408
    %v413 = vunpack.c.0.s8 %v412
    %v414 = vlaneseq
    %v415 = vshrl.u32 %v414, 7
    %v416 = vsub.s32 %v413, %v415
    %v417 = vrot.slane %v403, %v416
    %v418 = vcombine.low %v393, %v401
    %v419 = vcombine.high %v393, %v401
    %v421 = vunpack.c.l.s4 1934713408
    %v422 = vunpack.c.0.s8 %v421
    %v423 = vlaneseq
    %v424 = vshrl.u32 %v423, 7
    %v425 = vsub.s32 %v422, %v424
    %v426 = vrot.slane %v418, %v425
    %v428 = vunpack.c.l.s4 1934713408
    %v429 = vunpack.c.0.s8 %v428
    %v430 = vlaneseq
    %v431 = vshrl.u32 %v430, 7
    %v432 = vsub.s32 %v429, %v431
    %v433 = vrot.slane %v419, %v432
    %v434 = vcombine.low %v410, %v426
    %v435 = vcombine.high %v410, %v426
    %v436 = vcombine.low %v417, %v433
    %v437 = vcombine.high %v417, %v433
    %438 = vrot.lane.b32.xlu0 %v138, 96
    %v439 = vpop.permute.xlu0 %438
    %440 = vrot.lane.b32.xlu0 %v143, 96
    %v441 = vpop.permute.xlu0 %440
    %442 = vrot.lane.b32.xlu0 %v149, 96
    %v443 = vpop.permute.xlu0 %442
    %444 = vrot.lane.b32.xlu0 %v151, 96
    %v445 = vpop.permute.xlu0 %444
    %446 = vrot.lane.b32.xlu0 %v155, 96
    %v447 = vpop.permute.xlu0 %446
    %448 = vrot.lane.b32.xlu0 %v157, 96
    %v449 = vpop.permute.xlu0 %448
    %450 = vrot.lane.b32.xlu0 %v161, 96
    %v451 = vpop.permute.xlu0 %450
    %452 = vrot.lane.b32.xlu0 %v163, 96
    %v453 = vpop.permute.xlu0 %452
    %v462 = vcombine.low %v439, %v447
    %v463 = vcombine.high %v439, %v447
    %v465 = vunpack.c.l.s4 1983009808
    %v466 = vunpack.c.0.s8 %v465
    %v467 = vlaneseq
    %v468 = vshrl.u32 %v467, 7
    %v469 = vsub.s32 %v466, %v468
    %v470 = vrot.slane %v462, %v469
    %v472 = vunpack.c.l.s4 1983009808
    %v473 = vunpack.c.0.s8 %v472
    %v474 = vlaneseq
    %v475 = vshrl.u32 %v474, 7
    %v476 = vsub.s32 %v473, %v475
    %v477 = vrot.slane %v463, %v476
    %v478 = vcombine.low %v443, %v451
    %v479 = vcombine.high %v443, %v451
    %v481 = vunpack.c.l.s4 1983009808
    %v482 = vunpack.c.0.s8 %v481
    %v483 = vlaneseq
    %v484 = vshrl.u32 %v483, 7
    %v485 = vsub.s32 %v482, %v484
    %v486 = vrot.slane %v478, %v485
    %v488 = vunpack.c.l.s4 1983009808
    %v489 = vunpack.c.0.s8 %v488
    %v490 = vlaneseq
    %v491 = vshrl.u32 %v490, 7
    %v492 = vsub.s32 %v489, %v491
    %v493 = vrot.slane %v479, %v492
    %v494 = vcombine.low %v470, %v486
    %v495 = vcombine.high %v470, %v486
    %v497 = vunpack.c.l.s4 1934713408
    %v498 = vunpack.c.0.s8 %v497
    %v499 = vlaneseq
    %v500 = vshrl.u32 %v499, 7
    %v501 = vsub.s32 %v498, %v500
    %v502 = vrot.slane %v494, %v501
    %v504 = vunpack.c.l.s4 1934713408
    %v505 = vunpack.c.0.s8 %v504
    %v506 = vlaneseq
    %v507 = vshrl.u32 %v506, 7
    %v508 = vsub.s32 %v505, %v507
    %v509 = vrot.slane %v495, %v508
    %v510 = vcombine.low %v477, %v493
    %v511 = vcombine.high %v477, %v493
    %v513 = vunpack.c.l.s4 1934713408
    %v514 = vunpack.c.0.s8 %v513
    %v515 = vlaneseq
    %v516 = vshrl.u32 %v515, 7
    %v517 = vsub.s32 %v514, %v516
    %v518 = vrot.slane %v510, %v517
    %v520 = vunpack.c.l.s4 1934713408
    %v521 = vunpack.c.0.s8 %v520
    %v522 = vlaneseq
    %v523 = vshrl.u32 %v522, 7
    %v524 = vsub.s32 %v521, %v523
    %v525 = vrot.slane %v511, %v524
    %v526 = vcombine.high %v502, 0.0
    %v527 = vcombine.high %v509, 0.0
    %v528 = vcombine.high %v518, 0.0
    %v529 = vcombine.high %v525, 0.0
    %v530 = vcombine.low %v441, %v449
    %v531 = vcombine.high %v441, %v449
    %v533 = vunpack.c.l.s4 1983009808
    %v534 = vunpack.c.0.s8 %v533
    %v535 = vlaneseq
    %v536 = vshrl.u32 %v535, 7
    %v537 = vsub.s32 %v534, %v536
    %v538 = vrot.slane %v530, %v537
    %v540 = vunpack.c.l.s4 1983009808
    %v541 = vunpack.c.0.s8 %v540
    %v542 = vlaneseq
    %v543 = vshrl.u32 %v542, 7
    %v544 = vsub.s32 %v541, %v543
    %v545 = vrot.slane %v531, %v544
    %v546 = vcombine.low %v445, %v453
    %v547 = vcombine.high %v445, %v453
    %v549 = vunpack.c.l.s4 1983009808
    %v550 = vunpack.c.0.s8 %v549
    %v551 = vlaneseq
    %v552 = vshrl.u32 %v551, 7
    %v553 = vsub.s32 %v550, %v552
    %v554 = vrot.slane %v546, %v553
    %v556 = vunpack.c.l.s4 1983009808
    %v557 = vunpack.c.0.s8 %v556
    %v558 = vlaneseq
    %v559 = vshrl.u32 %v558, 7
    %v560 = vsub.s32 %v557, %v559
    %v561 = vrot.slane %v547, %v560
    %v562 = vcombine.low %v538, %v554
    %v563 = vcombine.high %v538, %v554
    %v565 = vunpack.c.l.s4 1934713408
    %v566 = vunpack.c.0.s8 %v565
    %v567 = vlaneseq
    %v568 = vshrl.u32 %v567, 7
    %v569 = vsub.s32 %v566, %v568
    %v570 = vrot.slane %v562, %v569
    %v572 = vunpack.c.l.s4 1934713408
    %v573 = vunpack.c.0.s8 %v572
    %v574 = vlaneseq
    %v575 = vshrl.u32 %v574, 7
    %v576 = vsub.s32 %v573, %v575
    %v577 = vrot.slane %v563, %v576
    %v578 = vcombine.low %v545, %v561
    %v579 = vcombine.high %v545, %v561
    %v581 = vunpack.c.l.s4 1934713408
    %v582 = vunpack.c.0.s8 %v581
    %v583 = vlaneseq
    %v584 = vshrl.u32 %v583, 7
    %v585 = vsub.s32 %v582, %v584
    %v586 = vrot.slane %v578, %v585
    %v588 = vunpack.c.l.s4 1934713408
    %v589 = vunpack.c.0.s8 %v588
    %v590 = vlaneseq
    %v591 = vshrl.u32 %v590, 7
    %v592 = vsub.s32 %v589, %v591
    %v593 = vrot.slane %v579, %v592
    %v594 = vcombine.high %v570, 0.0
    %v595 = vcombine.high %v577, 0.0
    %v596 = vcombine.high %v586, 0.0
    %v597 = vcombine.high %v593, 0.0
    %v598 = vcombine.low %v502, %v509
    %v600 = vunpack.c.l.s4 1983009808
    %v601 = vunpack.c.0.s8 %v600
    %v602 = vlaneseq
    %v603 = vshrl.u32 %v602, 7
    %v604 = vsub.s32 %v601, %v603
    %v605 = vrot.slane %v598, %v604
    %v606 = vcombine.low %v526, %v527
    %v608 = vunpack.c.l.s4 1983009808
    %v609 = vunpack.c.0.s8 %v608
    %v610 = vlaneseq
    %v611 = vshrl.u32 %v610, 7
    %v612 = vsub.s32 %v609, %v611
    %v613 = vrot.slane %v606, %v612
    %v614 = vcombine.low %v518, %v525
    %v616 = vunpack.c.l.s4 1983009808
    %v617 = vunpack.c.0.s8 %v616
    %v618 = vlaneseq
    %v619 = vshrl.u32 %v618, 7
    %v620 = vsub.s32 %v617, %v619
    %v621 = vrot.slane %v614, %v620
    %v622 = vcombine.low %v528, %v529
    %v624 = vunpack.c.l.s4 1983009808
    %v625 = vunpack.c.0.s8 %v624
    %v626 = vlaneseq
    %v627 = vshrl.u32 %v626, 7
    %v628 = vsub.s32 %v625, %v627
    %v629 = vrot.slane %v622, %v628
    %v630 = vcombine.low %v605, %v613
    %v631 = vcombine.high %v605, %v613
    %v633 = vunpack.c.l.s4 1934713408
    %v634 = vunpack.c.0.s8 %v633
    %v635 = vlaneseq
    %v636 = vshrl.u32 %v635, 7
    %v637 = vsub.s32 %v634, %v636
    %v638 = vrot.slane %v630, %v637
    %v640 = vunpack.c.l.s4 1934713408
    %v641 = vunpack.c.0.s8 %v640
    %v642 = vlaneseq
    %v643 = vshrl.u32 %v642, 7
    %v644 = vsub.s32 %v641, %v643
    %v645 = vrot.slane %v631, %v644
    %v646 = vcombine.low %v621, %v629
    %v647 = vcombine.high %v621, %v629
    %v649 = vunpack.c.l.s4 1934713408
    %v650 = vunpack.c.0.s8 %v649
    %v651 = vlaneseq
    %v652 = vshrl.u32 %v651, 7
    %v653 = vsub.s32 %v650, %v652
    %v654 = vrot.slane %v646, %v653
    %v656 = vunpack.c.l.s4 1934713408
    %v657 = vunpack.c.0.s8 %v656
    %v658 = vlaneseq
    %v659 = vshrl.u32 %v658, 7
    %v660 = vsub.s32 %v657, %v659
    %v661 = vrot.slane %v647, %v660
    %v662 = vcombine.low %v638, %v654
    %v663 = vcombine.high %v638, %v654
    %v664 = vcombine.low %v645, %v661
    %v665 = vcombine.high %v645, %v661
    %v666 = vcombine.low %v570, %v577
    %v668 = vunpack.c.l.s4 1983009808
    %v669 = vunpack.c.0.s8 %v668
    %v670 = vlaneseq
    %v671 = vshrl.u32 %v670, 7
    %v672 = vsub.s32 %v669, %v671
    %v673 = vrot.slane %v666, %v672
    %v674 = vcombine.low %v594, %v595
    %v676 = vunpack.c.l.s4 1983009808
    %v677 = vunpack.c.0.s8 %v676
    %v678 = vlaneseq
    %v679 = vshrl.u32 %v678, 7
    %v680 = vsub.s32 %v677, %v679
    %v681 = vrot.slane %v674, %v680
    %v682 = vcombine.low %v586, %v593
    %v684 = vunpack.c.l.s4 1983009808
    %v685 = vunpack.c.0.s8 %v684
    %v686 = vlaneseq
    %v687 = vshrl.u32 %v686, 7
    %v688 = vsub.s32 %v685, %v687
    %v689 = vrot.slane %v682, %v688
    %v690 = vcombine.low %v596, %v597
    %v692 = vunpack.c.l.s4 1983009808
    %v693 = vunpack.c.0.s8 %v692
    %v694 = vlaneseq
    %v695 = vshrl.u32 %v694, 7
    %v696 = vsub.s32 %v693, %v695
    %v697 = vrot.slane %v690, %v696
    %v698 = vcombine.low %v673, %v681
    %v699 = vcombine.high %v673, %v681
    %v701 = vunpack.c.l.s4 1934713408
    %v702 = vunpack.c.0.s8 %v701
    %v703 = vlaneseq
    %v704 = vshrl.u32 %v703, 7
    %v705 = vsub.s32 %v702, %v704
    %v706 = vrot.slane %v698, %v705
    %v708 = vunpack.c.l.s4 1934713408
    %v709 = vunpack.c.0.s8 %v708
    %v710 = vlaneseq
    %v711 = vshrl.u32 %v710, 7
    %v712 = vsub.s32 %v709, %v711
    %v713 = vrot.slane %v699, %v712
    %v714 = vcombine.low %v689, %v697
    %v715 = vcombine.high %v689, %v697
    %v717 = vunpack.c.l.s4 1934713408
    %v718 = vunpack.c.0.s8 %v717
    %v719 = vlaneseq
    %v720 = vshrl.u32 %v719, 7
    %v721 = vsub.s32 %v718, %v720
    %v722 = vrot.slane %v714, %v721
    %v724 = vunpack.c.l.s4 1934713408
    %v725 = vunpack.c.0.s8 %v724
    %v726 = vlaneseq
    %v727 = vshrl.u32 %v726, 7
    %v728 = vsub.s32 %v725, %v727
    %v729 = vrot.slane %v715, %v728
    %v730 = vcombine.low %v706, %v722
    %v731 = vcombine.high %v706, %v722
    %v732 = vcombine.low %v713, %v729
    %v733 = vcombine.high %v713, %v729
    %734 = vrot.lane.b32.xlu0 %v138, 64
    %v735 = vpop.permute.xlu0 %734
    %736 = vrot.lane.b32.xlu0 %v143, 64
    %v737 = vpop.permute.xlu0 %736
    %738 = vrot.lane.b32.xlu0 %v149, 64
    %v739 = vpop.permute.xlu0 %738
    %740 = vrot.lane.b32.xlu0 %v151, 64
    %v741 = vpop.permute.xlu0 %740
    %742 = vrot.lane.b32.xlu0 %v155, 64
    %v743 = vpop.permute.xlu0 %742
    %744 = vrot.lane.b32.xlu0 %v157, 64
    %v745 = vpop.permute.xlu0 %744
    %746 = vrot.lane.b32.xlu0 %v161, 64
    %v747 = vpop.permute.xlu0 %746
    %748 = vrot.lane.b32.xlu0 %v163, 64
    %v749 = vpop.permute.xlu0 %748
    %v758 = vcombine.low %v735, %v743
    %v759 = vcombine.high %v735, %v743
    %v761 = vunpack.c.l.s4 1983009808
    %v762 = vunpack.c.0.s8 %v761
    %v763 = vlaneseq
    %v764 = vshrl.u32 %v763, 7
    %v765 = vsub.s32 %v762, %v764
    %v766 = vrot.slane %v758, %v765
    %v768 = vunpack.c.l.s4 1983009808
    %v769 = vunpack.c.0.s8 %v768
    %v770 = vlaneseq
    %v771 = vshrl.u32 %v770, 7
    %v772 = vsub.s32 %v769, %v771
    %v773 = vrot.slane %v759, %v772
    %v774 = vcombine.low %v739, %v747
    %v775 = vcombine.high %v739, %v747
    %v777 = vunpack.c.l.s4 1983009808
    %v778 = vunpack.c.0.s8 %v777
    %v779 = vlaneseq
    %v780 = vshrl.u32 %v779, 7
    %v781 = vsub.s32 %v778, %v780
    %v782 = vrot.slane %v774, %v781
    %v784 = vunpack.c.l.s4 1983009808
    %v785 = vunpack.c.0.s8 %v784
    %v786 = vlaneseq
    %v787 = vshrl.u32 %v786, 7
    %v788 = vsub.s32 %v785, %v787
    %v789 = vrot.slane %v775, %v788
    %v790 = vcombine.low %v766, %v782
    %v791 = vcombine.high %v766, %v782
    %v793 = vunpack.c.l.s4 1934713408
    %v794 = vunpack.c.0.s8 %v793
    %v795 = vlaneseq
    %v796 = vshrl.u32 %v795, 7
    %v797 = vsub.s32 %v794, %v796
    %v798 = vrot.slane %v790, %v797
    %v800 = vunpack.c.l.s4 1934713408
    %v801 = vunpack.c.0.s8 %v800
    %v802 = vlaneseq
    %v803 = vshrl.u32 %v802, 7
    %v804 = vsub.s32 %v801, %v803
    %v805 = vrot.slane %v791, %v804
    %v806 = vcombine.low %v773, %v789
    %v807 = vcombine.high %v773, %v789
    %v809 = vunpack.c.l.s4 1934713408
    %v810 = vunpack.c.0.s8 %v809
    %v811 = vlaneseq
    %v812 = vshrl.u32 %v811, 7
    %v813 = vsub.s32 %v810, %v812
    %v814 = vrot.slane %v806, %v813
    %v816 = vunpack.c.l.s4 1934713408
    %v817 = vunpack.c.0.s8 %v816
    %v818 = vlaneseq
    %v819 = vshrl.u32 %v818, 7
    %v820 = vsub.s32 %v817, %v819
    %v821 = vrot.slane %v807, %v820
    %v822 = vcombine.high %v798, 0.0
    %v823 = vcombine.high %v805, 0.0
    %v824 = vcombine.high %v814, 0.0
    %v825 = vcombine.high %v821, 0.0
    %v826 = vcombine.low %v737, %v745
    %v827 = vcombine.high %v737, %v745
    %v829 = vunpack.c.l.s4 1983009808
    %v830 = vunpack.c.0.s8 %v829
    %v831 = vlaneseq
    %v832 = vshrl.u32 %v831, 7
    %v833 = vsub.s32 %v830, %v832
    %v834 = vrot.slane %v826, %v833
    %v836 = vunpack.c.l.s4 1983009808
    %v837 = vunpack.c.0.s8 %v836
    %v838 = vlaneseq
    %v839 = vshrl.u32 %v838, 7
    %v840 = vsub.s32 %v837, %v839
    %v841 = vrot.slane %v827, %v840
    %v842 = vcombine.low %v741, %v749
    %v843 = vcombine.high %v741, %v749
    %v845 = vunpack.c.l.s4 1983009808
    %v846 = vunpack.c.0.s8 %v845
    %v847 = vlaneseq
    %v848 = vshrl.u32 %v847, 7
    %v849 = vsub.s32 %v846, %v848
    %v850 = vrot.slane %v842, %v849
    %v852 = vunpack.c.l.s4 1983009808
    %v853 = vunpack.c.0.s8 %v852
    %v854 = vlaneseq
    %v855 = vshrl.u32 %v854, 7
    %v856 = vsub.s32 %v853, %v855
    %v857 = vrot.slane %v843, %v856
    %v858 = vcombine.low %v834, %v850
    %v859 = vcombine.high %v834, %v850
    %v861 = vunpack.c.l.s4 1934713408
    %v862 = vunpack.c.0.s8 %v861
    %v863 = vlaneseq
    %v864 = vshrl.u32 %v863, 7
    %v865 = vsub.s32 %v862, %v864
    %v866 = vrot.slane %v858, %v865
    %v868 = vunpack.c.l.s4 1934713408
    %v869 = vunpack.c.0.s8 %v868
    %v870 = vlaneseq
    %v871 = vshrl.u32 %v870, 7
    %v872 = vsub.s32 %v869, %v871
    %v873 = vrot.slane %v859, %v872
    %v874 = vcombine.low %v841, %v857
    %v875 = vcombine.high %v841, %v857
    %v877 = vunpack.c.l.s4 1934713408
    %v878 = vunpack.c.0.s8 %v877
    %v879 = vlaneseq
    %v880 = vshrl.u32 %v879, 7
    %v881 = vsub.s32 %v878, %v880
    %v882 = vrot.slane %v874, %v881
    %v884 = vunpack.c.l.s4 1934713408
    %v885 = vunpack.c.0.s8 %v884
    %v886 = vlaneseq
    %v887 = vshrl.u32 %v886, 7
    %v888 = vsub.s32 %v885, %v887
    %v889 = vrot.slane %v875, %v888
    %v890 = vcombine.high %v866, 0.0
    %v891 = vcombine.high %v873, 0.0
    %v892 = vcombine.high %v882, 0.0
    %v893 = vcombine.high %v889, 0.0
    %v894 = vcombine.low %v798, %v805
    %v896 = vunpack.c.l.s4 1983009808
    %v897 = vunpack.c.0.s8 %v896
    %v898 = vlaneseq
    %v899 = vshrl.u32 %v898, 7
    %v900 = vsub.s32 %v897, %v899
    %v901 = vrot.slane %v894, %v900
    %v902 = vcombine.low %v822, %v823
    %v904 = vunpack.c.l.s4 1983009808
    %v905 = vunpack.c.0.s8 %v904
    %v906 = vlaneseq
    %v907 = vshrl.u32 %v906, 7
    %v908 = vsub.s32 %v905, %v907
    %v909 = vrot.slane %v902, %v908
    %v910 = vcombine.low %v814, %v821
    %v912 = vunpack.c.l.s4 1983009808
    %v913 = vunpack.c.0.s8 %v912
    %v914 = vlaneseq
    %v915 = vshrl.u32 %v914, 7
    %v916 = vsub.s32 %v913, %v915
    %v917 = vrot.slane %v910, %v916
    %v918 = vcombine.low %v824, %v825
    %v920 = vunpack.c.l.s4 1983009808
    %v921 = vunpack.c.0.s8 %v920
    %v922 = vlaneseq
    %v923 = vshrl.u32 %v922, 7
    %v924 = vsub.s32 %v921, %v923
    %v925 = vrot.slane %v918, %v924
    %v926 = vcombine.low %v901, %v909
    %v927 = vcombine.high %v901, %v909
    %v929 = vunpack.c.l.s4 1934713408
    %v930 = vunpack.c.0.s8 %v929
    %v931 = vlaneseq
    %v932 = vshrl.u32 %v931, 7
    %v933 = vsub.s32 %v930, %v932
    %v934 = vrot.slane %v926, %v933
    %v936 = vunpack.c.l.s4 1934713408
    %v937 = vunpack.c.0.s8 %v936
    %v938 = vlaneseq
    %v939 = vshrl.u32 %v938, 7
    %v940 = vsub.s32 %v937, %v939
    %v941 = vrot.slane %v927, %v940
    %v942 = vcombine.low %v917, %v925
    %v943 = vcombine.high %v917, %v925
    %v945 = vunpack.c.l.s4 1934713408
    %v946 = vunpack.c.0.s8 %v945
    %v947 = vlaneseq
    %v948 = vshrl.u32 %v947, 7
    %v949 = vsub.s32 %v946, %v948
    %v950 = vrot.slane %v942, %v949
    %v952 = vunpack.c.l.s4 1934713408
    %v953 = vunpack.c.0.s8 %v952
    %v954 = vlaneseq
    %v955 = vshrl.u32 %v954, 7
    %v956 = vsub.s32 %v953, %v955
    %v957 = vrot.slane %v943, %v956
    %v958 = vcombine.low %v934, %v950
    %v959 = vcombine.high %v934, %v950
    %v960 = vcombine.low %v941, %v957
    %v961 = vcombine.high %v941, %v957
    %v962 = vcombine.low %v866, %v873
    %v964 = vunpack.c.l.s4 1983009808
    %v965 = vunpack.c.0.s8 %v964
    %v966 = vlaneseq
    %v967 = vshrl.u32 %v966, 7
    %v968 = vsub.s32 %v965, %v967
    %v969 = vrot.slane %v962, %v968
    %v970 = vcombine.low %v890, %v891
    %v972 = vunpack.c.l.s4 1983009808
    %v973 = vunpack.c.0.s8 %v972
    %v974 = vlaneseq
    %v975 = vshrl.u32 %v974, 7
    %v976 = vsub.s32 %v973, %v975
    %v977 = vrot.slane %v970, %v976
    %v978 = vcombine.low %v882, %v889
    %v980 = vunpack.c.l.s4 1983009808
    %v981 = vunpack.c.0.s8 %v980
    %v982 = vlaneseq
    %v983 = vshrl.u32 %v982, 7
    %v984 = vsub.s32 %v981, %v983
    %v985 = vrot.slane %v978, %v984
    %v986 = vcombine.low %v892, %v893
    %v988 = vunpack.c.l.s4 1983009808
    %v989 = vunpack.c.0.s8 %v988
    %v990 = vlaneseq
    %v991 = vshrl.u32 %v990, 7
    %v992 = vsub.s32 %v989, %v991
    %v993 = vrot.slane %v986, %v992
    %v994 = vcombine.low %v969, %v977
    %v995 = vcombine.high %v969, %v977
    %v997 = vunpack.c.l.s4 1934713408
    %v998 = vunpack.c.0.s8 %v997
    %v999 = vlaneseq
    %v1000 = vshrl.u32 %v999, 7
    %v1001 = vsub.s32 %v998, %v1000
    %v1002 = vrot.slane %v994, %v1001
    %v1004 = vunpack.c.l.s4 1934713408
    %v1005 = vunpack.c.0.s8 %v1004
    %v1006 = vlaneseq
    %v1007 = vshrl.u32 %v1006, 7
    %v1008 = vsub.s32 %v1005, %v1007
    %v1009 = vrot.slane %v995, %v1008
    %v1010 = vcombine.low %v985, %v993
    %v1011 = vcombine.high %v985, %v993
    %v1013 = vunpack.c.l.s4 1934713408
    %v1014 = vunpack.c.0.s8 %v1013
    %v1015 = vlaneseq
    %v1016 = vshrl.u32 %v1015, 7
    %v1017 = vsub.s32 %v1014, %v1016
    %v1018 = vrot.slane %v1010, %v1017
    %v1020 = vunpack.c.l.s4 1934713408
    %v1021 = vunpack.c.0.s8 %v1020
    %v1022 = vlaneseq
    %v1023 = vshrl.u32 %v1022, 7
    %v1024 = vsub.s32 %v1021, %v1023
    %v1025 = vrot.slane %v1011, %v1024
    %v1026 = vcombine.low %v1002, %v1018
    %v1027 = vcombine.high %v1002, %v1018
    %v1028 = vcombine.low %v1009, %v1025
    %v1029 = vcombine.high %v1009, %v1025
    %vm1030 = vcmask 64512
    %v1032 = vsel %vm1030, %v366, 0
    %v1035 = vsel %vm1030, %v662, 0
    %1037 = vmatprep.subr.mxu0 0.0
    %1038 = vmatpush1.xpose.msra.mxu0 0.0
    %1039 = vmatprep.subr.mxu0 0.0
    %1040 = vmatpush1.xpose.msra.mxu0 0.0
    %1041 = vmatprep.subr.mxu0 0.0
    %1042 = vmatpush1.xpose.msra.mxu0 0.0
    %1043 = vmatprep.subr.mxu0 0.0
    %1044 = vmatpush1.xpose.msra.mxu0 0.0
    %1045 = vmatprep.subr.mxu0 0.0
    %1046 = vmatpush1.xpose.msra.mxu0 0.0
    %1047 = vmatprep.subr.mxu0 0.0
    %1048 = vmatpush1.xpose.msra.mxu0 0.0
    %1049 = vmatprep.subr.mxu0 0.0
    %1050 = vmatpush1.xpose.msra.mxu0 0.0
    %1051 = vmatprep.subr.mxu0 0.0
    %1052 = vmatpush1.xpose.msra.mxu0 0.0
    %1053 = vmatprep.subr.mxu0 0.0
    %1054 = vmatpush1.xpose.msra.mxu0 0.0
    %1055 = vmatprep.subr.mxu0 0.0
    %1056 = vmatpush1.xpose.msra.mxu0 0.0
    %1057 = vmatprep.subr.mxu0 0.0
    %1058 = vmatpush1.xpose.msra.mxu0 0.0
    %1059 = vmatprep.subr.mxu0 0.0
    %1060 = vmatpush1.xpose.msra.mxu0 0.0
    %1061 = vmatprep.subr.mxu0 0.0
    %1062 = vmatpush1.xpose.msra.mxu0 0.0
    %1063 = vmatprep.subr.mxu0 0.0
    %1064 = vmatpush1.xpose.msra.mxu0 0.0
    %1065 = vmatprep.subr.mxu0 0.0
    %1066 = vmatpush1.xpose.msra.mxu0 0.0
    %1067 = vmatprep.subr.mxu0 0.0
    %1068 = vmatpush1.xpose.msra.mxu0 %v1035
    %1069 = vmatprep.subr.mxu0 0.0
    %1070 = vmatpush2.xpose.msra.mxu0 0.0
    %1071 = vmatprep.subr.mxu0 0.0
    %1072 = vmatpush2.xpose.msra.mxu0 0.0
    %1073 = vmatprep.subr.mxu0 0.0
    %1074 = vmatpush2.xpose.msra.mxu0 0.0
    %1075 = vmatprep.subr.mxu0 0.0
    %1076 = vmatpush2.xpose.msra.mxu0 0.0
    %1077 = vmatprep.subr.mxu0 0.0
    %1078 = vmatpush2.xpose.msra.mxu0 0.0
    %1079 = vmatprep.subr.mxu0 0.0
    %1080 = vmatpush2.xpose.msra.mxu0 0.0
    %1081 = vmatprep.subr.mxu0 0.0
    %1082 = vmatpush2.xpose.msra.mxu0 0.0
    %1083 = vmatprep.subr.mxu0 0.0
    %1084 = vmatpush2.xpose.msra.mxu0 0.0
    %1085 = vmatprep.subr.mxu0 0.0
    %1086 = vmatpush2.xpose.msra.mxu0 0.0
    %1087 = vmatprep.subr.mxu0 0.0
    %1088 = vmatpush2.xpose.msra.mxu0 0.0
    %1089 = vmatprep.subr.mxu0 0.0
    %1090 = vmatpush2.xpose.msra.mxu0 0.0
    %1091 = vmatprep.subr.mxu0 0.0
    %1092 = vmatpush2.xpose.msra.mxu0 0.0
    %1093 = vmatprep.subr.mxu0 0.0
    %1094 = vmatpush2.xpose.msra.mxu0 0.0
    %1095 = vmatprep.subr.mxu0 0.0
    %1096 = vmatpush2.xpose.msra.mxu0 0.0
    %1097 = vmatprep.subr.mxu0 0.0
    %1098 = vmatpush2.xpose.msra.mxu0 0.0
    %1099 = vmatprep.subr.mxu0 0.0
    %1100 = vmatpush2.xpose.msra.mxu0 0.0
    %1101 = vmatprep.mubr.f32.mxu0 0.0
    %1102 = vmatmul.mubr.f32.gmra.mxu0 %v1032
    %v1103 = vpop.f32.mrf.mxu0
    %v1104 = vadd.f32 0.0, %v1103
    %v1105 = vpop.f32.mrf.mxu0
    %1106 = vdwg.mxu0
    %v1108 = vsel %vm1030, %v367, 0
    %v1111 = vsel %vm1030, %v663, 0
    %1113 = vmatprep.subr.mxu0 0.0
    %1114 = vmatpush1.xpose.msra.mxu0 0.0
    %1115 = vmatprep.subr.mxu0 0.0
    %1116 = vmatpush1.xpose.msra.mxu0 0.0
    %1117 = vmatprep.subr.mxu0 0.0
    %1118 = vmatpush1.xpose.msra.mxu0 0.0
    %1119 = vmatprep.subr.mxu0 0.0
    %1120 = vmatpush1.xpose.msra.mxu0 0.0
    %1121 = vmatprep.subr.mxu0 0.0
    %1122 = vmatpush1.xpose.msra.mxu0 0.0
    %1123 = vmatprep.subr.mxu0 0.0
    %1124 = vmatpush1.xpose.msra.mxu0 0.0
    %1125 = vmatprep.subr.mxu0 0.0
    %1126 = vmatpush1.xpose.msra.mxu0 0.0
    %1127 = vmatprep.subr.mxu0 0.0
    %1128 = vmatpush1.xpose.msra.mxu0 0.0
    %1129 = vmatprep.subr.mxu0 0.0
    %1130 = vmatpush1.xpose.msra.mxu0 0.0
    %1131 = vmatprep.subr.mxu0 0.0
    %1132 = vmatpush1.xpose.msra.mxu0 0.0
    %1133 = vmatprep.subr.mxu0 0.0
    %1134 = vmatpush1.xpose.msra.mxu0 0.0
    %1135 = vmatprep.subr.mxu0 0.0
    %1136 = vmatpush1.xpose.msra.mxu0 0.0
    %1137 = vmatprep.subr.mxu0 0.0
    %1138 = vmatpush1.xpose.msra.mxu0 0.0
    %1139 = vmatprep.subr.mxu0 0.0
    %1140 = vmatpush1.xpose.msra.mxu0 0.0
    %1141 = vmatprep.subr.mxu0 0.0
    %1142 = vmatpush1.xpose.msra.mxu0 0.0
    %1143 = vmatprep.subr.mxu0 0.0
    %1144 = vmatpush1.xpose.msra.mxu0 %v1111
    %1145 = vmatprep.subr.mxu0 0.0
    %1146 = vmatpush2.xpose.msra.mxu0 0.0
    %1147 = vmatprep.subr.mxu0 0.0
    %1148 = vmatpush2.xpose.msra.mxu0 0.0
    %1149 = vmatprep.subr.mxu0 0.0
    %1150 = vmatpush2.xpose.msra.mxu0 0.0
    %1151 = vmatprep.subr.mxu0 0.0
    %1152 = vmatpush2.xpose.msra.mxu0 0.0
    %1153 = vmatprep.subr.mxu0 0.0
    %1154 = vmatpush2.xpose.msra.mxu0 0.0
    %1155 = vmatprep.subr.mxu0 0.0
    %1156 = vmatpush2.xpose.msra.mxu0 0.0
    %1157 = vmatprep.subr.mxu0 0.0
    %1158 = vmatpush2.xpose.msra.mxu0 0.0
    %1159 = vmatprep.subr.mxu0 0.0
    %1160 = vmatpush2.xpose.msra.mxu0 0.0
    %1161 = vmatprep.subr.mxu0 0.0
    %1162 = vmatpush2.xpose.msra.mxu0 0.0
    %1163 = vmatprep.subr.mxu0 0.0
    %1164 = vmatpush2.xpose.msra.mxu0 0.0
    %1165 = vmatprep.subr.mxu0 0.0
    %1166 = vmatpush2.xpose.msra.mxu0 0.0
    %1167 = vmatprep.subr.mxu0 0.0
    %1168 = vmatpush2.xpose.msra.mxu0 0.0
    %1169 = vmatprep.subr.mxu0 0.0
    %1170 = vmatpush2.xpose.msra.mxu0 0.0
    %1171 = vmatprep.subr.mxu0 0.0
    %1172 = vmatpush2.xpose.msra.mxu0 0.0
    %1173 = vmatprep.subr.mxu0 0.0
    %1174 = vmatpush2.xpose.msra.mxu0 0.0
    %1175 = vmatprep.subr.mxu0 0.0
    %1176 = vmatpush2.xpose.msra.mxu0 0.0
    %1177 = vmatprep.mubr.f32.mxu0 0.0
    %1178 = vmatmul.mubr.f32.gmra.mxu0 %v1108
    %v1179 = vpop.f32.mrf.mxu0
    %v1180 = vadd.f32 0.0, %v1179
    %v1181 = vpop.f32.mrf.mxu0
    %1182 = vdwg.mxu0
    %v1184 = vsel %vm1030, %v368, 0
    %v1187 = vsel %vm1030, %v664, 0
    %1189 = vmatprep.subr.mxu0 0.0
    %1190 = vmatpush1.xpose.msra.mxu0 0.0
    %1191 = vmatprep.subr.mxu0 0.0
    %1192 = vmatpush1.xpose.msra.mxu0 0.0
    %1193 = vmatprep.subr.mxu0 0.0
    %1194 = vmatpush1.xpose.msra.mxu0 0.0
    %1195 = vmatprep.subr.mxu0 0.0
    %1196 = vmatpush1.xpose.msra.mxu0 0.0
    %1197 = vmatprep.subr.mxu0 0.0
    %1198 = vmatpush1.xpose.msra.mxu0 0.0
    %1199 = vmatprep.subr.mxu0 0.0
    %1200 = vmatpush1.xpose.msra.mxu0 0.0
    %1201 = vmatprep.subr.mxu0 0.0
    %1202 = vmatpush1.xpose.msra.mxu0 0.0
    %1203 = vmatprep.subr.mxu0 0.0
    %1204 = vmatpush1.xpose.msra.mxu0 0.0
    %1205 = vmatprep.subr.mxu0 0.0
    %1206 = vmatpush1.xpose.msra.mxu0 0.0
    %1207 = vmatprep.subr.mxu0 0.0
    %1208 = vmatpush1.xpose.msra.mxu0 0.0
    %1209 = vmatprep.subr.mxu0 0.0
    %1210 = vmatpush1.xpose.msra.mxu0 0.0
    %1211 = vmatprep.subr.mxu0 0.0
    %1212 = vmatpush1.xpose.msra.mxu0 0.0
    %1213 = vmatprep.subr.mxu0 0.0
    %1214 = vmatpush1.xpose.msra.mxu0 0.0
    %1215 = vmatprep.subr.mxu0 0.0
    %1216 = vmatpush1.xpose.msra.mxu0 0.0
    %1217 = vmatprep.subr.mxu0 0.0
    %1218 = vmatpush1.xpose.msra.mxu0 0.0
    %1219 = vmatprep.subr.mxu0 0.0
    %1220 = vmatpush1.xpose.msra.mxu0 %v1187
    %1221 = vmatprep.subr.mxu0 0.0
    %1222 = vmatpush2.xpose.msra.mxu0 0.0
    %1223 = vmatprep.subr.mxu0 0.0
    %1224 = vmatpush2.xpose.msra.mxu0 0.0
    %1225 = vmatprep.subr.mxu0 0.0
    %1226 = vmatpush2.xpose.msra.mxu0 0.0
    %1227 = vmatprep.subr.mxu0 0.0
    %1228 = vmatpush2.xpose.msra.mxu0 0.0
    %1229 = vmatprep.subr.mxu0 0.0
    %1230 = vmatpush2.xpose.msra.mxu0 0.0
    %1231 = vmatprep.subr.mxu0 0.0
    %1232 = vmatpush2.xpose.msra.mxu0 0.0
    %1233 = vmatprep.subr.mxu0 0.0
    %1234 = vmatpush2.xpose.msra.mxu0 0.0
    %1235 = vmatprep.subr.mxu0 0.0
    %1236 = vmatpush2.xpose.msra.mxu0 0.0
    %1237 = vmatprep.subr.mxu0 0.0
    %1238 = vmatpush2.xpose.msra.mxu0 0.0
    %1239 = vmatprep.subr.mxu0 0.0
    %1240 = vmatpush2.xpose.msra.mxu0 0.0
    %1241 = vmatprep.subr.mxu0 0.0
    %1242 = vmatpush2.xpose.msra.mxu0 0.0
    %1243 = vmatprep.subr.mxu0 0.0
    %1244 = vmatpush2.xpose.msra.mxu0 0.0
    %1245 = vmatprep.subr.mxu0 0.0
    %1246 = vmatpush2.xpose.msra.mxu0 0.0
    %1247 = vmatprep.subr.mxu0 0.0
    %1248 = vmatpush2.xpose.msra.mxu0 0.0
    %1249 = vmatprep.subr.mxu0 0.0
    %1250 = vmatpush2.xpose.msra.mxu0 0.0
    %1251 = vmatprep.subr.mxu0 0.0
    %1252 = vmatpush2.xpose.msra.mxu0 0.0
    %1253 = vmatprep.mubr.f32.mxu0 0.0
    %1254 = vmatmul.mubr.f32.gmra.mxu0 %v1184
    %v1255 = vpop.f32.mrf.mxu0
    %v1256 = vadd.f32 0.0, %v1255
    %v1257 = vpop.f32.mrf.mxu0
    %1258 = vdwg.mxu0
    %v1260 = vsel %vm1030, %v369, 0
    %v1263 = vsel %vm1030, %v665, 0
    %1265 = vmatprep.subr.mxu0 0.0
    %1266 = vmatpush1.xpose.msra.mxu0 0.0
    %1267 = vmatprep.subr.mxu0 0.0
    %1268 = vmatpush1.xpose.msra.mxu0 0.0
    %1269 = vmatprep.subr.mxu0 0.0
    %1270 = vmatpush1.xpose.msra.mxu0 0.0
    %1271 = vmatprep.subr.mxu0 0.0
    %1272 = vmatpush1.xpose.msra.mxu0 0.0
    %1273 = vmatprep.subr.mxu0 0.0
    %1274 = vmatpush1.xpose.msra.mxu0 0.0
    %1275 = vmatprep.subr.mxu0 0.0
    %1276 = vmatpush1.xpose.msra.mxu0 0.0
    %1277 = vmatprep.subr.mxu0 0.0
    %1278 = vmatpush1.xpose.msra.mxu0 0.0
    %1279 = vmatprep.subr.mxu0 0.0
    %1280 = vmatpush1.xpose.msra.mxu0 0.0
    %1281 = vmatprep.subr.mxu0 0.0
    %1282 = vmatpush1.xpose.msra.mxu0 0.0
    %1283 = vmatprep.subr.mxu0 0.0
    %1284 = vmatpush1.xpose.msra.mxu0 0.0
    %1285 = vmatprep.subr.mxu0 0.0
    %1286 = vmatpush1.xpose.msra.mxu0 0.0
    %1287 = vmatprep.subr.mxu0 0.0
    %1288 = vmatpush1.xpose.msra.mxu0 0.0
    %1289 = vmatprep.subr.mxu0 0.0
    %1290 = vmatpush1.xpose.msra.mxu0 0.0
    %1291 = vmatprep.subr.mxu0 0.0
    %1292 = vmatpush1.xpose.msra.mxu0 0.0
    %1293 = vmatprep.subr.mxu0 0.0
    %1294 = vmatpush1.xpose.msra.mxu0 0.0
    %1295 = vmatprep.subr.mxu0 0.0
    %1296 = vmatpush1.xpose.msra.mxu0 %v1263
    %1297 = vmatprep.subr.mxu0 0.0
    %1298 = vmatpush2.xpose.msra.mxu0 0.0
    %1299 = vmatprep.subr.mxu0 0.0
    %1300 = vmatpush2.xpose.msra.mxu0 0.0
    %1301 = vmatprep.subr.mxu0 0.0
    %1302 = vmatpush2.xpose.msra.mxu0 0.0
    %1303 = vmatprep.subr.mxu0 0.0
    %1304 = vmatpush2.xpose.msra.mxu0 0.0
    %1305 = vmatprep.subr.mxu0 0.0
    %1306 = vmatpush2.xpose.msra.mxu0 0.0
    %1307 = vmatprep.subr.mxu0 0.0
    %1308 = vmatpush2.xpose.msra.mxu0 0.0
    %1309 = vmatprep.subr.mxu0 0.0
    %1310 = vmatpush2.xpose.msra.mxu0 0.0
    %1311 = vmatprep.subr.mxu0 0.0
    %1312 = vmatpush2.xpose.msra.mxu0 0.0
    %1313 = vmatprep.subr.mxu0 0.0
    %1314 = vmatpush2.xpose.msra.mxu0 0.0
    %1315 = vmatprep.subr.mxu0 0.0
    %1316 = vmatpush2.xpose.msra.mxu0 0.0
    %1317 = vmatprep.subr.mxu0 0.0
    %1318 = vmatpush2.xpose.msra.mxu0 0.0
    %1319 = vmatprep.subr.mxu0 0.0
    %1320 = vmatpush2.xpose.msra.mxu0 0.0
    %1321 = vmatprep.subr.mxu0 0.0
    %1322 = vmatpush2.xpose.msra.mxu0 0.0
    %1323 = vmatprep.subr.mxu0 0.0
    %1324 = vmatpush2.xpose.msra.mxu0 0.0
    %1325 = vmatprep.subr.mxu0 0.0
    %1326 = vmatpush2.xpose.msra.mxu0 0.0
    %1327 = vmatprep.subr.mxu0 0.0
    %1328 = vmatpush2.xpose.msra.mxu0 0.0
    %1329 = vmatprep.mubr.f32.mxu0 0.0
    %1330 = vmatmul.mubr.f32.gmra.mxu0 %v1260
    %v1331 = vpop.f32.mrf.mxu0
    %v1332 = vadd.f32 0.0, %v1331
    %v1333 = vpop.f32.mrf.mxu0
    %1334 = vdwg.mxu0
    %v1336 = vsel %vm1030, %v434, 0
    %v1339 = vsel %vm1030, %v730, 0
    %1341 = vmatprep.subr.mxu0 0.0
    %1342 = vmatpush1.xpose.msra.mxu0 0.0
    %1343 = vmatprep.subr.mxu0 0.0
    %1344 = vmatpush1.xpose.msra.mxu0 0.0
    %1345 = vmatprep.subr.mxu0 0.0
    %1346 = vmatpush1.xpose.msra.mxu0 0.0
    %1347 = vmatprep.subr.mxu0 0.0
    %1348 = vmatpush1.xpose.msra.mxu0 0.0
    %1349 = vmatprep.subr.mxu0 0.0
    %1350 = vmatpush1.xpose.msra.mxu0 0.0
    %1351 = vmatprep.subr.mxu0 0.0
    %1352 = vmatpush1.xpose.msra.mxu0 0.0
    %1353 = vmatprep.subr.mxu0 0.0
    %1354 = vmatpush1.xpose.msra.mxu0 0.0
    %1355 = vmatprep.subr.mxu0 0.0
    %1356 = vmatpush1.xpose.msra.mxu0 0.0
    %1357 = vmatprep.subr.mxu0 0.0
    %1358 = vmatpush1.xpose.msra.mxu0 0.0
    %1359 = vmatprep.subr.mxu0 0.0
    %1360 = vmatpush1.xpose.msra.mxu0 0.0
    %1361 = vmatprep.subr.mxu0 0.0
    %1362 = vmatpush1.xpose.msra.mxu0 0.0
    %1363 = vmatprep.subr.mxu0 0.0
    %1364 = vmatpush1.xpose.msra.mxu0 0.0
    %1365 = vmatprep.subr.mxu0 0.0
    %1366 = vmatpush1.xpose.msra.mxu0 0.0
    %1367 = vmatprep.subr.mxu0 0.0
    %1368 = vmatpush1.xpose.msra.mxu0 0.0
    %1369 = vmatprep.subr.mxu0 0.0
    %1370 = vmatpush1.xpose.msra.mxu0 0.0
    %1371 = vmatprep.subr.mxu0 0.0
    %1372 = vmatpush1.xpose.msra.mxu0 %v1339
    %1373 = vmatprep.subr.mxu0 0.0
    %1374 = vmatpush2.xpose.msra.mxu0 0.0
    %1375 = vmatprep.subr.mxu0 0.0
    %1376 = vmatpush2.xpose.msra.mxu0 0.0
    %1377 = vmatprep.subr.mxu0 0.0
    %1378 = vmatpush2.xpose.msra.mxu0 0.0
    %1379 = vmatprep.subr.mxu0 0.0
    %1380 = vmatpush2.xpose.msra.mxu0 0.0
    %1381 = vmatprep.subr.mxu0 0.0
    %1382 = vmatpush2.xpose.msra.mxu0 0.0
    %1383 = vmatprep.subr.mxu0 0.0
    %1384 = vmatpush2.xpose.msra.mxu0 0.0
    %1385 = vmatprep.subr.mxu0 0.0
    %1386 = vmatpush2.xpose.msra.mxu0 0.0
    %1387 = vmatprep.subr.mxu0 0.0
    %1388 = vmatpush2.xpose.msra.mxu0 0.0
    %1389 = vmatprep.subr.mxu0 0.0
    %1390 = vmatpush2.xpose.msra.mxu0 0.0
    %1391 = vmatprep.subr.mxu0 0.0
    %1392 = vmatpush2.xpose.msra.mxu0 0.0
    %1393 = vmatprep.subr.mxu0 0.0
    %1394 = vmatpush2.xpose.msra.mxu0 0.0
    %1395 = vmatprep.subr.mxu0 0.0
    %1396 = vmatpush2.xpose.msra.mxu0 0.0
    %1397 = vmatprep.subr.mxu0 0.0
    %1398 = vmatpush2.xpose.msra.mxu0 0.0
    %1399 = vmatprep.subr.mxu0 0.0
    %1400 = vmatpush2.xpose.msra.mxu0 0.0
    %1401 = vmatprep.subr.mxu0 0.0
    %1402 = vmatpush2.xpose.msra.mxu0 0.0
    %1403 = vmatprep.subr.mxu0 0.0
    %1404 = vmatpush2.xpose.msra.mxu0 0.0
    %1405 = vmatprep.mubr.f32.mxu0 0.0
    %1406 = vmatmul.mubr.f32.gmra.mxu0 %v1336
    %v1407 = vpop.f32.mrf.mxu0
    %v1408 = vadd.f32 0.0, %v1407
    %v1409 = vpop.f32.mrf.mxu0
    %1410 = vdwg.mxu0
    %v1412 = vsel %vm1030, %v435, 0
    %v1415 = vsel %vm1030, %v731, 0
    %1417 = vmatprep.subr.mxu0 0.0
    %1418 = vmatpush1.xpose.msra.mxu0 0.0
    %1419 = vmatprep.subr.mxu0 0.0
    %1420 = vmatpush1.xpose.msra.mxu0 0.0
    %1421 = vmatprep.subr.mxu0 0.0
    %1422 = vmatpush1.xpose.msra.mxu0 0.0
    %1423 = vmatprep.subr.mxu0 0.0
    %1424 = vmatpush1.xpose.msra.mxu0 0.0
    %1425 = vmatprep.subr.mxu0 0.0
    %1426 = vmatpush1.xpose.msra.mxu0 0.0
    %1427 = vmatprep.subr.mxu0 0.0
    %1428 = vmatpush1.xpose.msra.mxu0 0.0
    %1429 = vmatprep.subr.mxu0 0.0
    %1430 = vmatpush1.xpose.msra.mxu0 0.0
    %1431 = vmatprep.subr.mxu0 0.0
    %1432 = vmatpush1.xpose.msra.mxu0 0.0
    %1433 = vmatprep.subr.mxu0 0.0
    %1434 = vmatpush1.xpose.msra.mxu0 0.0
    %1435 = vmatprep.subr.mxu0 0.0
    %1436 = vmatpush1.xpose.msra.mxu0 0.0
    %1437 = vmatprep.subr.mxu0 0.0
    %1438 = vmatpush1.xpose.msra.mxu0 0.0
    %1439 = vmatprep.subr.mxu0 0.0
    %1440 = vmatpush1.xpose.msra.mxu0 0.0
    %1441 = vmatprep.subr.mxu0 0.0
    %1442 = vmatpush1.xpose.msra.mxu0 0.0
    %1443 = vmatprep.subr.mxu0 0.0
    %1444 = vmatpush1.xpose.msra.mxu0 0.0
    %1445 = vmatprep.subr.mxu0 0.0
    %1446 = vmatpush1.xpose.msra.mxu0 0.0
    %1447 = vmatprep.subr.mxu0 0.0
    %1448 = vmatpush1.xpose.msra.mxu0 %v1415
    %1449 = vmatprep.subr.mxu0 0.0
    %1450 = vmatpush2.xpose.msra.mxu0 0.0
    %1451 = vmatprep.subr.mxu0 0.0
    %1452 = vmatpush2.xpose.msra.mxu0 0.0
    %1453 = vmatprep.subr.mxu0 0.0
    %1454 = vmatpush2.xpose.msra.mxu0 0.0
    %1455 = vmatprep.subr.mxu0 0.0
    %1456 = vmatpush2.xpose.msra.mxu0 0.0
    %1457 = vmatprep.subr.mxu0 0.0
    %1458 = vmatpush2.xpose.msra.mxu0 0.0
    %1459 = vmatprep.subr.mxu0 0.0
    %1460 = vmatpush2.xpose.msra.mxu0 0.0
    %1461 = vmatprep.subr.mxu0 0.0
    %1462 = vmatpush2.xpose.msra.mxu0 0.0
    %1463 = vmatprep.subr.mxu0 0.0
    %1464 = vmatpush2.xpose.msra.mxu0 0.0
    %1465 = vmatprep.subr.mxu0 0.0
    %1466 = vmatpush2.xpose.msra.mxu0 0.0
    %1467 = vmatprep.subr.mxu0 0.0
    %1468 = vmatpush2.xpose.msra.mxu0 0.0
    %1469 = vmatprep.subr.mxu0 0.0
    %1470 = vmatpush2.xpose.msra.mxu0 0.0
    %1471 = vmatprep.subr.mxu0 0.0
    %1472 = vmatpush2.xpose.msra.mxu0 0.0
    %1473 = vmatprep.subr.mxu0 0.0
    %1474 = vmatpush2.xpose.msra.mxu0 0.0
    %1475 = vmatprep.subr.mxu0 0.0
    %1476 = vmatpush2.xpose.msra.mxu0 0.0
    %1477 = vmatprep.subr.mxu0 0.0
    %1478 = vmatpush2.xpose.msra.mxu0 0.0
    %1479 = vmatprep.subr.mxu0 0.0
    %1480 = vmatpush2.xpose.msra.mxu0 0.0
    %1481 = vmatprep.mubr.f32.mxu0 0.0
    %1482 = vmatmul.mubr.f32.gmra.mxu0 %v1412
    %v1483 = vpop.f32.mrf.mxu0
    %v1484 = vadd.f32 0.0, %v1483
    %v1485 = vpop.f32.mrf.mxu0
    %1486 = vdwg.mxu0
    %v1488 = vsel %vm1030, %v436, 0
    %v1491 = vsel %vm1030, %v732, 0
    %1493 = vmatprep.subr.mxu0 0.0
    %1494 = vmatpush1.xpose.msra.mxu0 0.0
    %1495 = vmatprep.subr.mxu0 0.0
    %1496 = vmatpush1.xpose.msra.mxu0 0.0
    %1497 = vmatprep.subr.mxu0 0.0
    %1498 = vmatpush1.xpose.msra.mxu0 0.0
    %1499 = vmatprep.subr.mxu0 0.0
    %1500 = vmatpush1.xpose.msra.mxu0 0.0
    %1501 = vmatprep.subr.mxu0 0.0
    %1502 = vmatpush1.xpose.msra.mxu0 0.0
    %1503 = vmatprep.subr.mxu0 0.0
    %1504 = vmatpush1.xpose.msra.mxu0 0.0
    %1505 = vmatprep.subr.mxu0 0.0
    %1506 = vmatpush1.xpose.msra.mxu0 0.0
    %1507 = vmatprep.subr.mxu0 0.0
    %1508 = vmatpush1.xpose.msra.mxu0 0.0
    %1509 = vmatprep.subr.mxu0 0.0
    %1510 = vmatpush1.xpose.msra.mxu0 0.0
    %1511 = vmatprep.subr.mxu0 0.0
    %1512 = vmatpush1.xpose.msra.mxu0 0.0
    %1513 = vmatprep.subr.mxu0 0.0
    %1514 = vmatpush1.xpose.msra.mxu0 0.0
    %1515 = vmatprep.subr.mxu0 0.0
    %1516 = vmatpush1.xpose.msra.mxu0 0.0
    %1517 = vmatprep.subr.mxu0 0.0
    %1518 = vmatpush1.xpose.msra.mxu0 0.0
    %1519 = vmatprep.subr.mxu0 0.0
    %1520 = vmatpush1.xpose.msra.mxu0 0.0
    %1521 = vmatprep.subr.mxu0 0.0
    %1522 = vmatpush1.xpose.msra.mxu0 0.0
    %1523 = vmatprep.subr.mxu0 0.0
    %1524 = vmatpush1.xpose.msra.mxu0 %v1491
    %1525 = vmatprep.subr.mxu0 0.0
    %1526 = vmatpush2.xpose.msra.mxu0 0.0
    %1527 = vmatprep.subr.mxu0 0.0
    %1528 = vmatpush2.xpose.msra.mxu0 0.0
    %1529 = vmatprep.subr.mxu0 0.0
    %1530 = vmatpush2.xpose.msra.mxu0 0.0
    %1531 = vmatprep.subr.mxu0 0.0
    %1532 = vmatpush2.xpose.msra.mxu0 0.0
    %1533 = vmatprep.subr.mxu0 0.0
    %1534 = vmatpush2.xpose.msra.mxu0 0.0
    %1535 = vmatprep.subr.mxu0 0.0
    %1536 = vmatpush2.xpose.msra.mxu0 0.0
    %1537 = vmatprep.subr.mxu0 0.0
    %1538 = vmatpush2.xpose.msra.mxu0 0.0
    %1539 = vmatprep.subr.mxu0 0.0
    %1540 = vmatpush2.xpose.msra.mxu0 0.0
    %1541 = vmatprep.subr.mxu0 0.0
    %1542 = vmatpush2.xpose.msra.mxu0 0.0
    %1543 = vmatprep.subr.mxu0 0.0
    %1544 = vmatpush2.xpose.msra.mxu0 0.0
    %1545 = vmatprep.subr.mxu0 0.0
    %1546 = vmatpush2.xpose.msra.mxu0 0.0
    %1547 = vmatprep.subr.mxu0 0.0
    %1548 = vmatpush2.xpose.msra.mxu0 0.0
    %1549 = vmatprep.subr.mxu0 0.0
    %1550 = vmatpush2.xpose.msra.mxu0 0.0
    %1551 = vmatprep.subr.mxu0 0.0
    %1552 = vmatpush2.xpose.msra.mxu0 0.0
    %1553 = vmatprep.subr.mxu0 0.0
    %1554 = vmatpush2.xpose.msra.mxu0 0.0
    %1555 = vmatprep.subr.mxu0 0.0
    %1556 = vmatpush2.xpose.msra.mxu0 0.0
    %1557 = vmatprep.mubr.f32.mxu0 0.0
    %1558 = vmatmul.mubr.f32.gmra.mxu0 %v1488
    %v1559 = vpop.f32.mrf.mxu0
    %v1560 = vadd.f32 0.0, %v1559
    %v1561 = vpop.f32.mrf.mxu0
    %1562 = vdwg.mxu0
    %v1564 = vsel %vm1030, %v437, 0
    %v1567 = vsel %vm1030, %v733, 0
    %1569 = vmatprep.subr.mxu0 0.0
    %1570 = vmatpush1.xpose.msra.mxu0 0.0
    %1571 = vmatprep.subr.mxu0 0.0
    %1572 = vmatpush1.xpose.msra.mxu0 0.0
    %1573 = vmatprep.subr.mxu0 0.0
    %1574 = vmatpush1.xpose.msra.mxu0 0.0
    %1575 = vmatprep.subr.mxu0 0.0
    %1576 = vmatpush1.xpose.msra.mxu0 0.0
    %1577 = vmatprep.subr.mxu0 0.0
    %1578 = vmatpush1.xpose.msra.mxu0 0.0
    %1579 = vmatprep.subr.mxu0 0.0
    %1580 = vmatpush1.xpose.msra.mxu0 0.0
    %1581 = vmatprep.subr.mxu0 0.0
    %1582 = vmatpush1.xpose.msra.mxu0 0.0
    %1583 = vmatprep.subr.mxu0 0.0
    %1584 = vmatpush1.xpose.msra.mxu0 0.0
    %1585 = vmatprep.subr.mxu0 0.0
    %1586 = vmatpush1.xpose.msra.mxu0 0.0
    %1587 = vmatprep.subr.mxu0 0.0
    %1588 = vmatpush1.xpose.msra.mxu0 0.0
    %1589 = vmatprep.subr.mxu0 0.0
    %1590 = vmatpush1.xpose.msra.mxu0 0.0
    %1591 = vmatprep.subr.mxu0 0.0
    %1592 = vmatpush1.xpose.msra.mxu0 0.0
    %1593 = vmatprep.subr.mxu0 0.0
    %1594 = vmatpush1.xpose.msra.mxu0 0.0
    %1595 = vmatprep.subr.mxu0 0.0
    %1596 = vmatpush1.xpose.msra.mxu0 0.0
    %1597 = vmatprep.subr.mxu0 0.0
    %1598 = vmatpush1.xpose.msra.mxu0 0.0
    %1599 = vmatprep.subr.mxu0 0.0
    %1600 = vmatpush1.xpose.msra.mxu0 %v1567
    %1601 = vmatprep.subr.mxu0 0.0
    %1602 = vmatpush2.xpose.msra.mxu0 0.0
    %1603 = vmatprep.subr.mxu0 0.0
    %1604 = vmatpush2.xpose.msra.mxu0 0.0
    %1605 = vmatprep.subr.mxu0 0.0
    %1606 = vmatpush2.xpose.msra.mxu0 0.0
    %1607 = vmatprep.subr.mxu0 0.0
    %1608 = vmatpush2.xpose.msra.mxu0 0.0
    %1609 = vmatprep.subr.mxu0 0.0
    %1610 = vmatpush2.xpose.msra.mxu0 0.0
    %1611 = vmatprep.subr.mxu0 0.0
    %1612 = vmatpush2.xpose.msra.mxu0 0.0
    %1613 = vmatprep.subr.mxu0 0.0
    %1614 = vmatpush2.xpose.msra.mxu0 0.0
    %1615 = vmatprep.subr.mxu0 0.0
    %1616 = vmatpush2.xpose.msra.mxu0 0.0
    %1617 = vmatprep.subr.mxu0 0.0
    %1618 = vmatpush2.xpose.msra.mxu0 0.0
    %1619 = vmatprep.subr.mxu0 0.0
    %1620 = vmatpush2.xpose.msra.mxu0 0.0
    %1621 = vmatprep.subr.mxu0 0.0
    %1622 = vmatpush2.xpose.msra.mxu0 0.0
    %1623 = vmatprep.subr.mxu0 0.0
    %1624 = vmatpush2.xpose.msra.mxu0 0.0
    %1625 = vmatprep.subr.mxu0 0.0
    %1626 = vmatpush2.xpose.msra.mxu0 0.0
    %1627 = vmatprep.subr.mxu0 0.0
    %1628 = vmatpush2.xpose.msra.mxu0 0.0
    %1629 = vmatprep.subr.mxu0 0.0
    %1630 = vmatpush2.xpose.msra.mxu0 0.0
    %1631 = vmatprep.subr.mxu0 0.0
    %1632 = vmatpush2.xpose.msra.mxu0 0.0
    %1633 = vmatprep.mubr.f32.mxu0 0.0
    %1634 = vmatmul.mubr.f32.gmra.mxu0 %v1564
    %v1635 = vpop.f32.mrf.mxu0
    %v1636 = vadd.f32 0.0, %v1635
    %v1637 = vpop.f32.mrf.mxu0
    %1638 = vdwg.mxu0
    %v1639 = vmul.f32 %v1104, 0.35355338
    %v1640 = vmul.f32 %v1180, 0.35355338
    %v1641 = vmul.f32 %v1256, 0.35355338
    %v1642 = vmul.f32 %v1332, 0.35355338
    %v1643 = vmul.f32 %v1408, 0.35355338
    %v1644 = vmul.f32 %v1484, 0.35355338
    %v1645 = vmul.f32 %v1560, 0.35355338
    %v1646 = vmul.f32 %v1636, 0.35355338
    %v1647 = vsel %vm1030, %v1639, -inf
    %1648 = vmax.xlane.f32.xlu0 %v1647
    %v1649 = vpop.xlane.xlu0 %1648
    %v1650 = vsel %vm1030, %v1640, -inf
    %1651 = vmax.xlane.f32.xlu0 %v1650
    %v1652 = vpop.xlane.xlu0 %1651
    %v1653 = vsel %vm1030, %v1641, -inf
    %1654 = vmax.xlane.f32.xlu0 %v1653
    %v1655 = vpop.xlane.xlu0 %1654
    %v1656 = vsel %vm1030, %v1642, -inf
    %1657 = vmax.xlane.f32.xlu0 %v1656
    %v1658 = vpop.xlane.xlu0 %1657
    %v1659 = vsel %vm1030, %v1643, -inf
    %1660 = vmax.xlane.f32.xlu0 %v1659
    %v1661 = vpop.xlane.xlu0 %1660
    %v1662 = vsel %vm1030, %v1644, -inf
    %1663 = vmax.xlane.f32.xlu0 %v1662
    %v1664 = vpop.xlane.xlu0 %1663
    %v1665 = vsel %vm1030, %v1645, -inf
    %1666 = vmax.xlane.f32.xlu0 %v1665
    %v1667 = vpop.xlane.xlu0 %1666
    %v1668 = vsel %vm1030, %v1646, -inf
    %1669 = vmax.xlane.f32.xlu0 %v1668
    %v1670 = vpop.xlane.xlu0 %1669
    %v1671 = vsub.f32 %v1639, %v1649
    %v1672 = vsub.f32 %v1640, %v1652
    %v1673 = vsub.f32 %v1641, %v1655
    %v1674 = vsub.f32 %v1642, %v1658
    %v1675 = vsub.f32 %v1643, %v1661
    %v1676 = vsub.f32 %v1644, %v1664
    %v1677 = vsub.f32 %v1645, %v1667
    %v1678 = vsub.f32 %v1646, %v1670
    %v1679 = vmul.f32 %v1671, 1.442695
    %v1680 = vpow.pop %v1679
    %v1681 = vmul.f32 %v1672, 1.442695
    %v1682 = vpow.pop %v1681
    %v1683 = vmul.f32 %v1673, 1.442695
    %v1684 = vpow.pop %v1683
    %v1685 = vmul.f32 %v1674, 1.442695
    %v1686 = vpow.pop %v1685
    %v1687 = vmul.f32 %v1675, 1.442695
    %v1688 = vpow.pop %v1687
    %v1689 = vmul.f32 %v1676, 1.442695
    %v1690 = vpow.pop %v1689
    %v1691 = vmul.f32 %v1677, 1.442695
    %v1692 = vpow.pop %v1691
    %v1693 = vmul.f32 %v1678, 1.442695
    %v1694 = vpow.pop %v1693
    %v1695 = vsel %vm1030, %v1680, 0.0
    %1696 = vadd.xlane.f32.xlu0 %v1695
    %v1697 = vpop.xlane.xlu0 %1696
    %v1698 = vsel %vm1030, %v1682, 0.0
    %1699 = vadd.xlane.f32.xlu0 %v1698
    %v1700 = vpop.xlane.xlu0 %1699
    %v1701 = vsel %vm1030, %v1684, 0.0
    %1702 = vadd.xlane.f32.xlu0 %v1701
    %v1703 = vpop.xlane.xlu0 %1702
    %v1704 = vsel %vm1030, %v1686, 0.0
    %1705 = vadd.xlane.f32.xlu0 %v1704
    %v1706 = vpop.xlane.xlu0 %1705
    %v1707 = vsel %vm1030, %v1688, 0.0
    %1708 = vadd.xlane.f32.xlu0 %v1707
    %v1709 = vpop.xlane.xlu0 %1708
    %v1710 = vsel %vm1030, %v1690, 0.0
    %1711 = vadd.xlane.f32.xlu0 %v1710
    %v1712 = vpop.xlane.xlu0 %1711
    %v1713 = vsel %vm1030, %v1692, 0.0
    %1714 = vadd.xlane.f32.xlu0 %v1713
    %v1715 = vpop.xlane.xlu0 %1714
    %v1716 = vsel %vm1030, %v1694, 0.0
    %1717 = vadd.xlane.f32.xlu0 %v1716
    %v1718 = vpop.xlane.xlu0 %1717
    %v1719 = vrcp.pop %v1697
    %v1720 = vmul.f32 %v1680, %v1719
    %v1721 = vrcp.pop %v1700
    %v1722 = vmul.f32 %v1682, %v1721
    %v1723 = vrcp.pop %v1703
    %v1724 = vmul.f32 %v1684, %v1723
    %v1725 = vrcp.pop %v1706
    %v1726 = vmul.f32 %v1686, %v1725
    %v1727 = vrcp.pop %v1709
    %v1728 = vmul.f32 %v1688, %v1727
    %v1729 = vrcp.pop %v1712
    %v1730 = vmul.f32 %v1690, %v1729
    %v1731 = vrcp.pop %v1715
    %v1732 = vmul.f32 %v1692, %v1731
    %v1733 = vrcp.pop %v1718
    %v1734 = vmul.f32 %v1694, %v1733
    %v1736 = vsel %vm1030, %v1720, 0
    %1738 = vmatprep.subr.mxu0 0.0
    %1739 = vmatpush1.msra.mxu0 0.0
    %1740 = vmatprep.subr.mxu0 0.0
    %1741 = vmatpush1.msra.mxu0 0.0
    %1742 = vmatprep.subr.mxu0 0.0
    %1743 = vmatpush1.msra.mxu0 0.0
    %1744 = vmatprep.subr.mxu0 0.0
    %1745 = vmatpush1.msra.mxu0 0.0
    %1746 = vmatprep.subr.mxu0 0.0
    %1747 = vmatpush1.msra.mxu0 0.0
    %1748 = vmatprep.subr.mxu0 0.0
    %1749 = vmatpush1.msra.mxu0 0.0
    %1750 = vmatprep.subr.mxu0 0.0
    %1751 = vmatpush1.msra.mxu0 0.0
    %1752 = vmatprep.subr.mxu0 0.0
    %1753 = vmatpush1.msra.mxu0 0.0
    %1754 = vmatprep.subr.mxu0 0.0
    %1755 = vmatpush1.msra.mxu0 0.0
    %1756 = vmatprep.subr.mxu0 0.0
    %1757 = vmatpush1.msra.mxu0 0.0
    %1758 = vmatprep.subr.mxu0 0.0
    %1759 = vmatpush1.msra.mxu0 0.0
    %1760 = vmatprep.subr.mxu0 0.0
    %1761 = vmatpush1.msra.mxu0 0.0
    %1762 = vmatprep.subr.mxu0 0.0
    %1763 = vmatpush1.msra.mxu0 0.0
    %1764 = vmatprep.subr.mxu0 0.0
    %1765 = vmatpush1.msra.mxu0 0.0
    %1766 = vmatprep.subr.mxu0 0.0
    %1767 = vmatpush1.msra.mxu0 0.0
    %1768 = vmatprep.subr.mxu0 0.0
    %1769 = vmatpush1.msra.mxu0 %v958
    %1770 = vmatprep.subr.mxu0 0.0
    %1771 = vmatpush2.msra.mxu0 0.0
    %1772 = vmatprep.subr.mxu0 0.0
    %1773 = vmatpush2.msra.mxu0 0.0
    %1774 = vmatprep.subr.mxu0 0.0
    %1775 = vmatpush2.msra.mxu0 0.0
    %1776 = vmatprep.subr.mxu0 0.0
    %1777 = vmatpush2.msra.mxu0 0.0
    %1778 = vmatprep.subr.mxu0 0.0
    %1779 = vmatpush2.msra.mxu0 0.0
    %1780 = vmatprep.subr.mxu0 0.0
    %1781 = vmatpush2.msra.mxu0 0.0
    %1782 = vmatprep.subr.mxu0 0.0
    %1783 = vmatpush2.msra.mxu0 0.0
    %1784 = vmatprep.subr.mxu0 0.0
    %1785 = vmatpush2.msra.mxu0 0.0
    %1786 = vmatprep.subr.mxu0 0.0
    %1787 = vmatpush2.msra.mxu0 0.0
    %1788 = vmatprep.subr.mxu0 0.0
    %1789 = vmatpush2.msra.mxu0 0.0
    %1790 = vmatprep.subr.mxu0 0.0
    %1791 = vmatpush2.msra.mxu0 0.0
    %1792 = vmatprep.subr.mxu0 0.0
    %1793 = vmatpush2.msra.mxu0 0.0
    %1794 = vmatprep.subr.mxu0 0.0
    %1795 = vmatpush2.msra.mxu0 0.0
    %1796 = vmatprep.subr.mxu0 0.0
    %1797 = vmatpush2.msra.mxu0 0.0
    %1798 = vmatprep.subr.mxu0 0.0
    %1799 = vmatpush2.msra.mxu0 0.0
    %1800 = vmatprep.subr.mxu0 0.0
    %1801 = vmatpush2.msra.mxu0 0.0
    %1802 = vmatprep.mubr.f32.mxu0 0.0
    %1803 = vmatmul.mubr.f32.gmra.mxu0 %v1736
    %v1804 = vpop.f32.mrf.mxu0
    %v1805 = vadd.f32 0.0, %v1804
    %v1806 = vpop.f32.mrf.mxu0
    %1807 = vdwg.mxu0
    %v1809 = vsel %vm1030, %v1722, 0
    %1811 = vmatprep.subr.mxu0 0.0
    %1812 = vmatpush1.msra.mxu0 0.0
    %1813 = vmatprep.subr.mxu0 0.0
    %1814 = vmatpush1.msra.mxu0 0.0
    %1815 = vmatprep.subr.mxu0 0.0
    %1816 = vmatpush1.msra.mxu0 0.0
    %1817 = vmatprep.subr.mxu0 0.0
    %1818 = vmatpush1.msra.mxu0 0.0
    %1819 = vmatprep.subr.mxu0 0.0
    %1820 = vmatpush1.msra.mxu0 0.0
    %1821 = vmatprep.subr.mxu0 0.0
    %1822 = vmatpush1.msra.mxu0 0.0
    %1823 = vmatprep.subr.mxu0 0.0
    %1824 = vmatpush1.msra.mxu0 0.0
    %1825 = vmatprep.subr.mxu0 0.0
    %1826 = vmatpush1.msra.mxu0 0.0
    %1827 = vmatprep.subr.mxu0 0.0
    %1828 = vmatpush1.msra.mxu0 0.0
    %1829 = vmatprep.subr.mxu0 0.0
    %1830 = vmatpush1.msra.mxu0 0.0
    %1831 = vmatprep.subr.mxu0 0.0
    %1832 = vmatpush1.msra.mxu0 0.0
    %1833 = vmatprep.subr.mxu0 0.0
    %1834 = vmatpush1.msra.mxu0 0.0
    %1835 = vmatprep.subr.mxu0 0.0
    %1836 = vmatpush1.msra.mxu0 0.0
    %1837 = vmatprep.subr.mxu0 0.0
    %1838 = vmatpush1.msra.mxu0 0.0
    %1839 = vmatprep.subr.mxu0 0.0
    %1840 = vmatpush1.msra.mxu0 0.0
    %1841 = vmatprep.subr.mxu0 0.0
    %1842 = vmatpush1.msra.mxu0 %v959
    %1843 = vmatprep.subr.mxu0 0.0
    %1844 = vmatpush2.msra.mxu0 0.0
    %1845 = vmatprep.subr.mxu0 0.0
    %1846 = vmatpush2.msra.mxu0 0.0
    %1847 = vmatprep.subr.mxu0 0.0
    %1848 = vmatpush2.msra.mxu0 0.0
    %1849 = vmatprep.subr.mxu0 0.0
    %1850 = vmatpush2.msra.mxu0 0.0
    %1851 = vmatprep.subr.mxu0 0.0
    %1852 = vmatpush2.msra.mxu0 0.0
    %1853 = vmatprep.subr.mxu0 0.0
    %1854 = vmatpush2.msra.mxu0 0.0
    %1855 = vmatprep.subr.mxu0 0.0
    %1856 = vmatpush2.msra.mxu0 0.0
    %1857 = vmatprep.subr.mxu0 0.0
    %1858 = vmatpush2.msra.mxu0 0.0
    %1859 = vmatprep.subr.mxu0 0.0
    %1860 = vmatpush2.msra.mxu0 0.0
    %1861 = vmatprep.subr.mxu0 0.0
    %1862 = vmatpush2.msra.mxu0 0.0
    %1863 = vmatprep.subr.mxu0 0.0
    %1864 = vmatpush2.msra.mxu0 0.0
    %1865 = vmatprep.subr.mxu0 0.0
    %1866 = vmatpush2.msra.mxu0 0.0
    %1867 = vmatprep.subr.mxu0 0.0
    %1868 = vmatpush2.msra.mxu0 0.0
    %1869 = vmatprep.subr.mxu0 0.0
    %1870 = vmatpush2.msra.mxu0 0.0
    %1871 = vmatprep.subr.mxu0 0.0
    %1872 = vmatpush2.msra.mxu0 0.0
    %1873 = vmatprep.subr.mxu0 0.0
    %1874 = vmatpush2.msra.mxu0 0.0
    %1875 = vmatprep.mubr.f32.mxu0 0.0
    %1876 = vmatmul.mubr.f32.gmra.mxu0 %v1809
    %v1877 = vpop.f32.mrf.mxu0
    %v1878 = vadd.f32 0.0, %v1877
    %v1879 = vpop.f32.mrf.mxu0
    %1880 = vdwg.mxu0
    %v1882 = vsel %vm1030, %v1724, 0
    %1884 = vmatprep.subr.mxu0 0.0
    %1885 = vmatpush1.msra.mxu0 0.0
    %1886 = vmatprep.subr.mxu0 0.0
    %1887 = vmatpush1.msra.mxu0 0.0
    %1888 = vmatprep.subr.mxu0 0.0
    %1889 = vmatpush1.msra.mxu0 0.0
    %1890 = vmatprep.subr.mxu0 0.0
    %1891 = vmatpush1.msra.mxu0 0.0
    %1892 = vmatprep.subr.mxu0 0.0
    %1893 = vmatpush1.msra.mxu0 0.0
    %1894 = vmatprep.subr.mxu0 0.0
    %1895 = vmatpush1.msra.mxu0 0.0
    %1896 = vmatprep.subr.mxu0 0.0
    %1897 = vmatpush1.msra.mxu0 0.0
    %1898 = vmatprep.subr.mxu0 0.0
    %1899 = vmatpush1.msra.mxu0 0.0
    %1900 = vmatprep.subr.mxu0 0.0
    %1901 = vmatpush1.msra.mxu0 0.0
    %1902 = vmatprep.subr.mxu0 0.0
    %1903 = vmatpush1.msra.mxu0 0.0
    %1904 = vmatprep.subr.mxu0 0.0
    %1905 = vmatpush1.msra.mxu0 0.0
    %1906 = vmatprep.subr.mxu0 0.0
    %1907 = vmatpush1.msra.mxu0 0.0
    %1908 = vmatprep.subr.mxu0 0.0
    %1909 = vmatpush1.msra.mxu0 0.0
    %1910 = vmatprep.subr.mxu0 0.0
    %1911 = vmatpush1.msra.mxu0 0.0
    %1912 = vmatprep.subr.mxu0 0.0
    %1913 = vmatpush1.msra.mxu0 0.0
    %1914 = vmatprep.subr.mxu0 0.0
    %1915 = vmatpush1.msra.mxu0 %v960
    %1916 = vmatprep.subr.mxu0 0.0
    %1917 = vmatpush2.msra.mxu0 0.0
    %1918 = vmatprep.subr.mxu0 0.0
    %1919 = vmatpush2.msra.mxu0 0.0
    %1920 = vmatprep.subr.mxu0 0.0
    %1921 = vmatpush2.msra.mxu0 0.0
    %1922 = vmatprep.subr.mxu0 0.0
    %1923 = vmatpush2.msra.mxu0 0.0
    %1924 = vmatprep.subr.mxu0 0.0
    %1925 = vmatpush2.msra.mxu0 0.0
    %1926 = vmatprep.subr.mxu0 0.0
    %1927 = vmatpush2.msra.mxu0 0.0
    %1928 = vmatprep.subr.mxu0 0.0
    %1929 = vmatpush2.msra.mxu0 0.0
    %1930 = vmatprep.subr.mxu0 0.0
    %1931 = vmatpush2.msra.mxu0 0.0
    %1932 = vmatprep.subr.mxu0 0.0
    %1933 = vmatpush2.msra.mxu0 0.0
    %1934 = vmatprep.subr.mxu0 0.0
    %1935 = vmatpush2.msra.mxu0 0.0
    %1936 = vmatprep.subr.mxu0 0.0
    %1937 = vmatpush2.msra.mxu0 0.0
    %1938 = vmatprep.subr.mxu0 0.0
    %1939 = vmatpush2.msra.mxu0 0.0
    %1940 = vmatprep.subr.mxu0 0.0
    %1941 = vmatpush2.msra.mxu0 0.0
    %1942 = vmatprep.subr.mxu0 0.0
    %1943 = vmatpush2.msra.mxu0 0.0
    %1944 = vmatprep.subr.mxu0 0.0
    %1945 = vmatpush2.msra.mxu0 0.0
    %1946 = vmatprep.subr.mxu0 0.0
    %1947 = vmatpush2.msra.mxu0 0.0
    %1948 = vmatprep.mubr.f32.mxu0 0.0
    %1949 = vmatmul.mubr.f32.gmra.mxu0 %v1882
    %v1950 = vpop.f32.mrf.mxu0
    %v1951 = vadd.f32 0.0, %v1950
    %v1952 = vpop.f32.mrf.mxu0
    %1953 = vdwg.mxu0
    %v1955 = vsel %vm1030, %v1726, 0
    %1957 = vmatprep.subr.mxu0 0.0
    %1958 = vmatpush1.msra.mxu0 0.0
    %1959 = vmatprep.subr.mxu0 0.0
    %1960 = vmatpush1.msra.mxu0 0.0
    %1961 = vmatprep.subr.mxu0 0.0
    %1962 = vmatpush1.msra.mxu0 0.0
    %1963 = vmatprep.subr.mxu0 0.0
    %1964 = vmatpush1.msra.mxu0 0.0
    %1965 = vmatprep.subr.mxu0 0.0
    %1966 = vmatpush1.msra.mxu0 0.0
    %1967 = vmatprep.subr.mxu0 0.0
    %1968 = vmatpush1.msra.mxu0 0.0
    %1969 = vmatprep.subr.mxu0 0.0
    %1970 = vmatpush1.msra.mxu0 0.0
    %1971 = vmatprep.subr.mxu0 0.0
    %1972 = vmatpush1.msra.mxu0 0.0
    %1973 = vmatprep.subr.mxu0 0.0
    %1974 = vmatpush1.msra.mxu0 0.0
    %1975 = vmatprep.subr.mxu0 0.0
    %1976 = vmatpush1.msra.mxu0 0.0
    %1977 = vmatprep.subr.mxu0 0.0
    %1978 = vmatpush1.msra.mxu0 0.0
    %1979 = vmatprep.subr.mxu0 0.0
    %1980 = vmatpush1.msra.mxu0 0.0
    %1981 = vmatprep.subr.mxu0 0.0
    %1982 = vmatpush1.msra.mxu0 0.0
    %1983 = vmatprep.subr.mxu0 0.0
    %1984 = vmatpush1.msra.mxu0 0.0
    %1985 = vmatprep.subr.mxu0 0.0
    %1986 = vmatpush1.msra.mxu0 0.0
    %1987 = vmatprep.subr.mxu0 0.0
    %1988 = vmatpush1.msra.mxu0 %v961
    %1989 = vmatprep.subr.mxu0 0.0
    %1990 = vmatpush2.msra.mxu0 0.0
    %1991 = vmatprep.subr.mxu0 0.0
    %1992 = vmatpush2.msra.mxu0 0.0
    %1993 = vmatprep.subr.mxu0 0.0
    %1994 = vmatpush2.msra.mxu0 0.0
    %1995 = vmatprep.subr.mxu0 0.0
    %1996 = vmatpush2.msra.mxu0 0.0
    %1997 = vmatprep.subr.mxu0 0.0
    %1998 = vmatpush2.msra.mxu0 0.0
    %1999 = vmatprep.subr.mxu0 0.0
    %2000 = vmatpush2.msra.mxu0 0.0
    %2001 = vmatprep.subr.mxu0 0.0
    %2002 = vmatpush2.msra.mxu0 0.0
    %2003 = vmatprep.subr.mxu0 0.0
    %2004 = vmatpush2.msra.mxu0 0.0
    %2005 = vmatprep.subr.mxu0 0.0
    %2006 = vmatpush2.msra.mxu0 0.0
    %2007 = vmatprep.subr.mxu0 0.0
    %2008 = vmatpush2.msra.mxu0 0.0
    %2009 = vmatprep.subr.mxu0 0.0
    %2010 = vmatpush2.msra.mxu0 0.0
    %2011 = vmatprep.subr.mxu0 0.0
    %2012 = vmatpush2.msra.mxu0 0.0
    %2013 = vmatprep.subr.mxu0 0.0
    %2014 = vmatpush2.msra.mxu0 0.0
    %2015 = vmatprep.subr.mxu0 0.0
    %2016 = vmatpush2.msra.mxu0 0.0
    %2017 = vmatprep.subr.mxu0 0.0
    %2018 = vmatpush2.msra.mxu0 0.0
    %2019 = vmatprep.subr.mxu0 0.0
    %2020 = vmatpush2.msra.mxu0 0.0
    %2021 = vmatprep.mubr.f32.mxu0 0.0
    %2022 = vmatmul.mubr.f32.gmra.mxu0 %v1955
    %v2023 = vpop.f32.mrf.mxu0
    %v2024 = vadd.f32 0.0, %v2023
    %v2025 = vpop.f32.mrf.mxu0
    %2026 = vdwg.mxu0
    %v2028 = vsel %vm1030, %v1728, 0
    %2030 = vmatprep.subr.mxu0 0.0
    %2031 = vmatpush1.msra.mxu0 0.0
    %2032 = vmatprep.subr.mxu0 0.0
    %2033 = vmatpush1.msra.mxu0 0.0
    %2034 = vmatprep.subr.mxu0 0.0
    %2035 = vmatpush1.msra.mxu0 0.0
    %2036 = vmatprep.subr.mxu0 0.0
    %2037 = vmatpush1.msra.mxu0 0.0
    %2038 = vmatprep.subr.mxu0 0.0
    %2039 = vmatpush1.msra.mxu0 0.0
    %2040 = vmatprep.subr.mxu0 0.0
    %2041 = vmatpush1.msra.mxu0 0.0
    %2042 = vmatprep.subr.mxu0 0.0
    %2043 = vmatpush1.msra.mxu0 0.0
    %2044 = vmatprep.subr.mxu0 0.0
    %2045 = vmatpush1.msra.mxu0 0.0
    %2046 = vmatprep.subr.mxu0 0.0
    %2047 = vmatpush1.msra.mxu0 0.0
    %2048 = vmatprep.subr.mxu0 0.0
    %2049 = vmatpush1.msra.mxu0 0.0
    %2050 = vmatprep.subr.mxu0 0.0
    %2051 = vmatpush1.msra.mxu0 0.0
    %2052 = vmatprep.subr.mxu0 0.0
    %2053 = vmatpush1.msra.mxu0 0.0
    %2054 = vmatprep.subr.mxu0 0.0
    %2055 = vmatpush1.msra.mxu0 0.0
    %2056 = vmatprep.subr.mxu0 0.0
    %2057 = vmatpush1.msra.mxu0 0.0
    %2058 = vmatprep.subr.mxu0 0.0
    %2059 = vmatpush1.msra.mxu0 0.0
    %2060 = vmatprep.subr.mxu0 0.0
    %2061 = vmatpush1.msra.mxu0 %v1026
    %2062 = vmatprep.subr.mxu0 0.0
    %2063 = vmatpush2.msra.mxu0 0.0
    %2064 = vmatprep.subr.mxu0 0.0
    %2065 = vmatpush2.msra.mxu0 0.0
    %2066 = vmatprep.subr.mxu0 0.0
    %2067 = vmatpush2.msra.mxu0 0.0
    %2068 = vmatprep.subr.mxu0 0.0
    %2069 = vmatpush2.msra.mxu0 0.0
    %2070 = vmatprep.subr.mxu0 0.0
    %2071 = vmatpush2.msra.mxu0 0.0
    %2072 = vmatprep.subr.mxu0 0.0
    %2073 = vmatpush2.msra.mxu0 0.0
    %2074 = vmatprep.subr.mxu0 0.0
    %2075 = vmatpush2.msra.mxu0 0.0
    %2076 = vmatprep.subr.mxu0 0.0
    %2077 = vmatpush2.msra.mxu0 0.0
    %2078 = vmatprep.subr.mxu0 0.0
    %2079 = vmatpush2.msra.mxu0 0.0
    %2080 = vmatprep.subr.mxu0 0.0
    %2081 = vmatpush2.msra.mxu0 0.0
    %2082 = vmatprep.subr.mxu0 0.0
    %2083 = vmatpush2.msra.mxu0 0.0
    %2084 = vmatprep.subr.mxu0 0.0
    %2085 = vmatpush2.msra.mxu0 0.0
    %2086 = vmatprep.subr.mxu0 0.0
    %2087 = vmatpush2.msra.mxu0 0.0
    %2088 = vmatprep.subr.mxu0 0.0
    %2089 = vmatpush2.msra.mxu0 0.0
    %2090 = vmatprep.subr.mxu0 0.0
    %2091 = vmatpush2.msra.mxu0 0.0
    %2092 = vmatprep.subr.mxu0 0.0
    %2093 = vmatpush2.msra.mxu0 0.0
    %2094 = vmatprep.mubr.f32.mxu0 0.0
    %2095 = vmatmul.mubr.f32.gmra.mxu0 %v2028
    %v2096 = vpop.f32.mrf.mxu0
    %v2097 = vadd.f32 0.0, %v2096
    %v2098 = vpop.f32.mrf.mxu0
    %2099 = vdwg.mxu0
    %v2101 = vsel %vm1030, %v1730, 0
    %2103 = vmatprep.subr.mxu0 0.0
    %2104 = vmatpush1.msra.mxu0 0.0
    %2105 = vmatprep.subr.mxu0 0.0
    %2106 = vmatpush1.msra.mxu0 0.0
    %2107 = vmatprep.subr.mxu0 0.0
    %2108 = vmatpush1.msra.mxu0 0.0
    %2109 = vmatprep.subr.mxu0 0.0
    %2110 = vmatpush1.msra.mxu0 0.0
    %2111 = vmatprep.subr.mxu0 0.0
    %2112 = vmatpush1.msra.mxu0 0.0
    %2113 = vmatprep.subr.mxu0 0.0
    %2114 = vmatpush1.msra.mxu0 0.0
    %2115 = vmatprep.subr.mxu0 0.0
    %2116 = vmatpush1.msra.mxu0 0.0
    %2117 = vmatprep.subr.mxu0 0.0
    %2118 = vmatpush1.msra.mxu0 0.0
    %2119 = vmatprep.subr.mxu0 0.0
    %2120 = vmatpush1.msra.mxu0 0.0
    %2121 = vmatprep.subr.mxu0 0.0
    %2122 = vmatpush1.msra.mxu0 0.0
    %2123 = vmatprep.subr.mxu0 0.0
    %2124 = vmatpush1.msra.mxu0 0.0
    %2125 = vmatprep.subr.mxu0 0.0
    %2126 = vmatpush1.msra.mxu0 0.0
    %2127 = vmatprep.subr.mxu0 0.0
    %2128 = vmatpush1.msra.mxu0 0.0
    %2129 = vmatprep.subr.mxu0 0.0
    %2130 = vmatpush1.msra.mxu0 0.0
    %2131 = vmatprep.subr.mxu0 0.0
    %2132 = vmatpush1.msra.mxu0 0.0
    %2133 = vmatprep.subr.mxu0 0.0
    %2134 = vmatpush1.msra.mxu0 %v1027
    %2135 = vmatprep.subr.mxu0 0.0
    %2136 = vmatpush2.msra.mxu0 0.0
    %2137 = vmatprep.subr.mxu0 0.0
    %2138 = vmatpush2.msra.mxu0 0.0
    %2139 = vmatprep.subr.mxu0 0.0
    %2140 = vmatpush2.msra.mxu0 0.0
    %2141 = vmatprep.subr.mxu0 0.0
    %2142 = vmatpush2.msra.mxu0 0.0
    %2143 = vmatprep.subr.mxu0 0.0
    %2144 = vmatpush2.msra.mxu0 0.0
    %2145 = vmatprep.subr.mxu0 0.0
    %2146 = vmatpush2.msra.mxu0 0.0
    %2147 = vmatprep.subr.mxu0 0.0
    %2148 = vmatpush2.msra.mxu0 0.0
    %2149 = vmatprep.subr.mxu0 0.0
    %2150 = vmatpush2.msra.mxu0 0.0
    %2151 = vmatprep.subr.mxu0 0.0
    %2152 = vmatpush2.msra.mxu0 0.0
    %2153 = vmatprep.subr.mxu0 0.0
    %2154 = vmatpush2.msra.mxu0 0.0
    %2155 = vmatprep.subr.mxu0 0.0
    %2156 = vmatpush2.msra.mxu0 0.0
    %2157 = vmatprep.subr.mxu0 0.0
    %2158 = vmatpush2.msra.mxu0 0.0
    %2159 = vmatprep.subr.mxu0 0.0
    %2160 = vmatpush2.msra.mxu0 0.0
    %2161 = vmatprep.subr.mxu0 0.0
    %2162 = vmatpush2.msra.mxu0 0.0
    %2163 = vmatprep.subr.mxu0 0.0
    %2164 = vmatpush2.msra.mxu0 0.0
    %2165 = vmatprep.subr.mxu0 0.0
    %2166 = vmatpush2.msra.mxu0 0.0
    %2167 = vmatprep.mubr.f32.mxu0 0.0
    %2168 = vmatmul.mubr.f32.gmra.mxu0 %v2101
    %v2169 = vpop.f32.mrf.mxu0
    %v2170 = vadd.f32 0.0, %v2169
    %v2171 = vpop.f32.mrf.mxu0
    %2172 = vdwg.mxu0
    %v2174 = vsel %vm1030, %v1732, 0
    %2176 = vmatprep.subr.mxu0 0.0
    %2177 = vmatpush1.msra.mxu0 0.0
    %2178 = vmatprep.subr.mxu0 0.0
    %2179 = vmatpush1.msra.mxu0 0.0
    %2180 = vmatprep.subr.mxu0 0.0
    %2181 = vmatpush1.msra.mxu0 0.0
    %2182 = vmatprep.subr.mxu0 0.0
    %2183 = vmatpush1.msra.mxu0 0.0
    %2184 = vmatprep.subr.mxu0 0.0
    %2185 = vmatpush1.msra.mxu0 0.0
    %2186 = vmatprep.subr.mxu0 0.0
    %2187 = vmatpush1.msra.mxu0 0.0
    %2188 = vmatprep.subr.mxu0 0.0
    %2189 = vmatpush1.msra.mxu0 0.0
    %2190 = vmatprep.subr.mxu0 0.0
    %2191 = vmatpush1.msra.mxu0 0.0
    %2192 = vmatprep.subr.mxu0 0.0
    %2193 = vmatpush1.msra.mxu0 0.0
    %2194 = vmatprep.subr.mxu0 0.0
    %2195 = vmatpush1.msra.mxu0 0.0
    %2196 = vmatprep.subr.mxu0 0.0
    %2197 = vmatpush1.msra.mxu0 0.0
    %2198 = vmatprep.subr.mxu0 0.0
    %2199 = vmatpush1.msra.mxu0 0.0
    %2200 = vmatprep.subr.mxu0 0.0
    %2201 = vmatpush1.msra.mxu0 0.0
    %2202 = vmatprep.subr.mxu0 0.0
    %2203 = vmatpush1.msra.mxu0 0.0
    %2204 = vmatprep.subr.mxu0 0.0
    %2205 = vmatpush1.msra.mxu0 0.0
    %2206 = vmatprep.subr.mxu0 0.0
    %2207 = vmatpush1.msra.mxu0 %v1028
    %2208 = vmatprep.subr.mxu0 0.0
    %2209 = vmatpush2.msra.mxu0 0.0
    %2210 = vmatprep.subr.mxu0 0.0
    %2211 = vmatpush2.msra.mxu0 0.0
    %2212 = vmatprep.subr.mxu0 0.0
    %2213 = vmatpush2.msra.mxu0 0.0
    %2214 = vmatprep.subr.mxu0 0.0
    %2215 = vmatpush2.msra.mxu0 0.0
    %2216 = vmatprep.subr.mxu0 0.0
    %2217 = vmatpush2.msra.mxu0 0.0
    %2218 = vmatprep.subr.mxu0 0.0
    %2219 = vmatpush2.msra.mxu0 0.0
    %2220 = vmatprep.subr.mxu0 0.0
    %2221 = vmatpush2.msra.mxu0 0.0
    %2222 = vmatprep.subr.mxu0 0.0
    %2223 = vmatpush2.msra.mxu0 0.0
    %2224 = vmatprep.subr.mxu0 0.0
    %2225 = vmatpush2.msra.mxu0 0.0
    %2226 = vmatprep.subr.mxu0 0.0
    %2227 = vmatpush2.msra.mxu0 0.0
    %2228 = vmatprep.subr.mxu0 0.0
    %2229 = vmatpush2.msra.mxu0 0.0
    %2230 = vmatprep.subr.mxu0 0.0
    %2231 = vmatpush2.msra.mxu0 0.0
    %2232 = vmatprep.subr.mxu0 0.0
    %2233 = vmatpush2.msra.mxu0 0.0
    %2234 = vmatprep.subr.mxu0 0.0
    %2235 = vmatpush2.msra.mxu0 0.0
    %2236 = vmatprep.subr.mxu0 0.0
    %2237 = vmatpush2.msra.mxu0 0.0
    %2238 = vmatprep.subr.mxu0 0.0
    %2239 = vmatpush2.msra.mxu0 0.0
    %2240 = vmatprep.mubr.f32.mxu0 0.0
    %2241 = vmatmul.mubr.f32.gmra.mxu0 %v2174
    %v2242 = vpop.f32.mrf.mxu0
    %v2243 = vadd.f32 0.0, %v2242
    %v2244 = vpop.f32.mrf.mxu0
    %2245 = vdwg.mxu0
    %v2247 = vsel %vm1030, %v1734, 0
    %2249 = vmatprep.subr.mxu0 0.0
    %2250 = vmatpush1.msra.mxu0 0.0
    %2251 = vmatprep.subr.mxu0 0.0
    %2252 = vmatpush1.msra.mxu0 0.0
    %2253 = vmatprep.subr.mxu0 0.0
    %2254 = vmatpush1.msra.mxu0 0.0
    %2255 = vmatprep.subr.mxu0 0.0
    %2256 = vmatpush1.msra.mxu0 0.0
    %2257 = vmatprep.subr.mxu0 0.0
    %2258 = vmatpush1.msra.mxu0 0.0
    %2259 = vmatprep.subr.mxu0 0.0
    %2260 = vmatpush1.msra.mxu0 0.0
    %2261 = vmatprep.subr.mxu0 0.0
    %2262 = vmatpush1.msra.mxu0 0.0
    %2263 = vmatprep.subr.mxu0 0.0
    %2264 = vmatpush1.msra.mxu0 0.0
    %2265 = vmatprep.subr.mxu0 0.0
    %2266 = vmatpush1.msra.mxu0 0.0
    %2267 = vmatprep.subr.mxu0 0.0
    %2268 = vmatpush1.msra.mxu0 0.0
    %2269 = vmatprep.subr.mxu0 0.0
    %2270 = vmatpush1.msra.mxu0 0.0
    %2271 = vmatprep.subr.mxu0 0.0
    %2272 = vmatpush1.msra.mxu0 0.0
    %2273 = vmatprep.subr.mxu0 0.0
    %2274 = vmatpush1.msra.mxu0 0.0
    %2275 = vmatprep.subr.mxu0 0.0
    %2276 = vmatpush1.msra.mxu0 0.0
    %2277 = vmatprep.subr.mxu0 0.0
    %2278 = vmatpush1.msra.mxu0 0.0
    %2279 = vmatprep.subr.mxu0 0.0
    %2280 = vmatpush1.msra.mxu0 %v1029
    %2281 = vmatprep.subr.mxu0 0.0
    %2282 = vmatpush2.msra.mxu0 0.0
    %2283 = vmatprep.subr.mxu0 0.0
    %2284 = vmatpush2.msra.mxu0 0.0
    %2285 = vmatprep.subr.mxu0 0.0
    %2286 = vmatpush2.msra.mxu0 0.0
    %2287 = vmatprep.subr.mxu0 0.0
    %2288 = vmatpush2.msra.mxu0 0.0
    %2289 = vmatprep.subr.mxu0 0.0
    %2290 = vmatpush2.msra.mxu0 0.0
    %2291 = vmatprep.subr.mxu0 0.0
    %2292 = vmatpush2.msra.mxu0 0.0
    %2293 = vmatprep.subr.mxu0 0.0
    %2294 = vmatpush2.msra.mxu0 0.0
    %2295 = vmatprep.subr.mxu0 0.0
    %2296 = vmatpush2.msra.mxu0 0.0
    %2297 = vmatprep.subr.mxu0 0.0
    %2298 = vmatpush2.msra.mxu0 0.0
    %2299 = vmatprep.subr.mxu0 0.0
    %2300 = vmatpush2.msra.mxu0 0.0
    %2301 = vmatprep.subr.mxu0 0.0
    %2302 = vmatpush2.msra.mxu0 0.0
    %2303 = vmatprep.subr.mxu0 0.0
    %2304 = vmatpush2.msra.mxu0 0.0
    %2305 = vmatprep.subr.mxu0 0.0
    %2306 = vmatpush2.msra.mxu0 0.0
    %2307 = vmatprep.subr.mxu0 0.0
    %2308 = vmatpush2.msra.mxu0 0.0
    %2309 = vmatprep.subr.mxu0 0.0
    %2310 = vmatpush2.msra.mxu0 0.0
    %2311 = vmatprep.subr.mxu0 0.0
    %2312 = vmatpush2.msra.mxu0 0.0
    %2313 = vmatprep.mubr.f32.mxu0 0.0
    %2314 = vmatmul.mubr.f32.gmra.mxu0 %v2247
    %v2315 = vpop.f32.mrf.mxu0
    %v2316 = vadd.f32 0.0, %v2315
    %v2317 = vpop.f32.mrf.mxu0
    %2318 = vdwg.mxu0
    %v2319 = vcombine.low %v1805, %v1951
    %v2320 = vcombine.high %v1805, %v1951
    %v2322 = vunpack.c.l.s4 1983009808
    %v2323 = vunpack.c.0.s8 %v2322
    %v2324 = vlaneseq
    %v2325 = vshrl.u32 %v2324, 7
    %v2326 = vsub.s32 %v2323, %v2325
    %v2327 = vrot.slane %v2319, %v2326
    %v2329 = vunpack.c.l.s4 1983009808
    %v2330 = vunpack.c.0.s8 %v2329
    %v2331 = vlaneseq
    %v2332 = vshrl.u32 %v2331, 7
    %v2333 = vsub.s32 %v2330, %v2332
    %v2334 = vrot.slane %v2320, %v2333
    %v2335 = vcombine.low %v1878, %v2024
    %v2336 = vcombine.high %v1878, %v2024
    %v2338 = vunpack.c.l.s4 1983009808
    %v2339 = vunpack.c.0.s8 %v2338
    %v2340 = vlaneseq
    %v2341 = vshrl.u32 %v2340, 7
    %v2342 = vsub.s32 %v2339, %v2341
    %v2343 = vrot.slane %v2335, %v2342
    %v2345 = vunpack.c.l.s4 1983009808
    %v2346 = vunpack.c.0.s8 %v2345
    %v2347 = vlaneseq
    %v2348 = vshrl.u32 %v2347, 7
    %v2349 = vsub.s32 %v2346, %v2348
    %v2350 = vrot.slane %v2336, %v2349
    %v2351 = vcombine.low %v2327, %v2343
    %v2352 = vcombine.high %v2327, %v2343
    %v2354 = vunpack.c.l.s4 1934713408
    %v2355 = vunpack.c.0.s8 %v2354
    %v2356 = vlaneseq
    %v2357 = vshrl.u32 %v2356, 7
    %v2358 = vsub.s32 %v2355, %v2357
    %v2359 = vrot.slane %v2351, %v2358
    %v2361 = vunpack.c.l.s4 1934713408
    %v2362 = vunpack.c.0.s8 %v2361
    %v2363 = vlaneseq
    %v2364 = vshrl.u32 %v2363, 7
    %v2365 = vsub.s32 %v2362, %v2364
    %v2366 = vrot.slane %v2352, %v2365
    %v2367 = vcombine.low %v2334, %v2350
    %v2368 = vcombine.high %v2334, %v2350
    %v2370 = vunpack.c.l.s4 1934713408
    %v2371 = vunpack.c.0.s8 %v2370
    %v2372 = vlaneseq
    %v2373 = vshrl.u32 %v2372, 7
    %v2374 = vsub.s32 %v2371, %v2373
    %v2375 = vrot.slane %v2367, %v2374
    %v2377 = vunpack.c.l.s4 1934713408
    %v2378 = vunpack.c.0.s8 %v2377
    %v2379 = vlaneseq
    %v2380 = vshrl.u32 %v2379, 7
    %v2381 = vsub.s32 %v2378, %v2380
    %v2382 = vrot.slane %v2368, %v2381
    %v2383 = vcombine.high %v2359, 0.0
    %v2384 = vcombine.high %v2366, 0.0
    %v2385 = vcombine.high %v2375, 0.0
    %v2386 = vcombine.high %v2382, 0.0
    %v2387 = vcombine.low %v2097, %v2243
    %v2388 = vcombine.high %v2097, %v2243
    %v2390 = vunpack.c.l.s4 1983009808
    %v2391 = vunpack.c.0.s8 %v2390
    %v2392 = vlaneseq
    %v2393 = vshrl.u32 %v2392, 7
    %v2394 = vsub.s32 %v2391, %v2393
    %v2395 = vrot.slane %v2387, %v2394
    %v2397 = vunpack.c.l.s4 1983009808
    %v2398 = vunpack.c.0.s8 %v2397
    %v2399 = vlaneseq
    %v2400 = vshrl.u32 %v2399, 7
    %v2401 = vsub.s32 %v2398, %v2400
    %v2402 = vrot.slane %v2388, %v2401
    %v2403 = vcombine.low %v2170, %v2316
    %v2404 = vcombine.high %v2170, %v2316
    %v2406 = vunpack.c.l.s4 1983009808
    %v2407 = vunpack.c.0.s8 %v2406
    %v2408 = vlaneseq
    %v2409 = vshrl.u32 %v2408, 7
    %v2410 = vsub.s32 %v2407, %v2409
    %v2411 = vrot.slane %v2403, %v2410
    %v2413 = vunpack.c.l.s4 1983009808
    %v2414 = vunpack.c.0.s8 %v2413
    %v2415 = vlaneseq
    %v2416 = vshrl.u32 %v2415, 7
    %v2417 = vsub.s32 %v2414, %v2416
    %v2418 = vrot.slane %v2404, %v2417
    %v2419 = vcombine.low %v2395, %v2411
    %v2420 = vcombine.high %v2395, %v2411
    %v2422 = vunpack.c.l.s4 1934713408
    %v2423 = vunpack.c.0.s8 %v2422
    %v2424 = vlaneseq
    %v2425 = vshrl.u32 %v2424, 7
    %v2426 = vsub.s32 %v2423, %v2425
    %v2427 = vrot.slane %v2419, %v2426
    %v2429 = vunpack.c.l.s4 1934713408
    %v2430 = vunpack.c.0.s8 %v2429
    %v2431 = vlaneseq
    %v2432 = vshrl.u32 %v2431, 7
    %v2433 = vsub.s32 %v2430, %v2432
    %v2434 = vrot.slane %v2420, %v2433
    %v2435 = vcombine.low %v2402, %v2418
    %v2436 = vcombine.high %v2402, %v2418
    %v2438 = vunpack.c.l.s4 1934713408
    %v2439 = vunpack.c.0.s8 %v2438
    %v2440 = vlaneseq
    %v2441 = vshrl.u32 %v2440, 7
    %v2442 = vsub.s32 %v2439, %v2441
    %v2443 = vrot.slane %v2435, %v2442
    %v2445 = vunpack.c.l.s4 1934713408
    %v2446 = vunpack.c.0.s8 %v2445
    %v2447 = vlaneseq
    %v2448 = vshrl.u32 %v2447, 7
    %v2449 = vsub.s32 %v2446, %v2448
    %v2450 = vrot.slane %v2436, %v2449
    %v2451 = vcombine.high %v2427, 0.0
    %v2452 = vcombine.high %v2434, 0.0
    %v2453 = vcombine.high %v2443, 0.0
    %v2454 = vcombine.high %v2450, 0.0
    %v2455 = vcombine.low %v2359, %v2366
    %v2457 = vunpack.c.l.s4 1983009808
    %v2458 = vunpack.c.0.s8 %v2457
    %v2459 = vlaneseq
    %v2460 = vshrl.u32 %v2459, 7
    %v2461 = vsub.s32 %v2458, %v2460
    %v2462 = vrot.slane %v2455, %v2461
    %v2463 = vcombine.low %v2383, %v2384
    %v2465 = vunpack.c.l.s4 1983009808
    %v2466 = vunpack.c.0.s8 %v2465
    %v2467 = vlaneseq
    %v2468 = vshrl.u32 %v2467, 7
    %v2469 = vsub.s32 %v2466, %v2468
    %v2470 = vrot.slane %v2463, %v2469
    %v2471 = vcombine.low %v2375, %v2382
    %v2473 = vunpack.c.l.s4 1983009808
    %v2474 = vunpack.c.0.s8 %v2473
    %v2475 = vlaneseq
    %v2476 = vshrl.u32 %v2475, 7
    %v2477 = vsub.s32 %v2474, %v2476
    %v2478 = vrot.slane %v2471, %v2477
    %v2479 = vcombine.low %v2385, %v2386
    %v2481 = vunpack.c.l.s4 1983009808
    %v2482 = vunpack.c.0.s8 %v2481
    %v2483 = vlaneseq
    %v2484 = vshrl.u32 %v2483, 7
    %v2485 = vsub.s32 %v2482, %v2484
    %v2486 = vrot.slane %v2479, %v2485
    %v2487 = vcombine.low %v2462, %v2470
    %v2488 = vcombine.high %v2462, %v2470
    %v2490 = vunpack.c.l.s4 1934713408
    %v2491 = vunpack.c.0.s8 %v2490
    %v2492 = vlaneseq
    %v2493 = vshrl.u32 %v2492, 7
    %v2494 = vsub.s32 %v2491, %v2493
    %v2495 = vrot.slane %v2487, %v2494
    %v2497 = vunpack.c.l.s4 1934713408
    %v2498 = vunpack.c.0.s8 %v2497
    %v2499 = vlaneseq
    %v2500 = vshrl.u32 %v2499, 7
    %v2501 = vsub.s32 %v2498, %v2500
    %v2502 = vrot.slane %v2488, %v2501
    %v2503 = vcombine.low %v2478, %v2486
    %v2504 = vcombine.high %v2478, %v2486
    %v2506 = vunpack.c.l.s4 1934713408
    %v2507 = vunpack.c.0.s8 %v2506
    %v2508 = vlaneseq
    %v2509 = vshrl.u32 %v2508, 7
    %v2510 = vsub.s32 %v2507, %v2509
    %v2511 = vrot.slane %v2503, %v2510
    %v2513 = vunpack.c.l.s4 1934713408
    %v2514 = vunpack.c.0.s8 %v2513
    %v2515 = vlaneseq
    %v2516 = vshrl.u32 %v2515, 7
    %v2517 = vsub.s32 %v2514, %v2516
    %v2518 = vrot.slane %v2504, %v2517
    %v2519 = vcombine.low %v2495, %v2511
    %v2520 = vcombine.high %v2495, %v2511
    %v2521 = vcombine.low %v2502, %v2518
    %v2522 = vcombine.high %v2502, %v2518
    %v2523 = vcombine.low %v2427, %v2434
    %v2525 = vunpack.c.l.s4 1983009808
    %v2526 = vunpack.c.0.s8 %v2525
    %v2527 = vlaneseq
    %v2528 = vshrl.u32 %v2527, 7
    %v2529 = vsub.s32 %v2526, %v2528
    %v2530 = vrot.slane %v2523, %v2529
    %v2531 = vcombine.low %v2451, %v2452
    %v2533 = vunpack.c.l.s4 1983009808
    %v2534 = vunpack.c.0.s8 %v2533
    %v2535 = vlaneseq
    %v2536 = vshrl.u32 %v2535, 7
    %v2537 = vsub.s32 %v2534, %v2536
    %v2538 = vrot.slane %v2531, %v2537
    %v2539 = vcombine.low %v2443, %v2450
    %v2541 = vunpack.c.l.s4 1983009808
    %v2542 = vunpack.c.0.s8 %v2541
    %v2543 = vlaneseq
    %v2544 = vshrl.u32 %v2543, 7
    %v2545 = vsub.s32 %v2542, %v2544
    %v2546 = vrot.slane %v2539, %v2545
    %v2547 = vcombine.low %v2453, %v2454
    %v2549 = vunpack.c.l.s4 1983009808
    %v2550 = vunpack.c.0.s8 %v2549
    %v2551 = vlaneseq
    %v2552 = vshrl.u32 %v2551, 7
    %v2553 = vsub.s32 %v2550, %v2552
    %v2554 = vrot.slane %v2547, %v2553
    %v2555 = vcombine.low %v2530, %v2538
    %v2556 = vcombine.high %v2530, %v2538
    %v2558 = vunpack.c.l.s4 1934713408
    %v2559 = vunpack.c.0.s8 %v2558
    %v2560 = vlaneseq
    %v2561 = vshrl.u32 %v2560, 7
    %v2562 = vsub.s32 %v2559, %v2561
    %v2563 = vrot.slane %v2555, %v2562
    %v2565 = vunpack.c.l.s4 1934713408
    %v2566 = vunpack.c.0.s8 %v2565
    %v2567 = vlaneseq
    %v2568 = vshrl.u32 %v2567, 7
    %v2569 = vsub.s32 %v2566, %v2568
    %v2570 = vrot.slane %v2556, %v2569
    %v2571 = vcombine.low %v2546, %v2554
    %v2572 = vcombine.high %v2546, %v2554
    %v2574 = vunpack.c.l.s4 1934713408
    %v2575 = vunpack.c.0.s8 %v2574
    %v2576 = vlaneseq
    %v2577 = vshrl.u32 %v2576, 7
    %v2578 = vsub.s32 %v2575, %v2577
    %v2579 = vrot.slane %v2571, %v2578
    %v2581 = vunpack.c.l.s4 1934713408
    %v2582 = vunpack.c.0.s8 %v2581
    %v2583 = vlaneseq
    %v2584 = vshrl.u32 %v2583, 7
    %v2585 = vsub.s32 %v2582, %v2584
    %v2586 = vrot.slane %v2572, %v2585
    %v2587 = vcombine.low %v2563, %v2579
    %v2588 = vcombine.high %v2563, %v2579
    %v2589 = vcombine.low %v2570, %v2586
    %v2590 = vcombine.high %v2570, %v2586
    %2593 = vrot.lane.b32.xlu0 %v2520, 8
    %v2594 = vpop.permute.xlu0 %2593
    %2595 = vrot.lane.b32.xlu0 %v2588, 8
    %v2596 = vpop.permute.xlu0 %2595
    %2601 = vrot.lane.b32.xlu0 %v2521, 16
    %v2602 = vpop.permute.xlu0 %2601
    %2603 = vrot.lane.b32.xlu0 %v2589, 16
    %v2604 = vpop.permute.xlu0 %2603
    %2609 = vrot.lane.b32.xlu0 %v2522, 24
    %v2610 = vpop.permute.xlu0 %2609
    %2611 = vrot.lane.b32.xlu0 %v2590, 24
    %v2612 = vpop.permute.xlu0 %2611
    %v2615 = vsel %vm1030, %v2519, %v2594
    %v2616 = vsel %vm1030, %v2587, %v2596
    %vm2617 = vcmask 130048
    %v2618 = vsel %vm2617, %v2615, %v2602
    %v2619 = vsel %vm2617, %v2616, %v2604
    %vm2620 = vcmask 195584
    %v2621 = vsel %vm2620, %v2618, %v2610
    %v2622 = vsel %vm2620, %v2619, %v2612
    %2627 = vrot.lane.b32.xlu0 %v42, 32
    %v2628 = vpop.permute.xlu0 %2627
    %2629 = vrot.lane.b32.xlu0 %v43, 32
    %v2630 = vpop.permute.xlu0 %2629
    %2631 = vrot.lane.b32.xlu0 %v44, 32
    %v2632 = vpop.permute.xlu0 %2631
    %2633 = vrot.lane.b32.xlu0 %v45, 32
    %v2634 = vpop.permute.xlu0 %2633
    %2640 = vrot.lane.b32.xlu0 %v63, 32
    %v2641 = vpop.permute.xlu0 %2640
    %v2644 = vsel %vm64, %v2621, 0
    %v2647 = vsel %vm64, %v2622, 0
    %2649 = vmatprep.subr.mxu0 0.0
    %2650 = vmatpush1.msra.mxu0 0.0
    %2651 = vmatprep.subr.mxu0 0.0
    %2652 = vmatpush1.msra.mxu0 0.0
    %2653 = vmatprep.subr.mxu0 0.0
    %2654 = vmatpush1.msra.mxu0 0.0
    %2655 = vmatprep.subr.mxu0 0.0
    %2656 = vmatpush1.msra.mxu0 0.0
    %2657 = vmatprep.subr.mxu0 0.0
    %2658 = vmatpush1.msra.mxu0 0.0
    %2659 = vmatprep.subr.mxu0 0.0
    %2660 = vmatpush1.msra.mxu0 0.0
    %2661 = vmatprep.subr.mxu0 0.0
    %2662 = vmatpush1.msra.mxu0 0.0
    %2663 = vmatprep.subr.mxu0 0.0
    %2664 = vmatpush1.msra.mxu0 0.0
    %2665 = vmatprep.subr.mxu0 0.0
    %2666 = vmatpush1.msra.mxu0 0.0
    %2667 = vmatprep.subr.mxu0 0.0
    %2668 = vmatpush1.msra.mxu0 0.0
    %2669 = vmatprep.subr.mxu0 0.0
    %2670 = vmatpush1.msra.mxu0 0.0
    %2671 = vmatprep.subr.mxu0 0.0
    %2672 = vmatpush1.msra.mxu0 0.0
    %2673 = vmatprep.subr.mxu0 0.0
    %2674 = vmatpush1.msra.mxu0 %v2634
    %2675 = vmatprep.subr.mxu0 0.0
    %2676 = vmatpush1.msra.mxu0 %v2632
    %2677 = vmatprep.subr.mxu0 0.0
    %2678 = vmatpush1.msra.mxu0 %v2630
    %2679 = vmatprep.subr.mxu0 0.0
    %2680 = vmatpush1.msra.mxu0 %v2628
    %2681 = vmatprep.subr.mxu0 0.0
    %2682 = vmatpush2.msra.mxu0 0.0
    %2683 = vmatprep.subr.mxu0 0.0
    %2684 = vmatpush2.msra.mxu0 0.0
    %2685 = vmatprep.subr.mxu0 0.0
    %2686 = vmatpush2.msra.mxu0 0.0
    %2687 = vmatprep.subr.mxu0 0.0
    %2688 = vmatpush2.msra.mxu0 0.0
    %2689 = vmatprep.subr.mxu0 0.0
    %2690 = vmatpush2.msra.mxu0 0.0
    %2691 = vmatprep.subr.mxu0 0.0
    %2692 = vmatpush2.msra.mxu0 0.0
    %2693 = vmatprep.subr.mxu0 0.0
    %2694 = vmatpush2.msra.mxu0 0.0
    %2695 = vmatprep.subr.mxu0 0.0
    %2696 = vmatpush2.msra.mxu0 0.0
    %2697 = vmatprep.subr.mxu0 0.0
    %2698 = vmatpush2.msra.mxu0 0.0
    %2699 = vmatprep.subr.mxu0 0.0
    %2700 = vmatpush2.msra.mxu0 0.0
    %2701 = vmatprep.subr.mxu0 0.0
    %2702 = vmatpush2.msra.mxu0 0.0
    %2703 = vmatprep.subr.mxu0 0.0
    %2704 = vmatpush2.msra.mxu0 0.0
    %2705 = vmatprep.subr.mxu0 0.0
    %2706 = vmatpush2.msra.mxu0 0.0
    %2707 = vmatprep.subr.mxu0 0.0
    %2708 = vmatpush2.msra.mxu0 0.0
    %2709 = vmatprep.subr.mxu0 0.0
    %2710 = vmatpush2.msra.mxu0 0.0
    %2711 = vmatprep.subr.mxu0 0.0
    %2712 = vmatpush2.msra.mxu0 0.0
    %2713 = vmatprep.mubr.f32.mxu0 0.0
    %2714 = vmatmul.mubr.f32.gmra.mxu0 %v2644
    %v2715 = vpop.f32.mrf.mxu0
    %v2716 = vadd.f32 %v2641, %v2715
    %v2717 = vpop.f32.mrf.mxu0
    %2718 = vmatprep.mubr.f32.mxu0 0.0
    %2719 = vmatmul.mubr.f32.gmra.mxu0 %v2647
    %v2720 = vpop.f32.mrf.mxu0
    %v2721 = vadd.f32 %v2641, %v2720
    %v2722 = vpop.f32.mrf.mxu0
    %2723 = vdwg.mxu0
    %v2724 = vadd.f32 %v40, %v2716
    %v2725 = vadd.f32 %v41, %v2721
    %v2726 = vsel %vm64, %v2724, 0.0
    %2727 = vadd.xlane.f32.xlu0 %v2726
    %v2728 = vpop.xlane.xlu0 %2727
    %v2729 = vsel %vm64, %v2725, 0.0
    %2730 = vadd.xlane.f32.xlu0 %v2729
    %v2731 = vpop.xlane.xlu0 %2730
    %v2732 = vrcp.pop 32.0
    %v2733 = vmul.f32 %v2728, %v2732
    %v2734 = vmul.f32 %v2731, %v2732
    %v2735 = vsub.f32 %v2724, %v2733
    %v2736 = vsub.f32 %v2725, %v2734
    %v2737 = vmul.f32 %v2735, %v2735
    %v2738 = vmul.f32 %v2736, %v2736
    %v2739 = vsel %vm64, %v2737, 0.0
    %2740 = vadd.xlane.f32.xlu0 %v2739
    %v2741 = vpop.xlane.xlu0 %2740
    %v2742 = vsel %vm64, %v2738, 0.0
    %2743 = vadd.xlane.f32.xlu0 %v2742
    %v2744 = vpop.xlane.xlu0 %2743
    %v2745 = vmul.f32 %v2741, %v2732
    %v2746 = vmul.f32 %v2744, %v2732
    %v2747 = vadd.f32 %v2745, 1e-05
    %v2748 = vadd.f32 %v2746, 1e-05
    %v2749 = vrsqrt.pop %v2747
    %v2750 = vrsqrt.pop %v2748
    %v2751 = vmul.f32 %v2735, %v2749
    %v2752 = vmul.f32 %v2736, %v2750
    %v2753 = vlaneseq
    %v2754 = vshrl.u32 %v2753, 7
    %v2755 = vsub.s32 1, %v2754
    %v2756 = vrot.slane %v50, %v2755
    %v2757 = vmul.f32 %v2751, %v2756
    %v2758 = vmul.f32 %v2752, %v2756
    %2760 = vrot.lane.b32.xlu0 %v2756, 96
    %v2761 = vpop.permute.xlu0 %2760
    %v2763 = vadd.f32 %v2757, %v2761
    %v2764 = vadd.f32 %v2758, %v2761
    %2765 = vrot.lane.b32.xlu0 %v2756, 64
    %v2766 = vpop.permute.xlu0 %2765
    %v2769 = vsel %vm64, %v2763, 0
    %v2772 = vsel %vm64, %v2764, 0
    %2774 = vmatprep.subr.mxu0 0.0
    %2775 = vmatpush1.msra.mxu0 0.0
    %2776 = vmatprep.subr.mxu0 0.0
    %2777 = vmatpush1.msra.mxu0 0.0
    %2778 = vmatprep.subr.mxu0 0.0
    %2779 = vmatpush1.msra.mxu0 0.0
    %2780 = vmatprep.subr.mxu0 0.0
    %2781 = vmatpush1.msra.mxu0 0.0
    %2782 = vmatprep.subr.mxu0 0.0
    %2783 = vmatpush1.msra.mxu0 0.0
    %2784 = vmatprep.subr.mxu0 0.0
    %2785 = vmatpush1.msra.mxu0 0.0
    %2786 = vmatprep.subr.mxu0 0.0
    %2787 = vmatpush1.msra.mxu0 0.0
    %2788 = vmatprep.subr.mxu0 0.0
    %2789 = vmatpush1.msra.mxu0 0.0
    %2790 = vmatprep.subr.mxu0 0.0
    %2791 = vmatpush1.msra.mxu0 0.0
    %2792 = vmatprep.subr.mxu0 0.0
    %2793 = vmatpush1.msra.mxu0 0.0
    %2794 = vmatprep.subr.mxu0 0.0
    %2795 = vmatpush1.msra.mxu0 0.0
    %2796 = vmatprep.subr.mxu0 0.0
    %2797 = vmatpush1.msra.mxu0 0.0
    %2798 = vmatprep.subr.mxu0 0.0
    %2799 = vmatpush1.msra.mxu0 %v49
    %2800 = vmatprep.subr.mxu0 0.0
    %2801 = vmatpush1.msra.mxu0 %v48
    %2802 = vmatprep.subr.mxu0 0.0
    %2803 = vmatpush1.msra.mxu0 %v47
    %2804 = vmatprep.subr.mxu0 0.0
    %2805 = vmatpush1.msra.mxu0 %v46
    %2806 = vmatprep.subr.mxu0 0.0
    %2807 = vmatpush2.msra.mxu0 0.0
    %2808 = vmatprep.subr.mxu0 0.0
    %2809 = vmatpush2.msra.mxu0 0.0
    %2810 = vmatprep.subr.mxu0 0.0
    %2811 = vmatpush2.msra.mxu0 0.0
    %2812 = vmatprep.subr.mxu0 0.0
    %2813 = vmatpush2.msra.mxu0 0.0
    %2814 = vmatprep.subr.mxu0 0.0
    %2815 = vmatpush2.msra.mxu0 0.0
    %2816 = vmatprep.subr.mxu0 0.0
    %2817 = vmatpush2.msra.mxu0 0.0
    %2818 = vmatprep.subr.mxu0 0.0
    %2819 = vmatpush2.msra.mxu0 0.0
    %2820 = vmatprep.subr.mxu0 0.0
    %2821 = vmatpush2.msra.mxu0 0.0
    %2822 = vmatprep.subr.mxu0 0.0
    %2823 = vmatpush2.msra.mxu0 0.0
    %2824 = vmatprep.subr.mxu0 0.0
    %2825 = vmatpush2.msra.mxu0 0.0
    %2826 = vmatprep.subr.mxu0 0.0
    %2827 = vmatpush2.msra.mxu0 0.0
    %2828 = vmatprep.subr.mxu0 0.0
    %2829 = vmatpush2.msra.mxu0 0.0
    %2830 = vmatprep.subr.mxu0 0.0
    %2831 = vmatpush2.msra.mxu0 0.0
    %2832 = vmatprep.subr.mxu0 0.0
    %2833 = vmatpush2.msra.mxu0 0.0
    %2834 = vmatprep.subr.mxu0 0.0
    %2835 = vmatpush2.msra.mxu0 0.0
    %2836 = vmatprep.subr.mxu0 0.0
    %2837 = vmatpush2.msra.mxu0 0.0
    %2838 = vmatprep.mubr.f32.mxu0 0.0
    %2839 = vmatmul.mubr.f32.gmra.mxu0 %v2769
    %v2840 = vpop.f32.mrf.mxu0
    %v2841 = vadd.f32 %v2766, %v2840
    %v2842 = vpop.f32.mrf.mxu0
    %2843 = vmatprep.mubr.f32.mxu0 0.0
    %2844 = vmatmul.mubr.f32.gmra.mxu0 %v2772
    %v2845 = vpop.f32.mrf.mxu0
    %v2846 = vadd.f32 %v2766, %v2845
    %v2847 = vpop.f32.mrf.mxu0
    %2848 = vdwg.mxu0
    %v2849 = vmax.f32 %v2841, 0.0
    %v2850 = vmax.f32 %v2846, 0.0
    %2853 = vrot.lane.b32.xlu0 %v2849, 96
    %v2854 = vpop.permute.xlu0 %2853
    %2855 = vrot.lane.b32.xlu0 %v2850, 96
    %v2856 = vpop.permute.xlu0 %2855
    %2861 = vrot.lane.b32.xlu0 %v46, 32
    %v2862 = vpop.permute.xlu0 %2861
    %2863 = vrot.lane.b32.xlu0 %v47, 32
    %v2864 = vpop.permute.xlu0 %2863
    %2865 = vrot.lane.b32.xlu0 %v48, 32
    %v2866 = vpop.permute.xlu0 %2865
    %2867 = vrot.lane.b32.xlu0 %v49, 32
    %v2868 = vpop.permute.xlu0 %2867
    %v2873 = vsel %vm64, %v2854, 0
    %v2875 = vsel %vm64, %v2856, 0
    %2877 = vmatprep.subr.mxu0 0.0
    %2878 = vmatpush1.msra.mxu0 0.0
    %2879 = vmatprep.subr.mxu0 0.0
    %2880 = vmatpush1.msra.mxu0 0.0
    %2881 = vmatprep.subr.mxu0 0.0
    %2882 = vmatpush1.msra.mxu0 0.0
    %2883 = vmatprep.subr.mxu0 0.0
    %2884 = vmatpush1.msra.mxu0 0.0
    %2885 = vmatprep.subr.mxu0 0.0
    %2886 = vmatpush1.msra.mxu0 0.0
    %2887 = vmatprep.subr.mxu0 0.0
    %2888 = vmatpush1.msra.mxu0 0.0
    %2889 = vmatprep.subr.mxu0 0.0
    %2890 = vmatpush1.msra.mxu0 0.0
    %2891 = vmatprep.subr.mxu0 0.0
    %2892 = vmatpush1.msra.mxu0 0.0
    %2893 = vmatprep.subr.mxu0 0.0
    %2894 = vmatpush1.msra.mxu0 0.0
    %2895 = vmatprep.subr.mxu0 0.0
    %2896 = vmatpush1.msra.mxu0 0.0
    %2897 = vmatprep.subr.mxu0 0.0
    %2898 = vmatpush1.msra.mxu0 0.0
    %2899 = vmatprep.subr.mxu0 0.0
    %2900 = vmatpush1.msra.mxu0 0.0
    %2901 = vmatprep.subr.mxu0 0.0
    %2902 = vmatpush1.msra.mxu0 %v2868
    %2903 = vmatprep.subr.mxu0 0.0
    %2904 = vmatpush1.msra.mxu0 %v2866
    %2905 = vmatprep.subr.mxu0 0.0
    %2906 = vmatpush1.msra.mxu0 %v2864
    %2907 = vmatprep.subr.mxu0 0.0
    %2908 = vmatpush1.msra.mxu0 %v2862
    %2909 = vmatprep.subr.mxu0 0.0
    %2910 = vmatpush2.msra.mxu0 0.0
    %2911 = vmatprep.subr.mxu0 0.0
    %2912 = vmatpush2.msra.mxu0 0.0
    %2913 = vmatprep.subr.mxu0 0.0
    %2914 = vmatpush2.msra.mxu0 0.0
    %2915 = vmatprep.subr.mxu0 0.0
    %2916 = vmatpush2.msra.mxu0 0.0
    %2917 = vmatprep.subr.mxu0 0.0
    %2918 = vmatpush2.msra.mxu0 0.0
    %2919 = vmatprep.subr.mxu0 0.0
    %2920 = vmatpush2.msra.mxu0 0.0
    %2921 = vmatprep.subr.mxu0 0.0
    %2922 = vmatpush2.msra.mxu0 0.0
    %2923 = vmatprep.subr.mxu0 0.0
    %2924 = vmatpush2.msra.mxu0 0.0
    %2925 = vmatprep.subr.mxu0 0.0
    %2926 = vmatpush2.msra.mxu0 0.0
    %2927 = vmatprep.subr.mxu0 0.0
    %2928 = vmatpush2.msra.mxu0 0.0
    %2929 = vmatprep.subr.mxu0 0.0
    %2930 = vmatpush2.msra.mxu0 0.0
    %2931 = vmatprep.subr.mxu0 0.0
    %2932 = vmatpush2.msra.mxu0 0.0
    %2933 = vmatprep.subr.mxu0 0.0
    %2934 = vmatpush2.msra.mxu0 0.0
    %2935 = vmatprep.subr.mxu0 0.0
    %2936 = vmatpush2.msra.mxu0 0.0
    %2937 = vmatprep.subr.mxu0 0.0
    %2938 = vmatpush2.msra.mxu0 0.0
    %2939 = vmatprep.subr.mxu0 0.0
    %2940 = vmatpush2.msra.mxu0 0.0
    %2941 = vmatprep.mubr.f32.mxu0 0.0
    %2942 = vmatmul.mubr.f32.gmra.mxu0 %v2873
    %v2943 = vpop.f32.mrf.mxu0
    %v2944 = vadd.f32 0.0, %v2943
    %v2945 = vpop.f32.mrf.mxu0
    %2946 = vmatprep.mubr.f32.mxu0 0.0
    %2947 = vmatmul.mubr.f32.gmra.mxu0 %v2875
    %v2948 = vpop.f32.mrf.mxu0
    %v2949 = vadd.f32 0.0, %v2948
    %v2950 = vpop.f32.mrf.mxu0
    %2951 = vdwg.mxu0
    %2952 = vrot.lane.b32.xlu0 %v46, 64
    %v2953 = vpop.permute.xlu0 %2952
    %2954 = vrot.lane.b32.xlu0 %v47, 64
    %v2955 = vpop.permute.xlu0 %2954
    %2956 = vrot.lane.b32.xlu0 %v48, 64
    %v2957 = vpop.permute.xlu0 %2956
    %2958 = vrot.lane.b32.xlu0 %v49, 64
    %v2959 = vpop.permute.xlu0 %2958
    %v2964 = vsel %vm64, %v2849, 0
    %v2966 = vsel %vm64, %v2850, 0
    %2968 = vmatprep.subr.mxu0 0.0
    %2969 = vmatpush1.msra.mxu0 0.0
    %2970 = vmatprep.subr.mxu0 0.0
    %2971 = vmatpush1.msra.mxu0 0.0
    %2972 = vmatprep.subr.mxu0 0.0
    %2973 = vmatpush1.msra.mxu0 0.0
    %2974 = vmatprep.subr.mxu0 0.0
    %2975 = vmatpush1.msra.mxu0 0.0
    %2976 = vmatprep.subr.mxu0 0.0
    %2977 = vmatpush1.msra.mxu0 0.0
    %2978 = vmatprep.subr.mxu0 0.0
    %2979 = vmatpush1.msra.mxu0 0.0
    %2980 = vmatprep.subr.mxu0 0.0
    %2981 = vmatpush1.msra.mxu0 0.0
    %2982 = vmatprep.subr.mxu0 0.0
    %2983 = vmatpush1.msra.mxu0 0.0
    %2984 = vmatprep.subr.mxu0 0.0
    %2985 = vmatpush1.msra.mxu0 0.0
    %2986 = vmatprep.subr.mxu0 0.0
    %2987 = vmatpush1.msra.mxu0 0.0
    %2988 = vmatprep.subr.mxu0 0.0
    %2989 = vmatpush1.msra.mxu0 0.0
    %2990 = vmatprep.subr.mxu0 0.0
    %2991 = vmatpush1.msra.mxu0 0.0
    %2992 = vmatprep.subr.mxu0 0.0
    %2993 = vmatpush1.msra.mxu0 %v2959
    %2994 = vmatprep.subr.mxu0 0.0
    %2995 = vmatpush1.msra.mxu0 %v2957
    %2996 = vmatprep.subr.mxu0 0.0
    %2997 = vmatpush1.msra.mxu0 %v2955
    %2998 = vmatprep.subr.mxu0 0.0
    %2999 = vmatpush1.msra.mxu0 %v2953
    %3000 = vmatprep.subr.mxu0 0.0
    %3001 = vmatpush2.msra.mxu0 0.0
    %3002 = vmatprep.subr.mxu0 0.0
    %3003 = vmatpush2.msra.mxu0 0.0
    %3004 = vmatprep.subr.mxu0 0.0
    %3005 = vmatpush2.msra.mxu0 0.0
    %3006 = vmatprep.subr.mxu0 0.0
    %3007 = vmatpush2.msra.mxu0 0.0
    %3008 = vmatprep.subr.mxu0 0.0
    %3009 = vmatpush2.msra.mxu0 0.0
    %3010 = vmatprep.subr.mxu0 0.0
    %3011 = vmatpush2.msra.mxu0 0.0
    %3012 = vmatprep.subr.mxu0 0.0
    %3013 = vmatpush2.msra.mxu0 0.0
    %3014 = vmatprep.subr.mxu0 0.0
    %3015 = vmatpush2.msra.mxu0 0.0
    %3016 = vmatprep.subr.mxu0 0.0
    %3017 = vmatpush2.msra.mxu0 0.0
    %3018 = vmatprep.subr.mxu0 0.0
    %3019 = vmatpush2.msra.mxu0 0.0
    %3020 = vmatprep.subr.mxu0 0.0
    %3021 = vmatpush2.msra.mxu0 0.0
    %3022 = vmatprep.subr.mxu0 0.0
    %3023 = vmatpush2.msra.mxu0 0.0
    %3024 = vmatprep.subr.mxu0 0.0
    %3025 = vmatpush2.msra.mxu0 0.0
    %3026 = vmatprep.subr.mxu0 0.0
    %3027 = vmatpush2.msra.mxu0 0.0
    %3028 = vmatprep.subr.mxu0 0.0
    %3029 = vmatpush2.msra.mxu0 0.0
    %3030 = vmatprep.subr.mxu0 0.0
    %3031 = vmatpush2.msra.mxu0 0.0
    %3032 = vmatprep.mubr.f32.mxu0 0.0
    %3033 = vmatmul.mubr.f32.gmra.mxu0 %v2964
    %v3034 = vpop.f32.mrf.mxu0
    %v3035 = vadd.f32 %v2944, %v3034
    %v3036 = vpop.f32.mrf.mxu0
    %3037 = vmatprep.mubr.f32.mxu0 0.0
    %3038 = vmatmul.mubr.f32.gmra.mxu0 %v2966
    %v3039 = vpop.f32.mrf.mxu0
    %v3040 = vadd.f32 %v2949, %v3039
    %v3041 = vpop.f32.mrf.mxu0
    %3042 = vdwg.mxu0
    %v3043 = vlaneseq
    %v3044 = vshrl.u32 %v3043, 7
    %v3045 = vsub.s32 2, %v3044
    %v3046 = vrot.slane %v50, %v3045
    %v3047 = vadd.f32 %v3035, %v3046
    %v3048 = vadd.f32 %v3040, %v3046
    %v3049 = vadd.f32 %v2763, %v3047
    %v3050 = vadd.f32 %v2764, %v3048
    %v3051 = vsel %vm64, %v3049, 0.0
    %3052 = vadd.xlane.f32.xlu0 %v3051
    %v3053 = vpop.xlane.xlu0 %3052
    %v3054 = vsel %vm64, %v3050, 0.0
    %3055 = vadd.xlane.f32.xlu0 %v3054
    %v3056 = vpop.xlane.xlu0 %3055
    %v3057 = vmul.f32 %v3053, %v2732
    %v3058 = vmul.f32 %v3056, %v2732
    %v3059 = vsub.f32 %v3049, %v3057
    %v3060 = vsub.f32 %v3050, %v3058
    %v3061 = vmul.f32 %v3059, %v3059
    %v3062 = vmul.f32 %v3060, %v3060
    %v3063 = vsel %vm64, %v3061, 0.0
    %3064 = vadd.xlane.f32.xlu0 %v3063
    %v3065 = vpop.xlane.xlu0 %3064
    %v3066 = vsel %vm64, %v3062, 0.0
    %3067 = vadd.xlane.f32.xlu0 %v3066
    %v3068 = vpop.xlane.xlu0 %3067
    %v3069 = vmul.f32 %v3065, %v2732
    %v3070 = vmul.f32 %v3068, %v2732
    %v3071 = vadd.f32 %v3069, 1e-05
    %v3072 = vadd.f32 %v3070, 1e-05
    %v3073 = vrsqrt.pop %v3071
    %v3074 = vrsqrt.pop %v3072
    %v3075 = vmul.f32 %v3059, %v3073
    %v3076 = vmul.f32 %v3060, %v3074
    %3078 = vrot.lane.b32.xlu0 %v3046, 96
    %v3079 = vpop.permute.xlu0 %3078
    %v3081 = vmul.f32 %v3075, %v3079
    %v3082 = vmul.f32 %v3076, %v3079
    %3083 = vrot.lane.b32.xlu0 %v3046, 64
    %v3084 = vpop.permute.xlu0 %3083
    %v3086 = vadd.f32 %v3081, %v3084
    %v3087 = vadd.f32 %v3082, %v3084
    %v3088 = vlaneseq
    %v3089 = vshrl.u32 %v3088, 7
    %v3090 = vsub.s32 0, %v3089
    %v3091 = vrot.slane %v59, %v3090
    %v3093 = vsel %vm64, %v3086, 0
    %v3096 = vsel %vm64, %v3087, 0
    %3098 = vmatprep.subr.mxu0 0.0
    %3099 = vmatpush1.msra.mxu0 0.0
    %3100 = vmatprep.subr.mxu0 0.0
    %3101 = vmatpush1.msra.mxu0 0.0
    %3102 = vmatprep.subr.mxu0 0.0
    %3103 = vmatpush1.msra.mxu0 0.0
    %3104 = vmatprep.subr.mxu0 0.0
    %3105 = vmatpush1.msra.mxu0 0.0
    %3106 = vmatprep.subr.mxu0 0.0
    %3107 = vmatpush1.msra.mxu0 0.0
    %3108 = vmatprep.subr.mxu0 0.0
    %3109 = vmatpush1.msra.mxu0 0.0
    %3110 = vmatprep.subr.mxu0 0.0
    %3111 = vmatpush1.msra.mxu0 0.0
    %3112 = vmatprep.subr.mxu0 0.0
    %3113 = vmatpush1.msra.mxu0 0.0
    %3114 = vmatprep.subr.mxu0 0.0
    %3115 = vmatpush1.msra.mxu0 0.0
    %3116 = vmatprep.subr.mxu0 0.0
    %3117 = vmatpush1.msra.mxu0 0.0
    %3118 = vmatprep.subr.mxu0 0.0
    %3119 = vmatpush1.msra.mxu0 0.0
    %3120 = vmatprep.subr.mxu0 0.0
    %3121 = vmatpush1.msra.mxu0 0.0
    %3122 = vmatprep.subr.mxu0 0.0
    %3123 = vmatpush1.msra.mxu0 %v54
    %3124 = vmatprep.subr.mxu0 0.0
    %3125 = vmatpush1.msra.mxu0 %v53
    %3126 = vmatprep.subr.mxu0 0.0
    %3127 = vmatpush1.msra.mxu0 %v52
    %3128 = vmatprep.subr.mxu0 0.0
    %3129 = vmatpush1.msra.mxu0 %v51
    %3130 = vmatprep.subr.mxu0 0.0
    %3131 = vmatpush2.msra.mxu0 0.0
    %3132 = vmatprep.subr.mxu0 0.0
    %3133 = vmatpush2.msra.mxu0 0.0
    %3134 = vmatprep.subr.mxu0 0.0
    %3135 = vmatpush2.msra.mxu0 0.0
    %3136 = vmatprep.subr.mxu0 0.0
    %3137 = vmatpush2.msra.mxu0 0.0
    %3138 = vmatprep.subr.mxu0 0.0
    %3139 = vmatpush2.msra.mxu0 0.0
    %3140 = vmatprep.subr.mxu0 0.0
    %3141 = vmatpush2.msra.mxu0 0.0
    %3142 = vmatprep.subr.mxu0 0.0
    %3143 = vmatpush2.msra.mxu0 0.0
    %3144 = vmatprep.subr.mxu0 0.0
    %3145 = vmatpush2.msra.mxu0 0.0
    %3146 = vmatprep.subr.mxu0 0.0
    %3147 = vmatpush2.msra.mxu0 0.0
    %3148 = vmatprep.subr.mxu0 0.0
    %3149 = vmatpush2.msra.mxu0 0.0
    %3150 = vmatprep.subr.mxu0 0.0
    %3151 = vmatpush2.msra.mxu0 0.0
    %3152 = vmatprep.subr.mxu0 0.0
    %3153 = vmatpush2.msra.mxu0 0.0
    %3154 = vmatprep.subr.mxu0 0.0
    %3155 = vmatpush2.msra.mxu0 0.0
    %3156 = vmatprep.subr.mxu0 0.0
    %3157 = vmatpush2.msra.mxu0 0.0
    %3158 = vmatprep.subr.mxu0 0.0
    %3159 = vmatpush2.msra.mxu0 0.0
    %3160 = vmatprep.subr.mxu0 0.0
    %3161 = vmatpush2.msra.mxu0 0.0
    %3162 = vmatprep.mubr.f32.mxu0 0.0
    %3163 = vmatmul.mubr.f32.gmra.mxu0 %v3093
    %v3164 = vpop.f32.mrf.mxu0
    %v3165 = vadd.f32 %v3091, %v3164
    %v3166 = vpop.f32.mrf.mxu0
    %3167 = vmatprep.mubr.f32.mxu0 0.0
    %3168 = vmatmul.mubr.f32.gmra.mxu0 %v3096
    %v3169 = vpop.f32.mrf.mxu0
    %v3170 = vadd.f32 %v3091, %v3169
    %v3171 = vpop.f32.mrf.mxu0
    %3172 = vdwg.mxu0
    %3175 = vrot.lane.b32.xlu0 %v3165, 120
    %v3176 = vpop.permute.xlu0 %3175
    %3177 = vrot.lane.b32.xlu0 %v3170, 120
    %v3178 = vpop.permute.xlu0 %3177
    %3181 = vrot.lane.b32.xlu0 %v3165, 112
    %v3182 = vpop.permute.xlu0 %3181
    %3183 = vrot.lane.b32.xlu0 %v3170, 112
    %v3184 = vpop.permute.xlu0 %3183
    %3187 = vrot.lane.b32.xlu0 %v3165, 104
    %v3188 = vpop.permute.xlu0 %3187
    %3189 = vrot.lane.b32.xlu0 %v3170, 104
    %v3190 = vpop.permute.xlu0 %3189
    %v3193 = vcombine.low %v3165, %v3182
    %v3194 = vcombine.high %v3165, %v3182
    %v3196 = vunpack.c.l.s4 1983009808
    %v3197 = vunpack.c.0.s8 %v3196
    %v3198 = vlaneseq
    %v3199 = vshrl.u32 %v3198, 7
    %v3200 = vsub.s32 %v3197, %v3199
    %v3201 = vrot.slane %v3193, %v3200
    %v3203 = vunpack.c.l.s4 1983009808
    %v3204 = vunpack.c.0.s8 %v3203
    %v3205 = vlaneseq
    %v3206 = vshrl.u32 %v3205, 7
    %v3207 = vsub.s32 %v3204, %v3206
    %v3208 = vrot.slane %v3194, %v3207
    %v3209 = vcombine.low %v3176, %v3188
    %v3210 = vcombine.high %v3176, %v3188
    %v3212 = vunpack.c.l.s4 1983009808
    %v3213 = vunpack.c.0.s8 %v3212
    %v3214 = vlaneseq
    %v3215 = vshrl.u32 %v3214, 7
    %v3216 = vsub.s32 %v3213, %v3215
    %v3217 = vrot.slane %v3209, %v3216
    %v3219 = vunpack.c.l.s4 1983009808
    %v3220 = vunpack.c.0.s8 %v3219
    %v3221 = vlaneseq
    %v3222 = vshrl.u32 %v3221, 7
    %v3223 = vsub.s32 %v3220, %v3222
    %v3224 = vrot.slane %v3210, %v3223
    %v3225 = vcombine.low %v3201, %v3217
    %v3226 = vcombine.high %v3201, %v3217
    %v3228 = vunpack.c.l.s4 1934713408
    %v3229 = vunpack.c.0.s8 %v3228
    %v3230 = vlaneseq
    %v3231 = vshrl.u32 %v3230, 7
    %v3232 = vsub.s32 %v3229, %v3231
    %v3233 = vrot.slane %v3225, %v3232
    %v3235 = vunpack.c.l.s4 1934713408
    %v3236 = vunpack.c.0.s8 %v3235
    %v3237 = vlaneseq
    %v3238 = vshrl.u32 %v3237, 7
    %v3239 = vsub.s32 %v3236, %v3238
    %v3240 = vrot.slane %v3226, %v3239
    %v3241 = vcombine.low %v3208, %v3224
    %v3242 = vcombine.high %v3208, %v3224
    %v3244 = vunpack.c.l.s4 1934713408
    %v3245 = vunpack.c.0.s8 %v3244
    %v3246 = vlaneseq
    %v3247 = vshrl.u32 %v3246, 7
    %v3248 = vsub.s32 %v3245, %v3247
    %v3249 = vrot.slane %v3241, %v3248
    %v3251 = vunpack.c.l.s4 1934713408
    %v3252 = vunpack.c.0.s8 %v3251
    %v3253 = vlaneseq
    %v3254 = vshrl.u32 %v3253, 7
    %v3255 = vsub.s32 %v3252, %v3254
    %v3256 = vrot.slane %v3242, %v3255
    %v3257 = vcombine.high %v3233, 0.0
    %v3258 = vcombine.high %v3240, 0.0
    %v3259 = vcombine.high %v3249, 0.0
    %v3260 = vcombine.high %v3256, 0.0
    %v3261 = vcombine.low %v3170, %v3184
    %v3262 = vcombine.high %v3170, %v3184
    %v3264 = vunpack.c.l.s4 1983009808
    %v3265 = vunpack.c.0.s8 %v3264
    %v3266 = vlaneseq
    %v3267 = vshrl.u32 %v3266, 7
    %v3268 = vsub.s32 %v3265, %v3267
    %v3269 = vrot.slane %v3261, %v3268
    %v3271 = vunpack.c.l.s4 1983009808
    %v3272 = vunpack.c.0.s8 %v3271
    %v3273 = vlaneseq
    %v3274 = vshrl.u32 %v3273, 7
    %v3275 = vsub.s32 %v3272, %v3274
    %v3276 = vrot.slane %v3262, %v3275
    %v3277 = vcombine.low %v3178, %v3190
    %v3278 = vcombine.high %v3178, %v3190
    %v3280 = vunpack.c.l.s4 1983009808
    %v3281 = vunpack.c.0.s8 %v3280
    %v3282 = vlaneseq
    %v3283 = vshrl.u32 %v3282, 7
    %v3284 = vsub.s32 %v3281, %v3283
    %v3285 = vrot.slane %v3277, %v3284
    %v3287 = vunpack.c.l.s4 1983009808
    %v3288 = vunpack.c.0.s8 %v3287
    %v3289 = vlaneseq
    %v3290 = vshrl.u32 %v3289, 7
    %v3291 = vsub.s32 %v3288, %v3290
    %v3292 = vrot.slane %v3278, %v3291
    %v3293 = vcombine.low %v3269, %v3285
    %v3294 = vcombine.high %v3269, %v3285
    %v3296 = vunpack.c.l.s4 1934713408
    %v3297 = vunpack.c.0.s8 %v3296
    %v3298 = vlaneseq
    %v3299 = vshrl.u32 %v3298, 7
    %v3300 = vsub.s32 %v3297, %v3299
    %v3301 = vrot.slane %v3293, %v3300
    %v3303 = vunpack.c.l.s4 1934713408
    %v3304 = vunpack.c.0.s8 %v3303
    %v3305 = vlaneseq
    %v3306 = vshrl.u32 %v3305, 7
    %v3307 = vsub.s32 %v3304, %v3306
    %v3308 = vrot.slane %v3294, %v3307
    %v3309 = vcombine.low %v3276, %v3292
    %v3310 = vcombine.high %v3276, %v3292
    %v3312 = vunpack.c.l.s4 1934713408
    %v3313 = vunpack.c.0.s8 %v3312
    %v3314 = vlaneseq
    %v3315 = vshrl.u32 %v3314, 7
    %v3316 = vsub.s32 %v3313, %v3315
    %v3317 = vrot.slane %v3309, %v3316
    %v3319 = vunpack.c.l.s4 1934713408
    %v3320 = vunpack.c.0.s8 %v3319
    %v3321 = vlaneseq
    %v3322 = vshrl.u32 %v3321, 7
    %v3323 = vsub.s32 %v3320, %v3322
    %v3324 = vrot.slane %v3310, %v3323
    %v3325 = vcombine.high %v3301, 0.0
    %v3326 = vcombine.high %v3308, 0.0
    %v3327 = vcombine.high %v3317, 0.0
    %v3328 = vcombine.high %v3324, 0.0
    %v3329 = vcombine.low %v3233, %v3240
    %v3331 = vunpack.c.l.s4 1983009808
    %v3332 = vunpack.c.0.s8 %v3331
    %v3333 = vlaneseq
    %v3334 = vshrl.u32 %v3333, 7
    %v3335 = vsub.s32 %v3332, %v3334
    %v3336 = vrot.slane %v3329, %v3335
    %v3337 = vcombine.low %v3257, %v3258
    %v3339 = vunpack.c.l.s4 1983009808
    %v3340 = vunpack.c.0.s8 %v3339
    %v3341 = vlaneseq
    %v3342 = vshrl.u32 %v3341, 7
    %v3343 = vsub.s32 %v3340, %v3342
    %v3344 = vrot.slane %v3337, %v3343
    %v3345 = vcombine.low %v3249, %v3256
    %v3347 = vunpack.c.l.s4 1983009808
    %v3348 = vunpack.c.0.s8 %v3347
    %v3349 = vlaneseq
    %v3350 = vshrl.u32 %v3349, 7
    %v3351 = vsub.s32 %v3348, %v3350
    %v3352 = vrot.slane %v3345, %v3351
    %v3353 = vcombine.low %v3259, %v3260
    %v3355 = vunpack.c.l.s4 1983009808
    %v3356 = vunpack.c.0.s8 %v3355
    %v3357 = vlaneseq
    %v3358 = vshrl.u32 %v3357, 7
    %v3359 = vsub.s32 %v3356, %v3358
    %v3360 = vrot.slane %v3353, %v3359
    %v3361 = vcombine.low %v3336, %v3344
    %v3362 = vcombine.high %v3336, %v3344
    %v3364 = vunpack.c.l.s4 1934713408
    %v3365 = vunpack.c.0.s8 %v3364
    %v3366 = vlaneseq
    %v3367 = vshrl.u32 %v3366, 7
    %v3368 = vsub.s32 %v3365, %v3367
    %v3369 = vrot.slane %v3361, %v3368
    %v3371 = vunpack.c.l.s4 1934713408
    %v3372 = vunpack.c.0.s8 %v3371
    %v3373 = vlaneseq
    %v3374 = vshrl.u32 %v3373, 7
    %v3375 = vsub.s32 %v3372, %v3374
    %v3376 = vrot.slane %v3362, %v3375
    %v3377 = vcombine.low %v3352, %v3360
    %v3378 = vcombine.high %v3352, %v3360
    %v3380 = vunpack.c.l.s4 1934713408
    %v3381 = vunpack.c.0.s8 %v3380
    %v3382 = vlaneseq
    %v3383 = vshrl.u32 %v3382, 7
    %v3384 = vsub.s32 %v3381, %v3383
    %v3385 = vrot.slane %v3377, %v3384
    %v3387 = vunpack.c.l.s4 1934713408
    %v3388 = vunpack.c.0.s8 %v3387
    %v3389 = vlaneseq
    %v3390 = vshrl.u32 %v3389, 7
    %v3391 = vsub.s32 %v3388, %v3390
    %v3392 = vrot.slane %v3378, %v3391
    %v3393 = vcombine.low %v3369, %v3385
    %v3394 = vcombine.high %v3369, %v3385
    %v3395 = vcombine.low %v3376, %v3392
    %v3396 = vcombine.high %v3376, %v3392
    %v3397 = vcombine.low %v3301, %v3308
    %v3399 = vunpack.c.l.s4 1983009808
    %v3400 = vunpack.c.0.s8 %v3399
    %v3401 = vlaneseq
    %v3402 = vshrl.u32 %v3401, 7
    %v3403 = vsub.s32 %v3400, %v3402
    %v3404 = vrot.slane %v3397, %v3403
    %v3405 = vcombine.low %v3325, %v3326
    %v3407 = vunpack.c.l.s4 1983009808
    %v3408 = vunpack.c.0.s8 %v3407
    %v3409 = vlaneseq
    %v3410 = vshrl.u32 %v3409, 7
    %v3411 = vsub.s32 %v3408, %v3410
    %v3412 = vrot.slane %v3405, %v3411
    %v3413 = vcombine.low %v3317, %v3324
    %v3415 = vunpack.c.l.s4 1983009808
    %v3416 = vunpack.c.0.s8 %v3415
    %v3417 = vlaneseq
    %v3418 = vshrl.u32 %v3417, 7
    %v3419 = vsub.s32 %v3416, %v3418
    %v3420 = vrot.slane %v3413, %v3419
    %v3421 = vcombine.low %v3327, %v3328
    %v3423 = vunpack.c.l.s4 1983009808
    %v3424 = vunpack.c.0.s8 %v3423
    %v3425 = vlaneseq
    %v3426 = vshrl.u32 %v3425, 7
    %v3427 = vsub.s32 %v3424, %v3426
    %v3428 = vrot.slane %v3421, %v3427
    %v3429 = vcombine.low %v3404, %v3412
    %v3430 = vcombine.high %v3404, %v3412
    %v3432 = vunpack.c.l.s4 1934713408
    %v3433 = vunpack.c.0.s8 %v3432
    %v3434 = vlaneseq
    %v3435 = vshrl.u32 %v3434, 7
    %v3436 = vsub.s32 %v3433, %v3435
    %v3437 = vrot.slane %v3429, %v3436
    %v3439 = vunpack.c.l.s4 1934713408
    %v3440 = vunpack.c.0.s8 %v3439
    %v3441 = vlaneseq
    %v3442 = vshrl.u32 %v3441, 7
    %v3443 = vsub.s32 %v3440, %v3442
    %v3444 = vrot.slane %v3430, %v3443
    %v3445 = vcombine.low %v3420, %v3428
    %v3446 = vcombine.high %v3420, %v3428
    %v3448 = vunpack.c.l.s4 1934713408
    %v3449 = vunpack.c.0.s8 %v3448
    %v3450 = vlaneseq
    %v3451 = vshrl.u32 %v3450, 7
    %v3452 = vsub.s32 %v3449, %v3451
    %v3453 = vrot.slane %v3445, %v3452
    %v3455 = vunpack.c.l.s4 1934713408
    %v3456 = vunpack.c.0.s8 %v3455
    %v3457 = vlaneseq
    %v3458 = vshrl.u32 %v3457, 7
    %v3459 = vsub.s32 %v3456, %v3458
    %v3460 = vrot.slane %v3446, %v3459
    %v3461 = vcombine.low %v3437, %v3453
    %v3462 = vcombine.high %v3437, %v3453
    %v3463 = vcombine.low %v3444, %v3460
    %v3464 = vcombine.high %v3444, %v3460
    %3465 = vrot.lane.b32.xlu0 %v3165, 96
    %v3466 = vpop.permute.xlu0 %3465
    %3467 = vrot.lane.b32.xlu0 %v3170, 96
    %v3468 = vpop.permute.xlu0 %3467
    %3469 = vrot.lane.b32.xlu0 %v3176, 96
    %v3470 = vpop.permute.xlu0 %3469
    %3471 = vrot.lane.b32.xlu0 %v3178, 96
    %v3472 = vpop.permute.xlu0 %3471
    %3473 = vrot.lane.b32.xlu0 %v3182, 96
    %v3474 = vpop.permute.xlu0 %3473
    %3475 = vrot.lane.b32.xlu0 %v3184, 96
    %v3476 = vpop.permute.xlu0 %3475
    %3477 = vrot.lane.b32.xlu0 %v3188, 96
    %v3478 = vpop.permute.xlu0 %3477
    %3479 = vrot.lane.b32.xlu0 %v3190, 96
    %v3480 = vpop.permute.xlu0 %3479
    %v3489 = vcombine.low %v3466, %v3474
    %v3490 = vcombine.high %v3466, %v3474
    %v3492 = vunpack.c.l.s4 1983009808
    %v3493 = vunpack.c.0.s8 %v3492
    %v3494 = vlaneseq
    %v3495 = vshrl.u32 %v3494, 7
    %v3496 = vsub.s32 %v3493, %v3495
    %v3497 = vrot.slane %v3489, %v3496
    %v3499 = vunpack.c.l.s4 1983009808
    %v3500 = vunpack.c.0.s8 %v3499
    %v3501 = vlaneseq
    %v3502 = vshrl.u32 %v3501, 7
    %v3503 = vsub.s32 %v3500, %v3502
    %v3504 = vrot.slane %v3490, %v3503
    %v3505 = vcombine.low %v3470, %v3478
    %v3506 = vcombine.high %v3470, %v3478
    %v3508 = vunpack.c.l.s4 1983009808
    %v3509 = vunpack.c.0.s8 %v3508
    %v3510 = vlaneseq
    %v3511 = vshrl.u32 %v3510, 7
    %v3512 = vsub.s32 %v3509, %v3511
    %v3513 = vrot.slane %v3505, %v3512
    %v3515 = vunpack.c.l.s4 1983009808
    %v3516 = vunpack.c.0.s8 %v3515
    %v3517 = vlaneseq
    %v3518 = vshrl.u32 %v3517, 7
    %v3519 = vsub.s32 %v3516, %v3518
    %v3520 = vrot.slane %v3506, %v3519
    %v3521 = vcombine.low %v3497, %v3513
    %v3522 = vcombine.high %v3497, %v3513
    %v3524 = vunpack.c.l.s4 1934713408
    %v3525 = vunpack.c.0.s8 %v3524
    %v3526 = vlaneseq
    %v3527 = vshrl.u32 %v3526, 7
    %v3528 = vsub.s32 %v3525, %v3527
    %v3529 = vrot.slane %v3521, %v3528
    %v3531 = vunpack.c.l.s4 1934713408
    %v3532 = vunpack.c.0.s8 %v3531
    %v3533 = vlaneseq
    %v3534 = vshrl.u32 %v3533, 7
    %v3535 = vsub.s32 %v3532, %v3534
    %v3536 = vrot.slane %v3522, %v3535
    %v3537 = vcombine.low %v3504, %v3520
    %v3538 = vcombine.high %v3504, %v3520
    %v3540 = vunpack.c.l.s4 1934713408
    %v3541 = vunpack.c.0.s8 %v3540
    %v3542 = vlaneseq
    %v3543 = vshrl.u32 %v3542, 7
    %v3544 = vsub.s32 %v3541, %v3543
    %v3545 = vrot.slane %v3537, %v3544
    %v3547 = vunpack.c.l.s4 1934713408
    %v3548 = vunpack.c.0.s8 %v3547
    %v3549 = vlaneseq
    %v3550 = vshrl.u32 %v3549, 7
    %v3551 = vsub.s32 %v3548, %v3550
    %v3552 = vrot.slane %v3538, %v3551
    %v3553 = vcombine.high %v3529, 0.0
    %v3554 = vcombine.high %v3536, 0.0
    %v3555 = vcombine.high %v3545, 0.0
    %v3556 = vcombine.high %v3552, 0.0
    %v3557 = vcombine.low %v3468, %v3476
    %v3558 = vcombine.high %v3468, %v3476
    %v3560 = vunpack.c.l.s4 1983009808
    %v3561 = vunpack.c.0.s8 %v3560
    %v3562 = vlaneseq
    %v3563 = vshrl.u32 %v3562, 7
    %v3564 = vsub.s32 %v3561, %v3563
    %v3565 = vrot.slane %v3557, %v3564
    %v3567 = vunpack.c.l.s4 1983009808
    %v3568 = vunpack.c.0.s8 %v3567
    %v3569 = vlaneseq
    %v3570 = vshrl.u32 %v3569, 7
    %v3571 = vsub.s32 %v3568, %v3570
    %v3572 = vrot.slane %v3558, %v3571
    %v3573 = vcombine.low %v3472, %v3480
    %v3574 = vcombine.high %v3472, %v3480
    %v3576 = vunpack.c.l.s4 1983009808
    %v3577 = vunpack.c.0.s8 %v3576
    %v3578 = vlaneseq
    %v3579 = vshrl.u32 %v3578, 7
    %v3580 = vsub.s32 %v3577, %v3579
    %v3581 = vrot.slane %v3573, %v3580
    %v3583 = vunpack.c.l.s4 1983009808
    %v3584 = vunpack.c.0.s8 %v3583
    %v3585 = vlaneseq
    %v3586 = vshrl.u32 %v3585, 7
    %v3587 = vsub.s32 %v3584, %v3586
    %v3588 = vrot.slane %v3574, %v3587
    %v3589 = vcombine.low %v3565, %v3581
    %v3590 = vcombine.high %v3565, %v3581
    %v3592 = vunpack.c.l.s4 1934713408
    %v3593 = vunpack.c.0.s8 %v3592
    %v3594 = vlaneseq
    %v3595 = vshrl.u32 %v3594, 7
    %v3596 = vsub.s32 %v3593, %v3595
    %v3597 = vrot.slane %v3589, %v3596
    %v3599 = vunpack.c.l.s4 1934713408
    %v3600 = vunpack.c.0.s8 %v3599
    %v3601 = vlaneseq
    %v3602 = vshrl.u32 %v3601, 7
    %v3603 = vsub.s32 %v3600, %v3602
    %v3604 = vrot.slane %v3590, %v3603
    %v3605 = vcombine.low %v3572, %v3588
    %v3606 = vcombine.high %v3572, %v3588
    %v3608 = vunpack.c.l.s4 1934713408
    %v3609 = vunpack.c.0.s8 %v3608
    %v3610 = vlaneseq
    %v3611 = vshrl.u32 %v3610, 7
    %v3612 = vsub.s32 %v3609, %v3611
    %v3613 = vrot.slane %v3605, %v3612
    %v3615 = vunpack.c.l.s4 1934713408
    %v3616 = vunpack.c.0.s8 %v3615
    %v3617 = vlaneseq
    %v3618 = vshrl.u32 %v3617, 7
    %v3619 = vsub.s32 %v3616, %v3618
    %v3620 = vrot.slane %v3606, %v3619
    %v3621 = vcombine.high %v3597, 0.0
    %v3622 = vcombine.high %v3604, 0.0
    %v3623 = vcombine.high %v3613, 0.0
    %v3624 = vcombine.high %v3620, 0.0
    %v3625 = vcombine.low %v3529, %v3536
    %v3627 = vunpack.c.l.s4 1983009808
    %v3628 = vunpack.c.0.s8 %v3627
    %v3629 = vlaneseq
    %v3630 = vshrl.u32 %v3629, 7
    %v3631 = vsub.s32 %v3628, %v3630
    %v3632 = vrot.slane %v3625, %v3631
    %v3633 = vcombine.low %v3553, %v3554
    %v3635 = vunpack.c.l.s4 1983009808
    %v3636 = vunpack.c.0.s8 %v3635
    %v3637 = vlaneseq
    %v3638 = vshrl.u32 %v3637, 7
    %v3639 = vsub.s32 %v3636, %v3638
    %v3640 = vrot.slane %v3633, %v3639
    %v3641 = vcombine.low %v3545, %v3552
    %v3643 = vunpack.c.l.s4 1983009808
    %v3644 = vunpack.c.0.s8 %v3643
    %v3645 = vlaneseq
    %v3646 = vshrl.u32 %v3645, 7
    %v3647 = vsub.s32 %v3644, %v3646
    %v3648 = vrot.slane %v3641, %v3647
    %v3649 = vcombine.low %v3555, %v3556
    %v3651 = vunpack.c.l.s4 1983009808
    %v3652 = vunpack.c.0.s8 %v3651
    %v3653 = vlaneseq
    %v3654 = vshrl.u32 %v3653, 7
    %v3655 = vsub.s32 %v3652, %v3654
    %v3656 = vrot.slane %v3649, %v3655
    %v3657 = vcombine.low %v3632, %v3640
    %v3658 = vcombine.high %v3632, %v3640
    %v3660 = vunpack.c.l.s4 1934713408
    %v3661 = vunpack.c.0.s8 %v3660
    %v3662 = vlaneseq
    %v3663 = vshrl.u32 %v3662, 7
    %v3664 = vsub.s32 %v3661, %v3663
    %v3665 = vrot.slane %v3657, %v3664
    %v3667 = vunpack.c.l.s4 1934713408
    %v3668 = vunpack.c.0.s8 %v3667
    %v3669 = vlaneseq
    %v3670 = vshrl.u32 %v3669, 7
    %v3671 = vsub.s32 %v3668, %v3670
    %v3672 = vrot.slane %v3658, %v3671
    %v3673 = vcombine.low %v3648, %v3656
    %v3674 = vcombine.high %v3648, %v3656
    %v3676 = vunpack.c.l.s4 1934713408
    %v3677 = vunpack.c.0.s8 %v3676
    %v3678 = vlaneseq
    %v3679 = vshrl.u32 %v3678, 7
    %v3680 = vsub.s32 %v3677, %v3679
    %v3681 = vrot.slane %v3673, %v3680
    %v3683 = vunpack.c.l.s4 1934713408
    %v3684 = vunpack.c.0.s8 %v3683
    %v3685 = vlaneseq
    %v3686 = vshrl.u32 %v3685, 7
    %v3687 = vsub.s32 %v3684, %v3686
    %v3688 = vrot.slane %v3674, %v3687
    %v3689 = vcombine.low %v3665, %v3681
    %v3690 = vcombine.high %v3665, %v3681
    %v3691 = vcombine.low %v3672, %v3688
    %v3692 = vcombine.high %v3672, %v3688
    %v3693 = vcombine.low %v3597, %v3604
    %v3695 = vunpack.c.l.s4 1983009808
    %v3696 = vunpack.c.0.s8 %v3695
    %v3697 = vlaneseq
    %v3698 = vshrl.u32 %v3697, 7
    %v3699 = vsub.s32 %v3696, %v3698
    %v3700 = vrot.slane %v3693, %v3699
    %v3701 = vcombine.low %v3621, %v3622
    %v3703 = vunpack.c.l.s4 1983009808
    %v3704 = vunpack.c.0.s8 %v3703
    %v3705 = vlaneseq
    %v3706 = vshrl.u32 %v3705, 7
    %v3707 = vsub.s32 %v3704, %v3706
    %v3708 = vrot.slane %v3701, %v3707
    %v3709 = vcombine.low %v3613, %v3620
    %v3711 = vunpack.c.l.s4 1983009808
    %v3712 = vunpack.c.0.s8 %v3711
    %v3713 = vlaneseq
    %v3714 = vshrl.u32 %v3713, 7
    %v3715 = vsub.s32 %v3712, %v3714
    %v3716 = vrot.slane %v3709, %v3715
    %v3717 = vcombine.low %v3623, %v3624
    %v3719 = vunpack.c.l.s4 1983009808
    %v3720 = vunpack.c.0.s8 %v3719
    %v3721 = vlaneseq
    %v3722 = vshrl.u32 %v3721, 7
    %v3723 = vsub.s32 %v3720, %v3722
    %v3724 = vrot.slane %v3717, %v3723
    %v3725 = vcombine.low %v3700, %v3708
    %v3726 = vcombine.high %v3700, %v3708
    %v3728 = vunpack.c.l.s4 1934713408
    %v3729 = vunpack.c.0.s8 %v3728
    %v3730 = vlaneseq
    %v3731 = vshrl.u32 %v3730, 7
    %v3732 = vsub.s32 %v3729, %v3731
    %v3733 = vrot.slane %v3725, %v3732
    %v3735 = vunpack.c.l.s4 1934713408
    %v3736 = vunpack.c.0.s8 %v3735
    %v3737 = vlaneseq
    %v3738 = vshrl.u32 %v3737, 7
    %v3739 = vsub.s32 %v3736, %v3738
    %v3740 = vrot.slane %v3726, %v3739
    %v3741 = vcombine.low %v3716, %v3724
    %v3742 = vcombine.high %v3716, %v3724
    %v3744 = vunpack.c.l.s4 1934713408
    %v3745 = vunpack.c.0.s8 %v3744
    %v3746 = vlaneseq
    %v3747 = vshrl.u32 %v3746, 7
    %v3748 = vsub.s32 %v3745, %v3747
    %v3749 = vrot.slane %v3741, %v3748
    %v3751 = vunpack.c.l.s4 1934713408
    %v3752 = vunpack.c.0.s8 %v3751
    %v3753 = vlaneseq
    %v3754 = vshrl.u32 %v3753, 7
    %v3755 = vsub.s32 %v3752, %v3754
    %v3756 = vrot.slane %v3742, %v3755
    %v3757 = vcombine.low %v3733, %v3749
    %v3758 = vcombine.high %v3733, %v3749
    %v3759 = vcombine.low %v3740, %v3756
    %v3760 = vcombine.high %v3740, %v3756
    %3761 = vrot.lane.b32.xlu0 %v3165, 64
    %v3762 = vpop.permute.xlu0 %3761
    %3763 = vrot.lane.b32.xlu0 %v3170, 64
    %v3764 = vpop.permute.xlu0 %3763
    %3765 = vrot.lane.b32.xlu0 %v3176, 64
    %v3766 = vpop.permute.xlu0 %3765
    %3767 = vrot.lane.b32.xlu0 %v3178, 64
    %v3768 = vpop.permute.xlu0 %3767
    %3769 = vrot.lane.b32.xlu0 %v3182, 64
    %v3770 = vpop.permute.xlu0 %3769
    %3771 = vrot.lane.b32.xlu0 %v3184, 64
    %v3772 = vpop.permute.xlu0 %3771
    %3773 = vrot.lane.b32.xlu0 %v3188, 64
    %v3774 = vpop.permute.xlu0 %3773
    %3775 = vrot.lane.b32.xlu0 %v3190, 64
    %v3776 = vpop.permute.xlu0 %3775
    %v3785 = vcombine.low %v3762, %v3770
    %v3786 = vcombine.high %v3762, %v3770
    %v3788 = vunpack.c.l.s4 1983009808
    %v3789 = vunpack.c.0.s8 %v3788
    %v3790 = vlaneseq
    %v3791 = vshrl.u32 %v3790, 7
    %v3792 = vsub.s32 %v3789, %v3791
    %v3793 = vrot.slane %v3785, %v3792
    %v3795 = vunpack.c.l.s4 1983009808
    %v3796 = vunpack.c.0.s8 %v3795
    %v3797 = vlaneseq
    %v3798 = vshrl.u32 %v3797, 7
    %v3799 = vsub.s32 %v3796, %v3798
    %v3800 = vrot.slane %v3786, %v3799
    %v3801 = vcombine.low %v3766, %v3774
    %v3802 = vcombine.high %v3766, %v3774
    %v3804 = vunpack.c.l.s4 1983009808
    %v3805 = vunpack.c.0.s8 %v3804
    %v3806 = vlaneseq
    %v3807 = vshrl.u32 %v3806, 7
    %v3808 = vsub.s32 %v3805, %v3807
    %v3809 = vrot.slane %v3801, %v3808
    %v3811 = vunpack.c.l.s4 1983009808
    %v3812 = vunpack.c.0.s8 %v3811
    %v3813 = vlaneseq
    %v3814 = vshrl.u32 %v3813, 7
    %v3815 = vsub.s32 %v3812, %v3814
    %v3816 = vrot.slane %v3802, %v3815
    %v3817 = vcombine.low %v3793, %v3809
    %v3818 = vcombine.high %v3793, %v3809
    %v3820 = vunpack.c.l.s4 1934713408
    %v3821 = vunpack.c.0.s8 %v3820
    %v3822 = vlaneseq
    %v3823 = vshrl.u32 %v3822, 7
    %v3824 = vsub.s32 %v3821, %v3823
    %v3825 = vrot.slane %v3817, %v3824
    %v3827 = vunpack.c.l.s4 1934713408
    %v3828 = vunpack.c.0.s8 %v3827
    %v3829 = vlaneseq
    %v3830 = vshrl.u32 %v3829, 7
    %v3831 = vsub.s32 %v3828, %v3830
    %v3832 = vrot.slane %v3818, %v3831
    %v3833 = vcombine.low %v3800, %v3816
    %v3834 = vcombine.high %v3800, %v3816
    %v3836 = vunpack.c.l.s4 1934713408
    %v3837 = vunpack.c.0.s8 %v3836
    %v3838 = vlaneseq
    %v3839 = vshrl.u32 %v3838, 7
    %v3840 = vsub.s32 %v3837, %v3839
    %v3841 = vrot.slane %v3833, %v3840
    %v3843 = vunpack.c.l.s4 1934713408
    %v3844 = vunpack.c.0.s8 %v3843
    %v3845 = vlaneseq
    %v3846 = vshrl.u32 %v3845, 7
    %v3847 = vsub.s32 %v3844, %v3846
    %v3848 = vrot.slane %v3834, %v3847
    %v3849 = vcombine.high %v3825, 0.0
    %v3850 = vcombine.high %v3832, 0.0
    %v3851 = vcombine.high %v3841, 0.0
    %v3852 = vcombine.high %v3848, 0.0
    %v3853 = vcombine.low %v3764, %v3772
    %v3854 = vcombine.high %v3764, %v3772
    %v3856 = vunpack.c.l.s4 1983009808
    %v3857 = vunpack.c.0.s8 %v3856
    %v3858 = vlaneseq
    %v3859 = vshrl.u32 %v3858, 7
    %v3860 = vsub.s32 %v3857, %v3859
    %v3861 = vrot.slane %v3853, %v3860
    %v3863 = vunpack.c.l.s4 1983009808
    %v3864 = vunpack.c.0.s8 %v3863
    %v3865 = vlaneseq
    %v3866 = vshrl.u32 %v3865, 7
    %v3867 = vsub.s32 %v3864, %v3866
    %v3868 = vrot.slane %v3854, %v3867
    %v3869 = vcombine.low %v3768, %v3776
    %v3870 = vcombine.high %v3768, %v3776
    %v3872 = vunpack.c.l.s4 1983009808
    %v3873 = vunpack.c.0.s8 %v3872
    %v3874 = vlaneseq
    %v3875 = vshrl.u32 %v3874, 7
    %v3876 = vsub.s32 %v3873, %v3875
    %v3877 = vrot.slane %v3869, %v3876
    %v3879 = vunpack.c.l.s4 1983009808
    %v3880 = vunpack.c.0.s8 %v3879
    %v3881 = vlaneseq
    %v3882 = vshrl.u32 %v3881, 7
    %v3883 = vsub.s32 %v3880, %v3882
    %v3884 = vrot.slane %v3870, %v3883
    %v3885 = vcombine.low %v3861, %v3877
    %v3886 = vcombine.high %v3861, %v3877
    %v3888 = vunpack.c.l.s4 1934713408
    %v3889 = vunpack.c.0.s8 %v3888
    %v3890 = vlaneseq
    %v3891 = vshrl.u32 %v3890, 7
    %v3892 = vsub.s32 %v3889, %v3891
    %v3893 = vrot.slane %v3885, %v3892
    %v3895 = vunpack.c.l.s4 1934713408
    %v3896 = vunpack.c.0.s8 %v3895
    %v3897 = vlaneseq
    %v3898 = vshrl.u32 %v3897, 7
    %v3899 = vsub.s32 %v3896, %v3898
    %v3900 = vrot.slane %v3886, %v3899
    %v3901 = vcombine.low %v3868, %v3884
    %v3902 = vcombine.high %v3868, %v3884
    %v3904 = vunpack.c.l.s4 1934713408
    %v3905 = vunpack.c.0.s8 %v3904
    %v3906 = vlaneseq
    %v3907 = vshrl.u32 %v3906, 7
    %v3908 = vsub.s32 %v3905, %v3907
    %v3909 = vrot.slane %v3901, %v3908
    %v3911 = vunpack.c.l.s4 1934713408
    %v3912 = vunpack.c.0.s8 %v3911
    %v3913 = vlaneseq
    %v3914 = vshrl.u32 %v3913, 7
    %v3915 = vsub.s32 %v3912, %v3914
    %v3916 = vrot.slane %v3902, %v3915
    %v3917 = vcombine.high %v3893, 0.0
    %v3918 = vcombine.high %v3900, 0.0
    %v3919 = vcombine.high %v3909, 0.0
    %v3920 = vcombine.high %v3916, 0.0
    %v3921 = vcombine.low %v3825, %v3832
    %v3923 = vunpack.c.l.s4 1983009808
    %v3924 = vunpack.c.0.s8 %v3923
    %v3925 = vlaneseq
    %v3926 = vshrl.u32 %v3925, 7
    %v3927 = vsub.s32 %v3924, %v3926
    %v3928 = vrot.slane %v3921, %v3927
    %v3929 = vcombine.low %v3849, %v3850
    %v3931 = vunpack.c.l.s4 1983009808
    %v3932 = vunpack.c.0.s8 %v3931
    %v3933 = vlaneseq
    %v3934 = vshrl.u32 %v3933, 7
    %v3935 = vsub.s32 %v3932, %v3934
    %v3936 = vrot.slane %v3929, %v3935
    %v3937 = vcombine.low %v3841, %v3848
    %v3939 = vunpack.c.l.s4 1983009808
    %v3940 = vunpack.c.0.s8 %v3939
    %v3941 = vlaneseq
    %v3942 = vshrl.u32 %v3941, 7
    %v3943 = vsub.s32 %v3940, %v3942
    %v3944 = vrot.slane %v3937, %v3943
    %v3945 = vcombine.low %v3851, %v3852
    %v3947 = vunpack.c.l.s4 1983009808
    %v3948 = vunpack.c.0.s8 %v3947
    %v3949 = vlaneseq
    %v3950 = vshrl.u32 %v3949, 7
    %v3951 = vsub.s32 %v3948, %v3950
    %v3952 = vrot.slane %v3945, %v3951
    %v3953 = vcombine.low %v3928, %v3936
    %v3954 = vcombine.high %v3928, %v3936
    %v3956 = vunpack.c.l.s4 1934713408
    %v3957 = vunpack.c.0.s8 %v3956
    %v3958 = vlaneseq
    %v3959 = vshrl.u32 %v3958, 7
    %v3960 = vsub.s32 %v3957, %v3959
    %v3961 = vrot.slane %v3953, %v3960
    %v3963 = vunpack.c.l.s4 1934713408
    %v3964 = vunpack.c.0.s8 %v3963
    %v3965 = vlaneseq
    %v3966 = vshrl.u32 %v3965, 7
    %v3967 = vsub.s32 %v3964, %v3966
    %v3968 = vrot.slane %v3954, %v3967
    %v3969 = vcombine.low %v3944, %v3952
    %v3970 = vcombine.high %v3944, %v3952
    %v3972 = vunpack.c.l.s4 1934713408
    %v3973 = vunpack.c.0.s8 %v3972
    %v3974 = vlaneseq
    %v3975 = vshrl.u32 %v3974, 7
    %v3976 = vsub.s32 %v3973, %v3975
    %v3977 = vrot.slane %v3969, %v3976
    %v3979 = vunpack.c.l.s4 1934713408
    %v3980 = vunpack.c.0.s8 %v3979
    %v3981 = vlaneseq
    %v3982 = vshrl.u32 %v3981, 7
    %v3983 = vsub.s32 %v3980, %v3982
    %v3984 = vrot.slane %v3970, %v3983
    %v3985 = vcombine.low %v3961, %v3977
    %v3986 = vcombine.high %v3961, %v3977
    %v3987 = vcombine.low %v3968, %v3984
    %v3988 = vcombine.high %v3968, %v3984
    %v3989 = vcombine.low %v3893, %v3900
    %v3991 = vunpack.c.l.s4 1983009808
    %v3992 = vunpack.c.0.s8 %v3991
    %v3993 = vlaneseq
    %v3994 = vshrl.u32 %v3993, 7
    %v3995 = vsub.s32 %v3992, %v3994
    %v3996 = vrot.slane %v3989, %v3995
    %v3997 = vcombine.low %v3917, %v3918
    %v3999 = vunpack.c.l.s4 1983009808
    %v4000 = vunpack.c.0.s8 %v3999
    %v4001 = vlaneseq
    %v4002 = vshrl.u32 %v4001, 7
    %v4003 = vsub.s32 %v4000, %v4002
    %v4004 = vrot.slane %v3997, %v4003
    %v4005 = vcombine.low %v3909, %v3916
    %v4007 = vunpack.c.l.s4 1983009808
    %v4008 = vunpack.c.0.s8 %v4007
    %v4009 = vlaneseq
    %v4010 = vshrl.u32 %v4009, 7
    %v4011 = vsub.s32 %v4008, %v4010
    %v4012 = vrot.slane %v4005, %v4011
    %v4013 = vcombine.low %v3919, %v3920
    %v4015 = vunpack.c.l.s4 1983009808
    %v4016 = vunpack.c.0.s8 %v4015
    %v4017 = vlaneseq
    %v4018 = vshrl.u32 %v4017, 7
    %v4019 = vsub.s32 %v4016, %v4018
    %v4020 = vrot.slane %v4013, %v4019
    %v4021 = vcombine.low %v3996, %v4004
    %v4022 = vcombine.high %v3996, %v4004
    %v4024 = vunpack.c.l.s4 1934713408
    %v4025 = vunpack.c.0.s8 %v4024
    %v4026 = vlaneseq
    %v4027 = vshrl.u32 %v4026, 7
    %v4028 = vsub.s32 %v4025, %v4027
    %v4029 = vrot.slane %v4021, %v4028
    %v4031 = vunpack.c.l.s4 1934713408
    %v4032 = vunpack.c.0.s8 %v4031
    %v4033 = vlaneseq
    %v4034 = vshrl.u32 %v4033, 7
    %v4035 = vsub.s32 %v4032, %v4034
    %v4036 = vrot.slane %v4022, %v4035
    %v4037 = vcombine.low %v4012, %v4020
    %v4038 = vcombine.high %v4012, %v4020
    %v4040 = vunpack.c.l.s4 1934713408
    %v4041 = vunpack.c.0.s8 %v4040
    %v4042 = vlaneseq
    %v4043 = vshrl.u32 %v4042, 7
    %v4044 = vsub.s32 %v4041, %v4043
    %v4045 = vrot.slane %v4037, %v4044
    %v4047 = vunpack.c.l.s4 1934713408
    %v4048 = vunpack.c.0.s8 %v4047
    %v4049 = vlaneseq
    %v4050 = vshrl.u32 %v4049, 7
    %v4051 = vsub.s32 %v4048, %v4050
    %v4052 = vrot.slane %v4038, %v4051
    %v4053 = vcombine.low %v4029, %v4045
    %v4054 = vcombine.high %v4029, %v4045
    %v4055 = vcombine.low %v4036, %v4052
    %v4056 = vcombine.high %v4036, %v4052
    %v4058 = vsel %vm1030, %v3393, 0
    %v4061 = vsel %vm1030, %v3689, 0
    %4063 = vmatprep.subr.mxu0 0.0
    %4064 = vmatpush1.xpose.msra.mxu0 0.0
    %4065 = vmatprep.subr.mxu0 0.0
    %4066 = vmatpush1.xpose.msra.mxu0 0.0
    %4067 = vmatprep.subr.mxu0 0.0
    %4068 = vmatpush1.xpose.msra.mxu0 0.0
    %4069 = vmatprep.subr.mxu0 0.0
    %4070 = vmatpush1.xpose.msra.mxu0 0.0
    %4071 = vmatprep.subr.mxu0 0.0
    %4072 = vmatpush1.xpose.msra.mxu0 0.0
    %4073 = vmatprep.subr.mxu0 0.0
    %4074 = vmatpush1.xpose.msra.mxu0 0.0
    %4075 = vmatprep.subr.mxu0 0.0
    %4076 = vmatpush1.xpose.msra.mxu0 0.0
    %4077 = vmatprep.subr.mxu0 0.0
    %4078 = vmatpush1.xpose.msra.mxu0 0.0
    %4079 = vmatprep.subr.mxu0 0.0
    %4080 = vmatpush1.xpose.msra.mxu0 0.0
    %4081 = vmatprep.subr.mxu0 0.0
    %4082 = vmatpush1.xpose.msra.mxu0 0.0
    %4083 = vmatprep.subr.mxu0 0.0
    %4084 = vmatpush1.xpose.msra.mxu0 0.0
    %4085 = vmatprep.subr.mxu0 0.0
    %4086 = vmatpush1.xpose.msra.mxu0 0.0
    %4087 = vmatprep.subr.mxu0 0.0
    %4088 = vmatpush1.xpose.msra.mxu0 0.0
    %4089 = vmatprep.subr.mxu0 0.0
    %4090 = vmatpush1.xpose.msra.mxu0 0.0
    %4091 = vmatprep.subr.mxu0 0.0
    %4092 = vmatpush1.xpose.msra.mxu0 0.0
    %4093 = vmatprep.subr.mxu0 0.0
    %4094 = vmatpush1.xpose.msra.mxu0 %v4061
    %4095 = vmatprep.subr.mxu0 0.0
    %4096 = vmatpush2.xpose.msra.mxu0 0.0
    %4097 = vmatprep.subr.mxu0 0.0
    %4098 = vmatpush2.xpose.msra.mxu0 0.0
    %4099 = vmatprep.subr.mxu0 0.0
    %4100 = vmatpush2.xpose.msra.mxu0 0.0
    %4101 = vmatprep.subr.mxu0 0.0
    %4102 = vmatpush2.xpose.msra.mxu0 0.0
    %4103 = vmatprep.subr.mxu0 0.0
    %4104 = vmatpush2.xpose.msra.mxu0 0.0
    %4105 = vmatprep.subr.mxu0 0.0
    %4106 = vmatpush2.xpose.msra.mxu0 0.0
    %4107 = vmatprep.subr.mxu0 0.0
    %4108 = vmatpush2.xpose.msra.mxu0 0.0
    %4109 = vmatprep.subr.mxu0 0.0
    %4110 = vmatpush2.xpose.msra.mxu0 0.0
    %4111 = vmatprep.subr.mxu0 0.0
    %4112 = vmatpush2.xpose.msra.mxu0 0.0
    %4113 = vmatprep.subr.mxu0 0.0
    %4114 = vmatpush2.xpose.msra.mxu0 0.0
    %4115 = vmatprep.subr.mxu0 0.0
    %4116 = vmatpush2.xpose.msra.mxu0 0.0
    %4117 = vmatprep.subr.mxu0 0.0
    %4118 = vmatpush2.xpose.msra.mxu0 0.0
    %4119 = vmatprep.subr.mxu0 0.0
    %4120 = vmatpush2.xpose.msra.mxu0 0.0
    %4121 = vmatprep.subr.mxu0 0.0
    %4122 = vmatpush2.xpose.msra.mxu0 0.0
    %4123 = vmatprep.subr.mxu0 0.0
    %4124 = vmatpush2.xpose.msra.mxu0 0.0
    %4125 = vmatprep.subr.mxu0 0.0
    %4126 = vmatpush2.xpose.msra.mxu0 0.0
    %4127 = vmatprep.mubr.f32.mxu0 0.0
    %4128 = vmatmul.mubr.f32.gmra.mxu0 %v4058
    %v4129 = vpop.f32.mrf.mxu0
    %v4130 = vadd.f32 0.0, %v4129
    %v4131 = vpop.f32.mrf.mxu0
    %4132 = vdwg.mxu0
    %v4134 = vsel %vm1030, %v3394, 0
    %v4137 = vsel %vm1030, %v3690, 0
    %4139 = vmatprep.subr.mxu0 0.0
    %4140 = vmatpush1.xpose.msra.mxu0 0.0
    %4141 = vmatprep.subr.mxu0 0.0
    %4142 = vmatpush1.xpose.msra.mxu0 0.0
    %4143 = vmatprep.subr.mxu0 0.0
    %4144 = vmatpush1.xpose.msra.mxu0 0.0
    %4145 = vmatprep.subr.mxu0 0.0
    %4146 = vmatpush1.xpose.msra.mxu0 0.0
    %4147 = vmatprep.subr.mxu0 0.0
    %4148 = vmatpush1.xpose.msra.mxu0 0.0
    %4149 = vmatprep.subr.mxu0 0.0
    %4150 = vmatpush1.xpose.msra.mxu0 0.0
    %4151 = vmatprep.subr.mxu0 0.0
    %4152 = vmatpush1.xpose.msra.mxu0 0.0
    %4153 = vmatprep.subr.mxu0 0.0
    %4154 = vmatpush1.xpose.msra.mxu0 0.0
    %4155 = vmatprep.subr.mxu0 0.0
    %4156 = vmatpush1.xpose.msra.mxu0 0.0
    %4157 = vmatprep.subr.mxu0 0.0
    %4158 = vmatpush1.xpose.msra.mxu0 0.0
    %4159 = vmatprep.subr.mxu0 0.0
    %4160 = vmatpush1.xpose.msra.mxu0 0.0
    %4161 = vmatprep.subr.mxu0 0.0
    %4162 = vmatpush1.xpose.msra.mxu0 0.0
    %4163 = vmatprep.subr.mxu0 0.0
    %4164 = vmatpush1.xpose.msra.mxu0 0.0
    %4165 = vmatprep.subr.mxu0 0.0
    %4166 = vmatpush1.xpose.msra.mxu0 0.0
    %4167 = vmatprep.subr.mxu0 0.0
    %4168 = vmatpush1.xpose.msra.mxu0 0.0
    %4169 = vmatprep.subr.mxu0 0.0
    %4170 = vmatpush1.xpose.msra.mxu0 %v4137
    %4171 = vmatprep.subr.mxu0 0.0
    %4172 = vmatpush2.xpose.msra.mxu0 0.0
    %4173 = vmatprep.subr.mxu0 0.0
    %4174 = vmatpush2.xpose.msra.mxu0 0.0
    %4175 = vmatprep.subr.mxu0 0.0
    %4176 = vmatpush2.xpose.msra.mxu0 0.0
    %4177 = vmatprep.subr.mxu0 0.0
    %4178 = vmatpush2.xpose.msra.mxu0 0.0
    %4179 = vmatprep.subr.mxu0 0.0
    %4180 = vmatpush2.xpose.msra.mxu0 0.0
    %4181 = vmatprep.subr.mxu0 0.0
    %4182 = vmatpush2.xpose.msra.mxu0 0.0
    %4183 = vmatprep.subr.mxu0 0.0
    %4184 = vmatpush2.xpose.msra.mxu0 0.0
    %4185 = vmatprep.subr.mxu0 0.0
    %4186 = vmatpush2.xpose.msra.mxu0 0.0
    %4187 = vmatprep.subr.mxu0 0.0
    %4188 = vmatpush2.xpose.msra.mxu0 0.0
    %4189 = vmatprep.subr.mxu0 0.0
    %4190 = vmatpush2.xpose.msra.mxu0 0.0
    %4191 = vmatprep.subr.mxu0 0.0
    %4192 = vmatpush2.xpose.msra.mxu0 0.0
    %4193 = vmatprep.subr.mxu0 0.0
    %4194 = vmatpush2.xpose.msra.mxu0 0.0
    %4195 = vmatprep.subr.mxu0 0.0
    %4196 = vmatpush2.xpose.msra.mxu0 0.0
    %4197 = vmatprep.subr.mxu0 0.0
    %4198 = vmatpush2.xpose.msra.mxu0 0.0
    %4199 = vmatprep.subr.mxu0 0.0
    %4200 = vmatpush2.xpose.msra.mxu0 0.0
    %4201 = vmatprep.subr.mxu0 0.0
    %4202 = vmatpush2.xpose.msra.mxu0 0.0
    %4203 = vmatprep.mubr.f32.mxu0 0.0
    %4204 = vmatmul.mubr.f32.gmra.mxu0 %v4134
    %v4205 = vpop.f32.mrf.mxu0
    %v4206 = vadd.f32 0.0, %v4205
    %v4207 = vpop.f32.mrf.mxu0
    %4208 = vdwg.mxu0
    %v4210 = vsel %vm1030, %v3395, 0
    %v4213 = vsel %vm1030, %v3691, 0
    %4215 = vmatprep.subr.mxu0 0.0
    %4216 = vmatpush1.xpose.msra.mxu0 0.0
    %4217 = vmatprep.subr.mxu0 0.0
    %4218 = vmatpush1.xpose.msra.mxu0 0.0
    %4219 = vmatprep.subr.mxu0 0.0
    %4220 = vmatpush1.xpose.msra.mxu0 0.0
    %4221 = vmatprep.subr.mxu0 0.0
    %4222 = vmatpush1.xpose.msra.mxu0 0.0
    %4223 = vmatprep.subr.mxu0 0.0
    %4224 = vmatpush1.xpose.msra.mxu0 0.0
    %4225 = vmatprep.subr.mxu0 0.0
    %4226 = vmatpush1.xpose.msra.mxu0 0.0
    %4227 = vmatprep.subr.mxu0 0.0
    %4228 = vmatpush1.xpose.msra.mxu0 0.0
    %4229 = vmatprep.subr.mxu0 0.0
    %4230 = vmatpush1.xpose.msra.mxu0 0.0
    %4231 = vmatprep.subr.mxu0 0.0
    %4232 = vmatpush1.xpose.msra.mxu0 0.0
    %4233 = vmatprep.subr.mxu0 0.0
    %4234 = vmatpush1.xpose.msra.mxu0 0.0
    %4235 = vmatprep.subr.mxu0 0.0
    %4236 = vmatpush1.xpose.msra.mxu0 0.0
    %4237 = vmatprep.subr.mxu0 0.0
    %4238 = vmatpush1.xpose.msra.mxu0 0.0
    %4239 = vmatprep.subr.mxu0 0.0
    %4240 = vmatpush1.xpose.msra.mxu0 0.0
    %4241 = vmatprep.subr.mxu0 0.0
    %4242 = vmatpush1.xpose.msra.mxu0 0.0
    %4243 = vmatprep.subr.mxu0 0.0
    %4244 = vmatpush1.xpose.msra.mxu0 0.0
    %4245 = vmatprep.subr.mxu0 0.0
    %4246 = vmatpush1.xpose.msra.mxu0 %v4213
    %4247 = vmatprep.subr.mxu0 0.0
    %4248 = vmatpush2.xpose.msra.mxu0 0.0
    %4249 = vmatprep.subr.mxu0 0.0
    %4250 = vmatpush2.xpose.msra.mxu0 0.0
    %4251 = vmatprep.subr.mxu0 0.0
    %4252 = vmatpush2.xpose.msra.mxu0 0.0
    %4253 = vmatprep.subr.mxu0 0.0
    %4254 = vmatpush2.xpose.msra.mxu0 0.0
    %4255 = vmatprep.subr.mxu0 0.0
    %4256 = vmatpush2.xpose.msra.mxu0 0.0
    %4257 = vmatprep.subr.mxu0 0.0
    %4258 = vmatpush2.xpose.msra.mxu0 0.0
    %4259 = vmatprep.subr.mxu0 0.0
    %4260 = vmatpush2.xpose.msra.mxu0 0.0
    %4261 = vmatprep.subr.mxu0 0.0
    %4262 = vmatpush2.xpose.msra.mxu0 0.0
    %4263 = vmatprep.subr.mxu0 0.0
    %4264 = vmatpush2.xpose.msra.mxu0 0.0
    %4265 = vmatprep.subr.mxu0 0.0
    %4266 = vmatpush2.xpose.msra.mxu0 0.0
    %4267 = vmatprep.subr.mxu0 0.0
    %4268 = vmatpush2.xpose.msra.mxu0 0.0
    %4269 = vmatprep.subr.mxu0 0.0
    %4270 = vmatpush2.xpose.msra.mxu0 0.0
    %4271 = vmatprep.subr.mxu0 0.0
    %4272 = vmatpush2.xpose.msra.mxu0 0.0
    %4273 = vmatprep.subr.mxu0 0.0
    %4274 = vmatpush2.xpose.msra.mxu0 0.0
    %4275 = vmatprep.subr.mxu0 0.0
    %4276 = vmatpush2.xpose.msra.mxu0 0.0
    %4277 = vmatprep.subr.mxu0 0.0
    %4278 = vmatpush2.xpose.msra.mxu0 0.0
    %4279 = vmatprep.mubr.f32.mxu0 0.0
    %4280 = vmatmul.mubr.f32.gmra.mxu0 %v4210
    %v4281 = vpop.f32.mrf.mxu0
    %v4282 = vadd.f32 0.0, %v4281
    %v4283 = vpop.f32.mrf.mxu0
    %4284 = vdwg.mxu0
    %v4286 = vsel %vm1030, %v3396, 0
    %v4289 = vsel %vm1030, %v3692, 0
    %4291 = vmatprep.subr.mxu0 0.0
    %4292 = vmatpush1.xpose.msra.mxu0 0.0
    %4293 = vmatprep.subr.mxu0 0.0
    %4294 = vmatpush1.xpose.msra.mxu0 0.0
    %4295 = vmatprep.subr.mxu0 0.0
    %4296 = vmatpush1.xpose.msra.mxu0 0.0
    %4297 = vmatprep.subr.mxu0 0.0
    %4298 = vmatpush1.xpose.msra.mxu0 0.0
    %4299 = vmatprep.subr.mxu0 0.0
    %4300 = vmatpush1.xpose.msra.mxu0 0.0
    %4301 = vmatprep.subr.mxu0 0.0
    %4302 = vmatpush1.xpose.msra.mxu0 0.0
    %4303 = vmatprep.subr.mxu0 0.0
    %4304 = vmatpush1.xpose.msra.mxu0 0.0
    %4305 = vmatprep.subr.mxu0 0.0
    %4306 = vmatpush1.xpose.msra.mxu0 0.0
    %4307 = vmatprep.subr.mxu0 0.0
    %4308 = vmatpush1.xpose.msra.mxu0 0.0
    %4309 = vmatprep.subr.mxu0 0.0
    %4310 = vmatpush1.xpose.msra.mxu0 0.0
    %4311 = vmatprep.subr.mxu0 0.0
    %4312 = vmatpush1.xpose.msra.mxu0 0.0
    %4313 = vmatprep.subr.mxu0 0.0
    %4314 = vmatpush1.xpose.msra.mxu0 0.0
    %4315 = vmatprep.subr.mxu0 0.0
    %4316 = vmatpush1.xpose.msra.mxu0 0.0
    %4317 = vmatprep.subr.mxu0 0.0
    %4318 = vmatpush1.xpose.msra.mxu0 0.0
    %4319 = vmatprep.subr.mxu0 0.0
    %4320 = vmatpush1.xpose.msra.mxu0 0.0
    %4321 = vmatprep.subr.mxu0 0.0
    %4322 = vmatpush1.xpose.msra.mxu0 %v4289
    %4323 = vmatprep.subr.mxu0 0.0
    %4324 = vmatpush2.xpose.msra.mxu0 0.0
    %4325 = vmatprep.subr.mxu0 0.0
    %4326 = vmatpush2.xpose.msra.mxu0 0.0
    %4327 = vmatprep.subr.mxu0 0.0
    %4328 = vmatpush2.xpose.msra.mxu0 0.0
    %4329 = vmatprep.subr.mxu0 0.0
    %4330 = vmatpush2.xpose.msra.mxu0 0.0
    %4331 = vmatprep.subr.mxu0 0.0
    %4332 = vmatpush2.xpose.msra.mxu0 0.0
    %4333 = vmatprep.subr.mxu0 0.0
    %4334 = vmatpush2.xpose.msra.mxu0 0.0
    %4335 = vmatprep.subr.mxu0 0.0
    %4336 = vmatpush2.xpose.msra.mxu0 0.0
    %4337 = vmatprep.subr.mxu0 0.0
    %4338 = vmatpush2.xpose.msra.mxu0 0.0
    %4339 = vmatprep.subr.mxu0 0.0
    %4340 = vmatpush2.xpose.msra.mxu0 0.0
    %4341 = vmatprep.subr.mxu0 0.0
    %4342 = vmatpush2.xpose.msra.mxu0 0.0
    %4343 = vmatprep.subr.mxu0 0.0
    %4344 = vmatpush2.xpose.msra.mxu0 0.0
    %4345 = vmatprep.subr.mxu0 0.0
    %4346 = vmatpush2.xpose.msra.mxu0 0.0
    %4347 = vmatprep.subr.mxu0 0.0
    %4348 = vmatpush2.xpose.msra.mxu0 0.0
    %4349 = vmatprep.subr.mxu0 0.0
    %4350 = vmatpush2.xpose.msra.mxu0 0.0
    %4351 = vmatprep.subr.mxu0 0.0
    %4352 = vmatpush2.xpose.msra.mxu0 0.0
    %4353 = vmatprep.subr.mxu0 0.0
    %4354 = vmatpush2.xpose.msra.mxu0 0.0
    %4355 = vmatprep.mubr.f32.mxu0 0.0
    %4356 = vmatmul.mubr.f32.gmra.mxu0 %v4286
    %v4357 = vpop.f32.mrf.mxu0
    %v4358 = vadd.f32 0.0, %v4357
    %v4359 = vpop.f32.mrf.mxu0
    %4360 = vdwg.mxu0
    %v4362 = vsel %vm1030, %v3461, 0
    %v4365 = vsel %vm1030, %v3757, 0
    %4367 = vmatprep.subr.mxu0 0.0
    %4368 = vmatpush1.xpose.msra.mxu0 0.0
    %4369 = vmatprep.subr.mxu0 0.0
    %4370 = vmatpush1.xpose.msra.mxu0 0.0
    %4371 = vmatprep.subr.mxu0 0.0
    %4372 = vmatpush1.xpose.msra.mxu0 0.0
    %4373 = vmatprep.subr.mxu0 0.0
    %4374 = vmatpush1.xpose.msra.mxu0 0.0
    %4375 = vmatprep.subr.mxu0 0.0
    %4376 = vmatpush1.xpose.msra.mxu0 0.0
    %4377 = vmatprep.subr.mxu0 0.0
    %4378 = vmatpush1.xpose.msra.mxu0 0.0
    %4379 = vmatprep.subr.mxu0 0.0
    %4380 = vmatpush1.xpose.msra.mxu0 0.0
    %4381 = vmatprep.subr.mxu0 0.0
    %4382 = vmatpush1.xpose.msra.mxu0 0.0
    %4383 = vmatprep.subr.mxu0 0.0
    %4384 = vmatpush1.xpose.msra.mxu0 0.0
    %4385 = vmatprep.subr.mxu0 0.0
    %4386 = vmatpush1.xpose.msra.mxu0 0.0
    %4387 = vmatprep.subr.mxu0 0.0
    %4388 = vmatpush1.xpose.msra.mxu0 0.0
    %4389 = vmatprep.subr.mxu0 0.0
    %4390 = vmatpush1.xpose.msra.mxu0 0.0
    %4391 = vmatprep.subr.mxu0 0.0
    %4392 = vmatpush1.xpose.msra.mxu0 0.0
    %4393 = vmatprep.subr.mxu0 0.0
    %4394 = vmatpush1.xpose.msra.mxu0 0.0
    %4395 = vmatprep.subr.mxu0 0.0
    %4396 = vmatpush1.xpose.msra.mxu0 0.0
    %4397 = vmatprep.subr.mxu0 0.0
    %4398 = vmatpush1.xpose.msra.mxu0 %v4365
    %4399 = vmatprep.subr.mxu0 0.0
    %4400 = vmatpush2.xpose.msra.mxu0 0.0
    %4401 = vmatprep.subr.mxu0 0.0
    %4402 = vmatpush2.xpose.msra.mxu0 0.0
    %4403 = vmatprep.subr.mxu0 0.0
    %4404 = vmatpush2.xpose.msra.mxu0 0.0
    %4405 = vmatprep.subr.mxu0 0.0
    %4406 = vmatpush2.xpose.msra.mxu0 0.0
    %4407 = vmatprep.subr.mxu0 0.0
    %4408 = vmatpush2.xpose.msra.mxu0 0.0
    %4409 = vmatprep.subr.mxu0 0.0
    %4410 = vmatpush2.xpose.msra.mxu0 0.0
    %4411 = vmatprep.subr.mxu0 0.0
    %4412 = vmatpush2.xpose.msra.mxu0 0.0
    %4413 = vmatprep.subr.mxu0 0.0
    %4414 = vmatpush2.xpose.msra.mxu0 0.0
    %4415 = vmatprep.subr.mxu0 0.0
    %4416 = vmatpush2.xpose.msra.mxu0 0.0
    %4417 = vmatprep.subr.mxu0 0.0
    %4418 = vmatpush2.xpose.msra.mxu0 0.0
    %4419 = vmatprep.subr.mxu0 0.0
    %4420 = vmatpush2.xpose.msra.mxu0 0.0
    %4421 = vmatprep.subr.mxu0 0.0
    %4422 = vmatpush2.xpose.msra.mxu0 0.0
    %4423 = vmatprep.subr.mxu0 0.0
    %4424 = vmatpush2.xpose.msra.mxu0 0.0
    %4425 = vmatprep.subr.mxu0 0.0
    %4426 = vmatpush2.xpose.msra.mxu0 0.0
    %4427 = vmatprep.subr.mxu0 0.0
    %4428 = vmatpush2.xpose.msra.mxu0 0.0
    %4429 = vmatprep.subr.mxu0 0.0
    %4430 = vmatpush2.xpose.msra.mxu0 0.0
    %4431 = vmatprep.mubr.f32.mxu0 0.0
    %4432 = vmatmul.mubr.f32.gmra.mxu0 %v4362
    %v4433 = vpop.f32.mrf.mxu0
    %v4434 = vadd.f32 0.0, %v4433
    %v4435 = vpop.f32.mrf.mxu0
    %4436 = vdwg.mxu0
    %v4438 = vsel %vm1030, %v3462, 0
    %v4441 = vsel %vm1030, %v3758, 0
    %4443 = vmatprep.subr.mxu0 0.0
    %4444 = vmatpush1.xpose.msra.mxu0 0.0
    %4445 = vmatprep.subr.mxu0 0.0
    %4446 = vmatpush1.xpose.msra.mxu0 0.0
    %4447 = vmatprep.subr.mxu0 0.0
    %4448 = vmatpush1.xpose.msra.mxu0 0.0
    %4449 = vmatprep.subr.mxu0 0.0
    %4450 = vmatpush1.xpose.msra.mxu0 0.0
    %4451 = vmatprep.subr.mxu0 0.0
    %4452 = vmatpush1.xpose.msra.mxu0 0.0
    %4453 = vmatprep.subr.mxu0 0.0
    %4454 = vmatpush1.xpose.msra.mxu0 0.0
    %4455 = vmatprep.subr.mxu0 0.0
    %4456 = vmatpush1.xpose.msra.mxu0 0.0
    %4457 = vmatprep.subr.mxu0 0.0
    %4458 = vmatpush1.xpose.msra.mxu0 0.0
    %4459 = vmatprep.subr.mxu0 0.0
    %4460 = vmatpush1.xpose.msra.mxu0 0.0
    %4461 = vmatprep.subr.mxu0 0.0
    %4462 = vmatpush1.xpose.msra.mxu0 0.0
    %4463 = vmatprep.subr.mxu0 0.0
    %4464 = vmatpush1.xpose.msra.mxu0 0.0
    %4465 = vmatprep.subr.mxu0 0.0
    %4466 = vmatpush1.xpose.msra.mxu0 0.0
    %4467 = vmatprep.subr.mxu0 0.0
    %4468 = vmatpush1.xpose.msra.mxu0 0.0
    %4469 = vmatprep.subr.mxu0 0.0
    %4470 = vmatpush1.xpose.msra.mxu0 0.0
    %4471 = vmatprep.subr.mxu0 0.0
    %4472 = vmatpush1.xpose.msra.mxu0 0.0
    %4473 = vmatprep.subr.mxu0 0.0
    %4474 = vmatpush1.xpose.msra.mxu0 %v4441
    %4475 = vmatprep.subr.mxu0 0.0
    %4476 = vmatpush2.xpose.msra.mxu0 0.0
    %4477 = vmatprep.subr.mxu0 0.0
    %4478 = vmatpush2.xpose.msra.mxu0 0.0
    %4479 = vmatprep.subr.mxu0 0.0
    %4480 = vmatpush2.xpose.msra.mxu0 0.0
    %4481 = vmatprep.subr.mxu0 0.0
    %4482 = vmatpush2.xpose.msra.mxu0 0.0
    %4483 = vmatprep.subr.mxu0 0.0
    %4484 = vmatpush2.xpose.msra.mxu0 0.0
    %4485 = vmatprep.subr.mxu0 0.0
    %4486 = vmatpush2.xpose.msra.mxu0 0.0
    %4487 = vmatprep.subr.mxu0 0.0
    %4488 = vmatpush2.xpose.msra.mxu0 0.0
    %4489 = vmatprep.subr.mxu0 0.0
    %4490 = vmatpush2.xpose.msra.mxu0 0.0
    %4491 = vmatprep.subr.mxu0 0.0
    %4492 = vmatpush2.xpose.msra.mxu0 0.0
    %4493 = vmatprep.subr.mxu0 0.0
    %4494 = vmatpush2.xpose.msra.mxu0 0.0
    %4495 = vmatprep.subr.mxu0 0.0
    %4496 = vmatpush2.xpose.msra.mxu0 0.0
    %4497 = vmatprep.subr.mxu0 0.0
    %4498 = vmatpush2.xpose.msra.mxu0 0.0
    %4499 = vmatprep.subr.mxu0 0.0
    %4500 = vmatpush2.xpose.msra.mxu0 0.0
    %4501 = vmatprep.subr.mxu0 0.0
    %4502 = vmatpush2.xpose.msra.mxu0 0.0
    %4503 = vmatprep.subr.mxu0 0.0
    %4504 = vmatpush2.xpose.msra.mxu0 0.0
    %4505 = vmatprep.subr.mxu0 0.0
    %4506 = vmatpush2.xpose.msra.mxu0 0.0
    %4507 = vmatprep.mubr.f32.mxu0 0.0
    %4508 = vmatmul.mubr.f32.gmra.mxu0 %v4438
    %v4509 = vpop.f32.mrf.mxu0
    %v4510 = vadd.f32 0.0, %v4509
    %v4511 = vpop.f32.mrf.mxu0
    %4512 = vdwg.mxu0
    %v4514 = vsel %vm1030, %v3463, 0
    %v4517 = vsel %vm1030, %v3759, 0
    %4519 = vmatprep.subr.mxu0 0.0
    %4520 = vmatpush1.xpose.msra.mxu0 0.0
    %4521 = vmatprep.subr.mxu0 0.0
    %4522 = vmatpush1.xpose.msra.mxu0 0.0
    %4523 = vmatprep.subr.mxu0 0.0
    %4524 = vmatpush1.xpose.msra.mxu0 0.0
    %4525 = vmatprep.subr.mxu0 0.0
    %4526 = vmatpush1.xpose.msra.mxu0 0.0
    %4527 = vmatprep.subr.mxu0 0.0
    %4528 = vmatpush1.xpose.msra.mxu0 0.0
    %4529 = vmatprep.subr.mxu0 0.0
    %4530 = vmatpush1.xpose.msra.mxu0 0.0
    %4531 = vmatprep.subr.mxu0 0.0
    %4532 = vmatpush1.xpose.msra.mxu0 0.0
    %4533 = vmatprep.subr.mxu0 0.0
    %4534 = vmatpush1.xpose.msra.mxu0 0.0
    %4535 = vmatprep.subr.mxu0 0.0
    %4536 = vmatpush1.xpose.msra.mxu0 0.0
    %4537 = vmatprep.subr.mxu0 0.0
    %4538 = vmatpush1.xpose.msra.mxu0 0.0
    %4539 = vmatprep.subr.mxu0 0.0
    %4540 = vmatpush1.xpose.msra.mxu0 0.0
    %4541 = vmatprep.subr.mxu0 0.0
    %4542 = vmatpush1.xpose.msra.mxu0 0.0
    %4543 = vmatprep.subr.mxu0 0.0
    %4544 = vmatpush1.xpose.msra.mxu0 0.0
    %4545 = vmatprep.subr.mxu0 0.0
    %4546 = vmatpush1.xpose.msra.mxu0 0.0
    %4547 = vmatprep.subr.mxu0 0.0
    %4548 = vmatpush1.xpose.msra.mxu0 0.0
    %4549 = vmatprep.subr.mxu0 0.0
    %4550 = vmatpush1.xpose.msra.mxu0 %v4517
    %4551 = vmatprep.subr.mxu0 0.0
    %4552 = vmatpush2.xpose.msra.mxu0 0.0
    %4553 = vmatprep.subr.mxu0 0.0
    %4554 = vmatpush2.xpose.msra.mxu0 0.0
    %4555 = vmatprep.subr.mxu0 0.0
    %4556 = vmatpush2.xpose.msra.mxu0 0.0
    %4557 = vmatprep.subr.mxu0 0.0
    %4558 = vmatpush2.xpose.msra.mxu0 0.0
    %4559 = vmatprep.subr.mxu0 0.0
    %4560 = vmatpush2.xpose.msra.mxu0 0.0
    %4561 = vmatprep.subr.mxu0 0.0
    %4562 = vmatpush2.xpose.msra.mxu0 0.0
    %4563 = vmatprep.subr.mxu0 0.0
    %4564 = vmatpush2.xpose.msra.mxu0 0.0
    %4565 = vmatprep.subr.mxu0 0.0
    %4566 = vmatpush2.xpose.msra.mxu0 0.0
    %4567 = vmatprep.subr.mxu0 0.0
    %4568 = vmatpush2.xpose.msra.mxu0 0.0
    %4569 = vmatprep.subr.mxu0 0.0
    %4570 = vmatpush2.xpose.msra.mxu0 0.0
    %4571 = vmatprep.subr.mxu0 0.0
    %4572 = vmatpush2.xpose.msra.mxu0 0.0
    %4573 = vmatprep.subr.mxu0 0.0
    %4574 = vmatpush2.xpose.msra.mxu0 0.0
    %4575 = vmatprep.subr.mxu0 0.0
    %4576 = vmatpush2.xpose.msra.mxu0 0.0
    %4577 = vmatprep.subr.mxu0 0.0
    %4578 = vmatpush2.xpose.msra.mxu0 0.0
    %4579 = vmatprep.subr.mxu0 0.0
    %4580 = vmatpush2.xpose.msra.mxu0 0.0
    %4581 = vmatprep.subr.mxu0 0.0
    %4582 = vmatpush2.xpose.msra.mxu0 0.0
    %4583 = vmatprep.mubr.f32.mxu0 0.0
    %4584 = vmatmul.mubr.f32.gmra.mxu0 %v4514
    %v4585 = vpop.f32.mrf.mxu0
    %v4586 = vadd.f32 0.0, %v4585
    %v4587 = vpop.f32.mrf.mxu0
    %4588 = vdwg.mxu0
    %v4590 = vsel %vm1030, %v3464, 0
    %v4593 = vsel %vm1030, %v3760, 0
    %4595 = vmatprep.subr.mxu0 0.0
    %4596 = vmatpush1.xpose.msra.mxu0 0.0
    %4597 = vmatprep.subr.mxu0 0.0
    %4598 = vmatpush1.xpose.msra.mxu0 0.0
    %4599 = vmatprep.subr.mxu0 0.0
    %4600 = vmatpush1.xpose.msra.mxu0 0.0
    %4601 = vmatprep.subr.mxu0 0.0
    %4602 = vmatpush1.xpose.msra.mxu0 0.0
    %4603 = vmatprep.subr.mxu0 0.0
    %4604 = vmatpush1.xpose.msra.mxu0 0.0
    %4605 = vmatprep.subr.mxu0 0.0
    %4606 = vmatpush1.xpose.msra.mxu0 0.0
    %4607 = vmatprep.subr.mxu0 0.0
    %4608 = vmatpush1.xpose.msra.mxu0 0.0
    %4609 = vmatprep.subr.mxu0 0.0
    %4610 = vmatpush1.xpose.msra.mxu0 0.0
    %4611 = vmatprep.subr.mxu0 0.0
    %4612 = vmatpush1.xpose.msra.mxu0 0.0
    %4613 = vmatprep.subr.mxu0 0.0
    %4614 = vmatpush1.xpose.msra.mxu0 0.0
    %4615 = vmatprep.subr.mxu0 0.0
    %4616 = vmatpush1.xpose.msra.mxu0 0.0
    %4617 = vmatprep.subr.mxu0 0.0
    %4618 = vmatpush1.xpose.msra.mxu0 0.0
    %4619 = vmatprep.subr.mxu0 0.0
    %4620 = vmatpush1.xpose.msra.mxu0 0.0
    %4621 = vmatprep.subr.mxu0 0.0
    %4622 = vmatpush1.xpose.msra.mxu0 0.0
    %4623 = vmatprep.subr.mxu0 0.0
    %4624 = vmatpush1.xpose.msra.mxu0 0.0
    %4625 = vmatprep.subr.mxu0 0.0
    %4626 = vmatpush1.xpose.msra.mxu0 %v4593
    %4627 = vmatprep.subr.mxu0 0.0
    %4628 = vmatpush2.xpose.msra.mxu0 0.0
    %4629 = vmatprep.subr.mxu0 0.0
    %4630 = vmatpush2.xpose.msra.mxu0 0.0
    %4631 = vmatprep.subr.mxu0 0.0
    %4632 = vmatpush2.xpose.msra.mxu0 0.0
    %4633 = vmatprep.subr.mxu0 0.0
    %4634 = vmatpush2.xpose.msra.mxu0 0.0
    %4635 = vmatprep.subr.mxu0 0.0
    %4636 = vmatpush2.xpose.msra.mxu0 0.0
    %4637 = vmatprep.subr.mxu0 0.0
    %4638 = vmatpush2.xpose.msra.mxu0 0.0
    %4639 = vmatprep.subr.mxu0 0.0
    %4640 = vmatpush2.xpose.msra.mxu0 0.0
    %4641 = vmatprep.subr.mxu0 0.0
    %4642 = vmatpush2.xpose.msra.mxu0 0.0
    %4643 = vmatprep.subr.mxu0 0.0
    %4644 = vmatpush2.xpose.msra.mxu0 0.0
    %4645 = vmatprep.subr.mxu0 0.0
    %4646 = vmatpush2.xpose.msra.mxu0 0.0
    %4647 = vmatprep.subr.mxu0 0.0
    %4648 = vmatpush2.xpose.msra.mxu0 0.0
    %4649 = vmatprep.subr.mxu0 0.0
    %4650 = vmatpush2.xpose.msra.mxu0 0.0
    %4651 = vmatprep.subr.mxu0 0.0
    %4652 = vmatpush2.xpose.msra.mxu0 0.0
    %4653 = vmatprep.subr.mxu0 0.0
    %4654 = vmatpush2.xpose.msra.mxu0 0.0
    %4655 = vmatprep.subr.mxu0 0.0
    %4656 = vmatpush2.xpose.msra.mxu0 0.0
    %4657 = vmatprep.subr.mxu0 0.0
    %4658 = vmatpush2.xpose.msra.mxu0 0.0
    %4659 = vmatprep.mubr.f32.mxu0 0.0
    %4660 = vmatmul.mubr.f32.gmra.mxu0 %v4590
    %v4661 = vpop.f32.mrf.mxu0
    %v4662 = vadd.f32 0.0, %v4661
    %v4663 = vpop.f32.mrf.mxu0
    %4664 = vdwg.mxu0
    %v4665 = vmul.f32 %v4130, 0.35355338
    %v4666 = vmul.f32 %v4206, 0.35355338
    %v4667 = vmul.f32 %v4282, 0.35355338
    %v4668 = vmul.f32 %v4358, 0.35355338
    %v4669 = vmul.f32 %v4434, 0.35355338
    %v4670 = vmul.f32 %v4510, 0.35355338
    %v4671 = vmul.f32 %v4586, 0.35355338
    %v4672 = vmul.f32 %v4662, 0.35355338
    %v4673 = vsel %vm1030, %v4665, -inf
    %4674 = vmax.xlane.f32.xlu0 %v4673
    %v4675 = vpop.xlane.xlu0 %4674
    %v4676 = vsel %vm1030, %v4666, -inf
    %4677 = vmax.xlane.f32.xlu0 %v4676
    %v4678 = vpop.xlane.xlu0 %4677
    %v4679 = vsel %vm1030, %v4667, -inf
    %4680 = vmax.xlane.f32.xlu0 %v4679
    %v4681 = vpop.xlane.xlu0 %4680
    %v4682 = vsel %vm1030, %v4668, -inf
    %4683 = vmax.xlane.f32.xlu0 %v4682
    %v4684 = vpop.xlane.xlu0 %4683
    %v4685 = vsel %vm1030, %v4669, -inf
    %4686 = vmax.xlane.f32.xlu0 %v4685
    %v4687 = vpop.xlane.xlu0 %4686
    %v4688 = vsel %vm1030, %v4670, -inf
    %4689 = vmax.xlane.f32.xlu0 %v4688
    %v4690 = vpop.xlane.xlu0 %4689
    %v4691 = vsel %vm1030, %v4671, -inf
    %4692 = vmax.xlane.f32.xlu0 %v4691
    %v4693 = vpop.xlane.xlu0 %4692
    %v4694 = vsel %vm1030, %v4672, -inf
    %4695 = vmax.xlane.f32.xlu0 %v4694
    %v4696 = vpop.xlane.xlu0 %4695
    %v4697 = vsub.f32 %v4665, %v4675
    %v4698 = vsub.f32 %v4666, %v4678
    %v4699 = vsub.f32 %v4667, %v4681
    %v4700 = vsub.f32 %v4668, %v4684
    %v4701 = vsub.f32 %v4669, %v4687
    %v4702 = vsub.f32 %v4670, %v4690
    %v4703 = vsub.f32 %v4671, %v4693
    %v4704 = vsub.f32 %v4672, %v4696
    %v4705 = vmul.f32 %v4697, 1.442695
    %v4706 = vpow.pop %v4705
    %v4707 = vmul.f32 %v4698, 1.442695
    %v4708 = vpow.pop %v4707
    %v4709 = vmul.f32 %v4699, 1.442695
    %v4710 = vpow.pop %v4709
    %v4711 = vmul.f32 %v4700, 1.442695
    %v4712 = vpow.pop %v4711
    %v4713 = vmul.f32 %v4701, 1.442695
    %v4714 = vpow.pop %v4713
    %v4715 = vmul.f32 %v4702, 1.442695
    %v4716 = vpow.pop %v4715
    %v4717 = vmul.f32 %v4703, 1.442695
    %v4718 = vpow.pop %v4717
    %v4719 = vmul.f32 %v4704, 1.442695
    %v4720 = vpow.pop %v4719
    %v4721 = vsel %vm1030, %v4706, 0.0
    %4722 = vadd.xlane.f32.xlu0 %v4721
    %v4723 = vpop.xlane.xlu0 %4722
    %v4724 = vsel %vm1030, %v4708, 0.0
    %4725 = vadd.xlane.f32.xlu0 %v4724
    %v4726 = vpop.xlane.xlu0 %4725
    %v4727 = vsel %vm1030, %v4710, 0.0
    %4728 = vadd.xlane.f32.xlu0 %v4727
    %v4729 = vpop.xlane.xlu0 %4728
    %v4730 = vsel %vm1030, %v4712, 0.0
    %4731 = vadd.xlane.f32.xlu0 %v4730
    %v4732 = vpop.xlane.xlu0 %4731
    %v4733 = vsel %vm1030, %v4714, 0.0
    %4734 = vadd.xlane.f32.xlu0 %v4733
    %v4735 = vpop.xlane.xlu0 %4734
    %v4736 = vsel %vm1030, %v4716, 0.0
    %4737 = vadd.xlane.f32.xlu0 %v4736
    %v4738 = vpop.xlane.xlu0 %4737
    %v4739 = vsel %vm1030, %v4718, 0.0
    %4740 = vadd.xlane.f32.xlu0 %v4739
    %v4741 = vpop.xlane.xlu0 %4740
    %v4742 = vsel %vm1030, %v4720, 0.0
    %4743 = vadd.xlane.f32.xlu0 %v4742
    %v4744 = vpop.xlane.xlu0 %4743
    %v4745 = vrcp.pop %v4723
    %v4746 = vmul.f32 %v4706, %v4745
    %v4747 = vrcp.pop %v4726
    %v4748 = vmul.f32 %v4708, %v4747
    %v4749 = vrcp.pop %v4729
    %v4750 = vmul.f32 %v4710, %v4749
    %v4751 = vrcp.pop %v4732
    %v4752 = vmul.f32 %v4712, %v4751
    %v4753 = vrcp.pop %v4735
    %v4754 = vmul.f32 %v4714, %v4753
    %v4755 = vrcp.pop %v4738
    %v4756 = vmul.f32 %v4716, %v4755
    %v4757 = vrcp.pop %v4741
    %v4758 = vmul.f32 %v4718, %v4757
    %v4759 = vrcp.pop %v4744
    %v4760 = vmul.f32 %v4720, %v4759
    %v4762 = vsel %vm1030, %v4746, 0
    %4764 = vmatprep.subr.mxu0 0.0
    %4765 = vmatpush1.msra.mxu0 0.0
    %4766 = vmatprep.subr.mxu0 0.0
    %4767 = vmatpush1.msra.mxu0 0.0
    %4768 = vmatprep.subr.mxu0 0.0
    %4769 = vmatpush1.msra.mxu0 0.0
    %4770 = vmatprep.subr.mxu0 0.0
    %4771 = vmatpush1.msra.mxu0 0.0
    %4772 = vmatprep.subr.mxu0 0.0
    %4773 = vmatpush1.msra.mxu0 0.0
    %4774 = vmatprep.subr.mxu0 0.0
    %4775 = vmatpush1.msra.mxu0 0.0
    %4776 = vmatprep.subr.mxu0 0.0
    %4777 = vmatpush1.msra.mxu0 0.0
    %4778 = vmatprep.subr.mxu0 0.0
    %4779 = vmatpush1.msra.mxu0 0.0
    %4780 = vmatprep.subr.mxu0 0.0
    %4781 = vmatpush1.msra.mxu0 0.0
    %4782 = vmatprep.subr.mxu0 0.0
    %4783 = vmatpush1.msra.mxu0 0.0
    %4784 = vmatprep.subr.mxu0 0.0
    %4785 = vmatpush1.msra.mxu0 0.0
    %4786 = vmatprep.subr.mxu0 0.0
    %4787 = vmatpush1.msra.mxu0 0.0
    %4788 = vmatprep.subr.mxu0 0.0
    %4789 = vmatpush1.msra.mxu0 0.0
    %4790 = vmatprep.subr.mxu0 0.0
    %4791 = vmatpush1.msra.mxu0 0.0
    %4792 = vmatprep.subr.mxu0 0.0
    %4793 = vmatpush1.msra.mxu0 0.0
    %4794 = vmatprep.subr.mxu0 0.0
    %4795 = vmatpush1.msra.mxu0 %v3985
    %4796 = vmatprep.subr.mxu0 0.0
    %4797 = vmatpush2.msra.mxu0 0.0
    %4798 = vmatprep.subr.mxu0 0.0
    %4799 = vmatpush2.msra.mxu0 0.0
    %4800 = vmatprep.subr.mxu0 0.0
    %4801 = vmatpush2.msra.mxu0 0.0
    %4802 = vmatprep.subr.mxu0 0.0
    %4803 = vmatpush2.msra.mxu0 0.0
    %4804 = vmatprep.subr.mxu0 0.0
    %4805 = vmatpush2.msra.mxu0 0.0
    %4806 = vmatprep.subr.mxu0 0.0
    %4807 = vmatpush2.msra.mxu0 0.0
    %4808 = vmatprep.subr.mxu0 0.0
    %4809 = vmatpush2.msra.mxu0 0.0
    %4810 = vmatprep.subr.mxu0 0.0
    %4811 = vmatpush2.msra.mxu0 0.0
    %4812 = vmatprep.subr.mxu0 0.0
    %4813 = vmatpush2.msra.mxu0 0.0
    %4814 = vmatprep.subr.mxu0 0.0
    %4815 = vmatpush2.msra.mxu0 0.0
    %4816 = vmatprep.subr.mxu0 0.0
    %4817 = vmatpush2.msra.mxu0 0.0
    %4818 = vmatprep.subr.mxu0 0.0
    %4819 = vmatpush2.msra.mxu0 0.0
    %4820 = vmatprep.subr.mxu0 0.0
    %4821 = vmatpush2.msra.mxu0 0.0
    %4822 = vmatprep.subr.mxu0 0.0
    %4823 = vmatpush2.msra.mxu0 0.0
    %4824 = vmatprep.subr.mxu0 0.0
    %4825 = vmatpush2.msra.mxu0 0.0
    %4826 = vmatprep.subr.mxu0 0.0
    %4827 = vmatpush2.msra.mxu0 0.0
    %4828 = vmatprep.mubr.f32.mxu0 0.0
    %4829 = vmatmul.mubr.f32.gmra.mxu0 %v4762
    %v4830 = vpop.f32.mrf.mxu0
    %v4831 = vadd.f32 0.0, %v4830
    %v4832 = vpop.f32.mrf.mxu0
    %4833 = vdwg.mxu0
    %v4835 = vsel %vm1030, %v4748, 0
    %4837 = vmatprep.subr.mxu0 0.0
    %4838 = vmatpush1.msra.mxu0 0.0
    %4839 = vmatprep.subr.mxu0 0.0
    %4840 = vmatpush1.msra.mxu0 0.0
    %4841 = vmatprep.subr.mxu0 0.0
    %4842 = vmatpush1.msra.mxu0 0.0
    %4843 = vmatprep.subr.mxu0 0.0
    %4844 = vmatpush1.msra.mxu0 0.0
    %4845 = vmatprep.subr.mxu0 0.0
    %4846 = vmatpush1.msra.mxu0 0.0
    %4847 = vmatprep.subr.mxu0 0.0
    %4848 = vmatpush1.msra.mxu0 0.0
    %4849 = vmatprep.subr.mxu0 0.0
    %4850 = vmatpush1.msra.mxu0 0.0
    %4851 = vmatprep.subr.mxu0 0.0
    %4852 = vmatpush1.msra.mxu0 0.0
    %4853 = vmatprep.subr.mxu0 0.0
    %4854 = vmatpush1.msra.mxu0 0.0
    %4855 = vmatprep.subr.mxu0 0.0
    %4856 = vmatpush1.msra.mxu0 0.0
    %4857 = vmatprep.subr.mxu0 0.0
    %4858 = vmatpush1.msra.mxu0 0.0
    %4859 = vmatprep.subr.mxu0 0.0
    %4860 = vmatpush1.msra.mxu0 0.0
    %4861 = vmatprep.subr.mxu0 0.0
    %4862 = vmatpush1.msra.mxu0 0.0
    %4863 = vmatprep.subr.mxu0 0.0
    %4864 = vmatpush1.msra.mxu0 0.0
    %4865 = vmatprep.subr.mxu0 0.0
    %4866 = vmatpush1.msra.mxu0 0.0
    %4867 = vmatprep.subr.mxu0 0.0
    %4868 = vmatpush1.msra.mxu0 %v3986
    %4869 = vmatprep.subr.mxu0 0.0
    %4870 = vmatpush2.msra.mxu0 0.0
    %4871 = vmatprep.subr.mxu0 0.0
    %4872 = vmatpush2.msra.mxu0 0.0
    %4873 = vmatprep.subr.mxu0 0.0
    %4874 = vmatpush2.msra.mxu0 0.0
    %4875 = vmatprep.subr.mxu0 0.0
    %4876 = vmatpush2.msra.mxu0 0.0
    %4877 = vmatprep.subr.mxu0 0.0
    %4878 = vmatpush2.msra.mxu0 0.0
    %4879 = vmatprep.subr.mxu0 0.0
    %4880 = vmatpush2.msra.mxu0 0.0
    %4881 = vmatprep.subr.mxu0 0.0
    %4882 = vmatpush2.msra.mxu0 0.0
    %4883 = vmatprep.subr.mxu0 0.0
    %4884 = vmatpush2.msra.mxu0 0.0
    %4885 = vmatprep.subr.mxu0 0.0
    %4886 = vmatpush2.msra.mxu0 0.0
    %4887 = vmatprep.subr.mxu0 0.0
    %4888 = vmatpush2.msra.mxu0 0.0
    %4889 = vmatprep.subr.mxu0 0.0
    %4890 = vmatpush2.msra.mxu0 0.0
    %4891 = vmatprep.subr.mxu0 0.0
    %4892 = vmatpush2.msra.mxu0 0.0
    %4893 = vmatprep.subr.mxu0 0.0
    %4894 = vmatpush2.msra.mxu0 0.0
    %4895 = vmatprep.subr.mxu0 0.0
    %4896 = vmatpush2.msra.mxu0 0.0
    %4897 = vmatprep.subr.mxu0 0.0
    %4898 = vmatpush2.msra.mxu0 0.0
    %4899 = vmatprep.subr.mxu0 0.0
    %4900 = vmatpush2.msra.mxu0 0.0
    %4901 = vmatprep.mubr.f32.mxu0 0.0
    %4902 = vmatmul.mubr.f32.gmra.mxu0 %v4835
    %v4903 = vpop.f32.mrf.mxu0
    %v4904 = vadd.f32 0.0, %v4903
    %v4905 = vpop.f32.mrf.mxu0
    %4906 = vdwg.mxu0
    %v4908 = vsel %vm1030, %v4750, 0
    %4910 = vmatprep.subr.mxu0 0.0
    %4911 = vmatpush1.msra.mxu0 0.0
    %4912 = vmatprep.subr.mxu0 0.0
    %4913 = vmatpush1.msra.mxu0 0.0
    %4914 = vmatprep.subr.mxu0 0.0
    %4915 = vmatpush1.msra.mxu0 0.0
    %4916 = vmatprep.subr.mxu0 0.0
    %4917 = vmatpush1.msra.mxu0 0.0
    %4918 = vmatprep.subr.mxu0 0.0
    %4919 = vmatpush1.msra.mxu0 0.0
    %4920 = vmatprep.subr.mxu0 0.0
    %4921 = vmatpush1.msra.mxu0 0.0
    %4922 = vmatprep.subr.mxu0 0.0
    %4923 = vmatpush1.msra.mxu0 0.0
    %4924 = vmatprep.subr.mxu0 0.0
    %4925 = vmatpush1.msra.mxu0 0.0
    %4926 = vmatprep.subr.mxu0 0.0
    %4927 = vmatpush1.msra.mxu0 0.0
    %4928 = vmatprep.subr.mxu0 0.0
    %4929 = vmatpush1.msra.mxu0 0.0
    %4930 = vmatprep.subr.mxu0 0.0
    %4931 = vmatpush1.msra.mxu0 0.0
    %4932 = vmatprep.subr.mxu0 0.0
    %4933 = vmatpush1.msra.mxu0 0.0
    %4934 = vmatprep.subr.mxu0 0.0
    %4935 = vmatpush1.msra.mxu0 0.0
    %4936 = vmatprep.subr.mxu0 0.0
    %4937 = vmatpush1.msra.mxu0 0.0
    %4938 = vmatprep.subr.mxu0 0.0
    %4939 = vmatpush1.msra.mxu0 0.0
    %4940 = vmatprep.subr.mxu0 0.0
    %4941 = vmatpush1.msra.mxu0 %v3987
    %4942 = vmatprep.subr.mxu0 0.0
    %4943 = vmatpush2.msra.mxu0 0.0
    %4944 = vmatprep.subr.mxu0 0.0
    %4945 = vmatpush2.msra.mxu0 0.0
    %4946 = vmatprep.subr.mxu0 0.0
    %4947 = vmatpush2.msra.mxu0 0.0
    %4948 = vmatprep.subr.mxu0 0.0
    %4949 = vmatpush2.msra.mxu0 0.0
    %4950 = vmatprep.subr.mxu0 0.0
    %4951 = vmatpush2.msra.mxu0 0.0
    %4952 = vmatprep.subr.mxu0 0.0
    %4953 = vmatpush2.msra.mxu0 0.0
    %4954 = vmatprep.subr.mxu0 0.0
    %4955 = vmatpush2.msra.mxu0 0.0
    %4956 = vmatprep.subr.mxu0 0.0
    %4957 = vmatpush2.msra.mxu0 0.0
    %4958 = vmatprep.subr.mxu0 0.0
    %4959 = vmatpush2.msra.mxu0 0.0
    %4960 = vmatprep.subr.mxu0 0.0
    %4961 = vmatpush2.msra.mxu0 0.0
    %4962 = vmatprep.subr.mxu0 0.0
    %4963 = vmatpush2.msra.mxu0 0.0
    %4964 = vmatprep.subr.mxu0 0.0
    %4965 = vmatpush2.msra.mxu0 0.0
    %4966 = vmatprep.subr.mxu0 0.0
    %4967 = vmatpush2.msra.mxu0 0.0
    %4968 = vmatprep.subr.mxu0 0.0
    %4969 = vmatpush2.msra.mxu0 0.0
    %4970 = vmatprep.subr.mxu0 0.0
    %4971 = vmatpush2.msra.mxu0 0.0
    %4972 = vmatprep.subr.mxu0 0.0
    %4973 = vmatpush2.msra.mxu0 0.0
    %4974 = vmatprep.mubr.f32.mxu0 0.0
    %4975 = vmatmul.mubr.f32.gmra.mxu0 %v4908
    %v4976 = vpop.f32.mrf.mxu0
    %v4977 = vadd.f32 0.0, %v4976
    %v4978 = vpop.f32.mrf.mxu0
    %4979 = vdwg.mxu0
    %v4981 = vsel %vm1030, %v4752, 0
    %4983 = vmatprep.subr.mxu0 0.0
    %4984 = vmatpush1.msra.mxu0 0.0
    %4985 = vmatprep.subr.mxu0 0.0
    %4986 = vmatpush1.msra.mxu0 0.0
    %4987 = vmatprep.subr.mxu0 0.0
    %4988 = vmatpush1.msra.mxu0 0.0
    %4989 = vmatprep.subr.mxu0 0.0
    %4990 = vmatpush1.msra.mxu0 0.0
    %4991 = vmatprep.subr.mxu0 0.0
    %4992 = vmatpush1.msra.mxu0 0.0
    %4993 = vmatprep.subr.mxu0 0.0
    %4994 = vmatpush1.msra.mxu0 0.0
    %4995 = vmatprep.subr.mxu0 0.0
    %4996 = vmatpush1.msra.mxu0 0.0
    %4997 = vmatprep.subr.mxu0 0.0
    %4998 = vmatpush1.msra.mxu0 0.0
    %4999 = vmatprep.subr.mxu0 0.0
    %5000 = vmatpush1.msra.mxu0 0.0
    %5001 = vmatprep.subr.mxu0 0.0
    %5002 = vmatpush1.msra.mxu0 0.0
    %5003 = vmatprep.subr.mxu0 0.0
    %5004 = vmatpush1.msra.mxu0 0.0
    %5005 = vmatprep.subr.mxu0 0.0
    %5006 = vmatpush1.msra.mxu0 0.0
    %5007 = vmatprep.subr.mxu0 0.0
    %5008 = vmatpush1.msra.mxu0 0.0
    %5009 = vmatprep.subr.mxu0 0.0
    %5010 = vmatpush1.msra.mxu0 0.0
    %5011 = vmatprep.subr.mxu0 0.0
    %5012 = vmatpush1.msra.mxu0 0.0
    %5013 = vmatprep.subr.mxu0 0.0
    %5014 = vmatpush1.msra.mxu0 %v3988
    %5015 = vmatprep.subr.mxu0 0.0
    %5016 = vmatpush2.msra.mxu0 0.0
    %5017 = vmatprep.subr.mxu0 0.0
    %5018 = vmatpush2.msra.mxu0 0.0
    %5019 = vmatprep.subr.mxu0 0.0
    %5020 = vmatpush2.msra.mxu0 0.0
    %5021 = vmatprep.subr.mxu0 0.0
    %5022 = vmatpush2.msra.mxu0 0.0
    %5023 = vmatprep.subr.mxu0 0.0
    %5024 = vmatpush2.msra.mxu0 0.0
    %5025 = vmatprep.subr.mxu0 0.0
    %5026 = vmatpush2.msra.mxu0 0.0
    %5027 = vmatprep.subr.mxu0 0.0
    %5028 = vmatpush2.msra.mxu0 0.0
    %5029 = vmatprep.subr.mxu0 0.0
    %5030 = vmatpush2.msra.mxu0 0.0
    %5031 = vmatprep.subr.mxu0 0.0
    %5032 = vmatpush2.msra.mxu0 0.0
    %5033 = vmatprep.subr.mxu0 0.0
    %5034 = vmatpush2.msra.mxu0 0.0
    %5035 = vmatprep.subr.mxu0 0.0
    %5036 = vmatpush2.msra.mxu0 0.0
    %5037 = vmatprep.subr.mxu0 0.0
    %5038 = vmatpush2.msra.mxu0 0.0
    %5039 = vmatprep.subr.mxu0 0.0
    %5040 = vmatpush2.msra.mxu0 0.0
    %5041 = vmatprep.subr.mxu0 0.0
    %5042 = vmatpush2.msra.mxu0 0.0
    %5043 = vmatprep.subr.mxu0 0.0
    %5044 = vmatpush2.msra.mxu0 0.0
    %5045 = vmatprep.subr.mxu0 0.0
    %5046 = vmatpush2.msra.mxu0 0.0
    %5047 = vmatprep.mubr.f32.mxu0 0.0
    %5048 = vmatmul.mubr.f32.gmra.mxu0 %v4981
    %v5049 = vpop.f32.mrf.mxu0
    %v5050 = vadd.f32 0.0, %v5049
    %v5051 = vpop.f32.mrf.mxu0
    %5052 = vdwg.mxu0
    %v5054 = vsel %vm1030, %v4754, 0
    %5056 = vmatprep.subr.mxu0 0.0
    %5057 = vmatpush1.msra.mxu0 0.0
    %5058 = vmatprep.subr.mxu0 0.0
    %5059 = vmatpush1.msra.mxu0 0.0
    %5060 = vmatprep.subr.mxu0 0.0
    %5061 = vmatpush1.msra.mxu0 0.0
    %5062 = vmatprep.subr.mxu0 0.0
    %5063 = vmatpush1.msra.mxu0 0.0
    %5064 = vmatprep.subr.mxu0 0.0
    %5065 = vmatpush1.msra.mxu0 0.0
    %5066 = vmatprep.subr.mxu0 0.0
    %5067 = vmatpush1.msra.mxu0 0.0
    %5068 = vmatprep.subr.mxu0 0.0
    %5069 = vmatpush1.msra.mxu0 0.0
    %5070 = vmatprep.subr.mxu0 0.0
    %5071 = vmatpush1.msra.mxu0 0.0
    %5072 = vmatprep.subr.mxu0 0.0
    %5073 = vmatpush1.msra.mxu0 0.0
    %5074 = vmatprep.subr.mxu0 0.0
    %5075 = vmatpush1.msra.mxu0 0.0
    %5076 = vmatprep.subr.mxu0 0.0
    %5077 = vmatpush1.msra.mxu0 0.0
    %5078 = vmatprep.subr.mxu0 0.0
    %5079 = vmatpush1.msra.mxu0 0.0
    %5080 = vmatprep.subr.mxu0 0.0
    %5081 = vmatpush1.msra.mxu0 0.0
    %5082 = vmatprep.subr.mxu0 0.0
    %5083 = vmatpush1.msra.mxu0 0.0
    %5084 = vmatprep.subr.mxu0 0.0
    %5085 = vmatpush1.msra.mxu0 0.0
    %5086 = vmatprep.subr.mxu0 0.0
    %5087 = vmatpush1.msra.mxu0 %v4053
    %5088 = vmatprep.subr.mxu0 0.0
    %5089 = vmatpush2.msra.mxu0 0.0
    %5090 = vmatprep.subr.mxu0 0.0
    %5091 = vmatpush2.msra.mxu0 0.0
    %5092 = vmatprep.subr.mxu0 0.0
    %5093 = vmatpush2.msra.mxu0 0.0
    %5094 = vmatprep.subr.mxu0 0.0
    %5095 = vmatpush2.msra.mxu0 0.0
    %5096 = vmatprep.subr.mxu0 0.0
    %5097 = vmatpush2.msra.mxu0 0.0
    %5098 = vmatprep.subr.mxu0 0.0
    %5099 = vmatpush2.msra.mxu0 0.0
    %5100 = vmatprep.subr.mxu0 0.0
    %5101 = vmatpush2.msra.mxu0 0.0
    %5102 = vmatprep.subr.mxu0 0.0
    %5103 = vmatpush2.msra.mxu0 0.0
    %5104 = vmatprep.subr.mxu0 0.0
    %5105 = vmatpush2.msra.mxu0 0.0
    %5106 = vmatprep.subr.mxu0 0.0
    %5107 = vmatpush2.msra.mxu0 0.0
    %5108 = vmatprep.subr.mxu0 0.0
    %5109 = vmatpush2.msra.mxu0 0.0
    %5110 = vmatprep.subr.mxu0 0.0
    %5111 = vmatpush2.msra.mxu0 0.0
    %5112 = vmatprep.subr.mxu0 0.0
    %5113 = vmatpush2.msra.mxu0 0.0
    %5114 = vmatprep.subr.mxu0 0.0
    %5115 = vmatpush2.msra.mxu0 0.0
    %5116 = vmatprep.subr.mxu0 0.0
    %5117 = vmatpush2.msra.mxu0 0.0
    %5118 = vmatprep.subr.mxu0 0.0
    %5119 = vmatpush2.msra.mxu0 0.0
    %5120 = vmatprep.mubr.f32.mxu0 0.0
    %5121 = vmatmul.mubr.f32.gmra.mxu0 %v5054
    %v5122 = vpop.f32.mrf.mxu0
    %v5123 = vadd.f32 0.0, %v5122
    %v5124 = vpop.f32.mrf.mxu0
    %5125 = vdwg.mxu0
    %v5127 = vsel %vm1030, %v4756, 0
    %5129 = vmatprep.subr.mxu0 0.0
    %5130 = vmatpush1.msra.mxu0 0.0
    %5131 = vmatprep.subr.mxu0 0.0
    %5132 = vmatpush1.msra.mxu0 0.0
    %5133 = vmatprep.subr.mxu0 0.0
    %5134 = vmatpush1.msra.mxu0 0.0
    %5135 = vmatprep.subr.mxu0 0.0
    %5136 = vmatpush1.msra.mxu0 0.0
    %5137 = vmatprep.subr.mxu0 0.0
    %5138 = vmatpush1.msra.mxu0 0.0
    %5139 = vmatprep.subr.mxu0 0.0
    %5140 = vmatpush1.msra.mxu0 0.0
    %5141 = vmatprep.subr.mxu0 0.0
    %5142 = vmatpush1.msra.mxu0 0.0
    %5143 = vmatprep.subr.mxu0 0.0
    %5144 = vmatpush1.msra.mxu0 0.0
    %5145 = vmatprep.subr.mxu0 0.0
    %5146 = vmatpush1.msra.mxu0 0.0
    %5147 = vmatprep.subr.mxu0 0.0
    %5148 = vmatpush1.msra.mxu0 0.0
    %5149 = vmatprep.subr.mxu0 0.0
    %5150 = vmatpush1.msra.mxu0 0.0
    %5151 = vmatprep.subr.mxu0 0.0
    %5152 = vmatpush1.msra.mxu0 0.0
    %5153 = vmatprep.subr.mxu0 0.0
    %5154 = vmatpush1.msra.mxu0 0.0
    %5155 = vmatprep.subr.mxu0 0.0
    %5156 = vmatpush1.msra.mxu0 0.0
    %5157 = vmatprep.subr.mxu0 0.0
    %5158 = vmatpush1.msra.mxu0 0.0
    %5159 = vmatprep.subr.mxu0 0.0
    %5160 = vmatpush1.msra.mxu0 %v4054
    %5161 = vmatprep.subr.mxu0 0.0
    %5162 = vmatpush2.msra.mxu0 0.0
    %5163 = vmatprep.subr.mxu0 0.0
    %5164 = vmatpush2.msra.mxu0 0.0
    %5165 = vmatprep.subr.mxu0 0.0
    %5166 = vmatpush2.msra.mxu0 0.0
    %5167 = vmatprep.subr.mxu0 0.0
    %5168 = vmatpush2.msra.mxu0 0.0
    %5169 = vmatprep.subr.mxu0 0.0
    %5170 = vmatpush2.msra.mxu0 0.0
    %5171 = vmatprep.subr.mxu0 0.0
    %5172 = vmatpush2.msra.mxu0 0.0
    %5173 = vmatprep.subr.mxu0 0.0
    %5174 = vmatpush2.msra.mxu0 0.0
    %5175 = vmatprep.subr.mxu0 0.0
    %5176 = vmatpush2.msra.mxu0 0.0
    %5177 = vmatprep.subr.mxu0 0.0
    %5178 = vmatpush2.msra.mxu0 0.0
    %5179 = vmatprep.subr.mxu0 0.0
    %5180 = vmatpush2.msra.mxu0 0.0
    %5181 = vmatprep.subr.mxu0 0.0
    %5182 = vmatpush2.msra.mxu0 0.0
    %5183 = vmatprep.subr.mxu0 0.0
    %5184 = vmatpush2.msra.mxu0 0.0
    %5185 = vmatprep.subr.mxu0 0.0
    %5186 = vmatpush2.msra.mxu0 0.0
    %5187 = vmatprep.subr.mxu0 0.0
    %5188 = vmatpush2.msra.mxu0 0.0
    %5189 = vmatprep.subr.mxu0 0.0
    %5190 = vmatpush2.msra.mxu0 0.0
    %5191 = vmatprep.subr.mxu0 0.0
    %5192 = vmatpush2.msra.mxu0 0.0
    %5193 = vmatprep.mubr.f32.mxu0 0.0
    %5194 = vmatmul.mubr.f32.gmra.mxu0 %v5127
    %v5195 = vpop.f32.mrf.mxu0
    %v5196 = vadd.f32 0.0, %v5195
    %v5197 = vpop.f32.mrf.mxu0
    %5198 = vdwg.mxu0
    %v5200 = vsel %vm1030, %v4758, 0
    %5202 = vmatprep.subr.mxu0 0.0
    %5203 = vmatpush1.msra.mxu0 0.0
    %5204 = vmatprep.subr.mxu0 0.0
    %5205 = vmatpush1.msra.mxu0 0.0
    %5206 = vmatprep.subr.mxu0 0.0
    %5207 = vmatpush1.msra.mxu0 0.0
    %5208 = vmatprep.subr.mxu0 0.0
    %5209 = vmatpush1.msra.mxu0 0.0
    %5210 = vmatprep.subr.mxu0 0.0
    %5211 = vmatpush1.msra.mxu0 0.0
    %5212 = vmatprep.subr.mxu0 0.0
    %5213 = vmatpush1.msra.mxu0 0.0
    %5214 = vmatprep.subr.mxu0 0.0
    %5215 = vmatpush1.msra.mxu0 0.0
    %5216 = vmatprep.subr.mxu0 0.0
    %5217 = vmatpush1.msra.mxu0 0.0
    %5218 = vmatprep.subr.mxu0 0.0
    %5219 = vmatpush1.msra.mxu0 0.0
    %5220 = vmatprep.subr.mxu0 0.0
    %5221 = vmatpush1.msra.mxu0 0.0
    %5222 = vmatprep.subr.mxu0 0.0
    %5223 = vmatpush1.msra.mxu0 0.0
    %5224 = vmatprep.subr.mxu0 0.0
    %5225 = vmatpush1.msra.mxu0 0.0
    %5226 = vmatprep.subr.mxu0 0.0
    %5227 = vmatpush1.msra.mxu0 0.0
    %5228 = vmatprep.subr.mxu0 0.0
    %5229 = vmatpush1.msra.mxu0 0.0
    %5230 = vmatprep.subr.mxu0 0.0
    %5231 = vmatpush1.msra.mxu0 0.0
    %5232 = vmatprep.subr.mxu0 0.0
    %5233 = vmatpush1.msra.mxu0 %v4055
    %5234 = vmatprep.subr.mxu0 0.0
    %5235 = vmatpush2.msra.mxu0 0.0
    %5236 = vmatprep.subr.mxu0 0.0
    %5237 = vmatpush2.msra.mxu0 0.0
    %5238 = vmatprep.subr.mxu0 0.0
    %5239 = vmatpush2.msra.mxu0 0.0
    %5240 = vmatprep.subr.mxu0 0.0
    %5241 = vmatpush2.msra.mxu0 0.0
    %5242 = vmatprep.subr.mxu0 0.0
    %5243 = vmatpush2.msra.mxu0 0.0
    %5244 = vmatprep.subr.mxu0 0.0
    %5245 = vmatpush2.msra.mxu0 0.0
    %5246 = vmatprep.subr.mxu0 0.0
    %5247 = vmatpush2.msra.mxu0 0.0
    %5248 = vmatprep.subr.mxu0 0.0
    %5249 = vmatpush2.msra.mxu0 0.0
    %5250 = vmatprep.subr.mxu0 0.0
    %5251 = vmatpush2.msra.mxu0 0.0
    %5252 = vmatprep.subr.mxu0 0.0
    %5253 = vmatpush2.msra.mxu0 0.0
    %5254 = vmatprep.subr.mxu0 0.0
    %5255 = vmatpush2.msra.mxu0 0.0
    %5256 = vmatprep.subr.mxu0 0.0
    %5257 = vmatpush2.msra.mxu0 0.0
    %5258 = vmatprep.subr.mxu0 0.0
    %5259 = vmatpush2.msra.mxu0 0.0
    %5260 = vmatprep.subr.mxu0 0.0
    %5261 = vmatpush2.msra.mxu0 0.0
    %5262 = vmatprep.subr.mxu0 0.0
    %5263 = vmatpush2.msra.mxu0 0.0
    %5264 = vmatprep.subr.mxu0 0.0
    %5265 = vmatpush2.msra.mxu0 0.0
    %5266 = vmatprep.mubr.f32.mxu0 0.0
    %5267 = vmatmul.mubr.f32.gmra.mxu0 %v5200
    %v5268 = vpop.f32.mrf.mxu0
    %v5269 = vadd.f32 0.0, %v5268
    %v5270 = vpop.f32.mrf.mxu0
    %5271 = vdwg.mxu0
    %v5273 = vsel %vm1030, %v4760, 0
    %5275 = vmatprep.subr.mxu0 0.0
    %5276 = vmatpush1.msra.mxu0 0.0
    %5277 = vmatprep.subr.mxu0 0.0
    %5278 = vmatpush1.msra.mxu0 0.0
    %5279 = vmatprep.subr.mxu0 0.0
    %5280 = vmatpush1.msra.mxu0 0.0
    %5281 = vmatprep.subr.mxu0 0.0
    %5282 = vmatpush1.msra.mxu0 0.0
    %5283 = vmatprep.subr.mxu0 0.0
    %5284 = vmatpush1.msra.mxu0 0.0
    %5285 = vmatprep.subr.mxu0 0.0
    %5286 = vmatpush1.msra.mxu0 0.0
    %5287 = vmatprep.subr.mxu0 0.0
    %5288 = vmatpush1.msra.mxu0 0.0
    %5289 = vmatprep.subr.mxu0 0.0
    %5290 = vmatpush1.msra.mxu0 0.0
    %5291 = vmatprep.subr.mxu0 0.0
    %5292 = vmatpush1.msra.mxu0 0.0
    %5293 = vmatprep.subr.mxu0 0.0
    %5294 = vmatpush1.msra.mxu0 0.0
    %5295 = vmatprep.subr.mxu0 0.0
    %5296 = vmatpush1.msra.mxu0 0.0
    %5297 = vmatprep.subr.mxu0 0.0
    %5298 = vmatpush1.msra.mxu0 0.0
    %5299 = vmatprep.subr.mxu0 0.0
    %5300 = vmatpush1.msra.mxu0 0.0
    %5301 = vmatprep.subr.mxu0 0.0
    %5302 = vmatpush1.msra.mxu0 0.0
    %5303 = vmatprep.subr.mxu0 0.0
    %5304 = vmatpush1.msra.mxu0 0.0
    %5305 = vmatprep.subr.mxu0 0.0
    %5306 = vmatpush1.msra.mxu0 %v4056
    %5307 = vmatprep.subr.mxu0 0.0
    %5308 = vmatpush2.msra.mxu0 0.0
    %5309 = vmatprep.subr.mxu0 0.0
    %5310 = vmatpush2.msra.mxu0 0.0
    %5311 = vmatprep.subr.mxu0 0.0
    %5312 = vmatpush2.msra.mxu0 0.0
    %5313 = vmatprep.subr.mxu0 0.0
    %5314 = vmatpush2.msra.mxu0 0.0
    %5315 = vmatprep.subr.mxu0 0.0
    %5316 = vmatpush2.msra.mxu0 0.0
    %5317 = vmatprep.subr.mxu0 0.0
    %5318 = vmatpush2.msra.mxu0 0.0
    %5319 = vmatprep.subr.mxu0 0.0
    %5320 = vmatpush2.msra.mxu0 0.0
    %5321 = vmatprep.subr.mxu0 0.0
    %5322 = vmatpush2.msra.mxu0 0.0
    %5323 = vmatprep.subr.mxu0 0.0
    %5324 = vmatpush2.msra.mxu0 0.0
    %5325 = vmatprep.subr.mxu0 0.0
    %5326 = vmatpush2.msra.mxu0 0.0
    %5327 = vmatprep.subr.mxu0 0.0
    %5328 = vmatpush2.msra.mxu0 0.0
    %5329 = vmatprep.subr.mxu0 0.0
    %5330 = vmatpush2.msra.mxu0 0.0
    %5331 = vmatprep.subr.mxu0 0.0
    %5332 = vmatpush2.msra.mxu0 0.0
    %5333 = vmatprep.subr.mxu0 0.0
    %5334 = vmatpush2.msra.mxu0 0.0
    %5335 = vmatprep.subr.mxu0 0.0
    %5336 = vmatpush2.msra.mxu0 0.0
    %5337 = vmatprep.subr.mxu0 0.0
    %5338 = vmatpush2.msra.mxu0 0.0
    %5339 = vmatprep.mubr.f32.mxu0 0.0
    %5340 = vmatmul.mubr.f32.gmra.mxu0 %v5273
    %v5341 = vpop.f32.mrf.mxu0
    %v5342 = vadd.f32 0.0, %v5341
    %v5343 = vpop.f32.mrf.mxu0
    %5344 = vdwg.mxu0
    %v5345 = vcombine.low %v4831, %v4977
    %v5346 = vcombine.high %v4831, %v4977
    %v5348 = vunpack.c.l.s4 1983009808
    %v5349 = vunpack.c.0.s8 %v5348
    %v5350 = vlaneseq
    %v5351 = vshrl.u32 %v5350, 7
    %v5352 = vsub.s32 %v5349, %v5351
    %v5353 = vrot.slane %v5345, %v5352
    %v5355 = vunpack.c.l.s4 1983009808
    %v5356 = vunpack.c.0.s8 %v5355
    %v5357 = vlaneseq
    %v5358 = vshrl.u32 %v5357, 7
    %v5359 = vsub.s32 %v5356, %v5358
    %v5360 = vrot.slane %v5346, %v5359
    %v5361 = vcombine.low %v4904, %v5050
    %v5362 = vcombine.high %v4904, %v5050
    %v5364 = vunpack.c.l.s4 1983009808
    %v5365 = vunpack.c.0.s8 %v5364
    %v5366 = vlaneseq
    %v5367 = vshrl.u32 %v5366, 7
    %v5368 = vsub.s32 %v5365, %v5367
    %v5369 = vrot.slane %v5361, %v5368
    %v5371 = vunpack.c.l.s4 1983009808
    %v5372 = vunpack.c.0.s8 %v5371
    %v5373 = vlaneseq
    %v5374 = vshrl.u32 %v5373, 7
    %v5375 = vsub.s32 %v5372, %v5374
    %v5376 = vrot.slane %v5362, %v5375
    %v5377 = vcombine.low %v5353, %v5369
    %v5378 = vcombine.high %v5353, %v5369
    %v5380 = vunpack.c.l.s4 1934713408
    %v5381 = vunpack.c.0.s8 %v5380
    %v5382 = vlaneseq
    %v5383 = vshrl.u32 %v5382, 7
    %v5384 = vsub.s32 %v5381, %v5383
    %v5385 = vrot.slane %v5377, %v5384
    %v5387 = vunpack.c.l.s4 1934713408
    %v5388 = vunpack.c.0.s8 %v5387
    %v5389 = vlaneseq
    %v5390 = vshrl.u32 %v5389, 7
    %v5391 = vsub.s32 %v5388, %v5390
    %v5392 = vrot.slane %v5378, %v5391
    %v5393 = vcombine.low %v5360, %v5376
    %v5394 = vcombine.high %v5360, %v5376
    %v5396 = vunpack.c.l.s4 1934713408
    %v5397 = vunpack.c.0.s8 %v5396
    %v5398 = vlaneseq
    %v5399 = vshrl.u32 %v5398, 7
    %v5400 = vsub.s32 %v5397, %v5399
    %v5401 = vrot.slane %v5393, %v5400
    %v5403 = vunpack.c.l.s4 1934713408
    %v5404 = vunpack.c.0.s8 %v5403
    %v5405 = vlaneseq
    %v5406 = vshrl.u32 %v5405, 7
    %v5407 = vsub.s32 %v5404, %v5406
    %v5408 = vrot.slane %v5394, %v5407
    %v5409 = vcombine.high %v5385, 0.0
    %v5410 = vcombine.high %v5392, 0.0
    %v5411 = vcombine.high %v5401, 0.0
    %v5412 = vcombine.high %v5408, 0.0
    %v5413 = vcombine.low %v5123, %v5269
    %v5414 = vcombine.high %v5123, %v5269
    %v5416 = vunpack.c.l.s4 1983009808
    %v5417 = vunpack.c.0.s8 %v5416
    %v5418 = vlaneseq
    %v5419 = vshrl.u32 %v5418, 7
    %v5420 = vsub.s32 %v5417, %v5419
    %v5421 = vrot.slane %v5413, %v5420
    %v5423 = vunpack.c.l.s4 1983009808
    %v5424 = vunpack.c.0.s8 %v5423
    %v5425 = vlaneseq
    %v5426 = vshrl.u32 %v5425, 7
    %v5427 = vsub.s32 %v5424, %v5426
    %v5428 = vrot.slane %v5414, %v5427
    %v5429 = vcombine.low %v5196, %v5342
    %v5430 = vcombine.high %v5196, %v5342
    %v5432 = vunpack.c.l.s4 1983009808
    %v5433 = vunpack.c.0.s8 %v5432
    %v5434 = vlaneseq
    %v5435 = vshrl.u32 %v5434, 7
    %v5436 = vsub.s32 %v5433, %v5435
    %v5437 = vrot.slane %v5429, %v5436
    %v5439 = vunpack.c.l.s4 1983009808
    %v5440 = vunpack.c.0.s8 %v5439
    %v5441 = vlaneseq
    %v5442 = vshrl.u32 %v5441, 7
    %v5443 = vsub.s32 %v5440, %v5442
    %v5444 = vrot.slane %v5430, %v5443
    %v5445 = vcombine.low %v5421, %v5437
    %v5446 = vcombine.high %v5421, %v5437
    %v5448 = vunpack.c.l.s4 1934713408
    %v5449 = vunpack.c.0.s8 %v5448
    %v5450 = vlaneseq
    %v5451 = vshrl.u32 %v5450, 7
    %v5452 = vsub.s32 %v5449, %v5451
    %v5453 = vrot.slane %v5445, %v5452
    %v5455 = vunpack.c.l.s4 1934713408
    %v5456 = vunpack.c.0.s8 %v5455
    %v5457 = vlaneseq
    %v5458 = vshrl.u32 %v5457, 7
    %v5459 = vsub.s32 %v5456, %v5458
    %v5460 = vrot.slane %v5446, %v5459
    %v5461 = vcombine.low %v5428, %v5444
    %v5462 = vcombine.high %v5428, %v5444
    %v5464 = vunpack.c.l.s4 1934713408
    %v5465 = vunpack.c.0.s8 %v5464
    %v5466 = vlaneseq
    %v5467 = vshrl.u32 %v5466, 7
    %v5468 = vsub.s32 %v5465, %v5467
    %v5469 = vrot.slane %v5461, %v5468
    %v5471 = vunpack.c.l.s4 1934713408
    %v5472 = vunpack.c.0.s8 %v5471
    %v5473 = vlaneseq
    %v5474 = vshrl.u32 %v5473, 7
    %v5475 = vsub.s32 %v5472, %v5474
    %v5476 = vrot.slane %v5462, %v5475
    %v5477 = vcombine.high %v5453, 0.0
    %v5478 = vcombine.high %v5460, 0.0
    %v5479 = vcombine.high %v5469, 0.0
    %v5480 = vcombine.high %v5476, 0.0
    %v5481 = vcombine.low %v5385, %v5392
    %v5483 = vunpack.c.l.s4 1983009808
    %v5484 = vunpack.c.0.s8 %v5483
    %v5485 = vlaneseq
    %v5486 = vshrl.u32 %v5485, 7
    %v5487 = vsub.s32 %v5484, %v5486
    %v5488 = vrot.slane %v5481, %v5487
    %v5489 = vcombine.low %v5409, %v5410
    %v5491 = vunpack.c.l.s4 1983009808
    %v5492 = vunpack.c.0.s8 %v5491
    %v5493 = vlaneseq
    %v5494 = vshrl.u32 %v5493, 7
    %v5495 = vsub.s32 %v5492, %v5494
    %v5496 = vrot.slane %v5489, %v5495
    %v5497 = vcombine.low %v5401, %v5408
    %v5499 = vunpack.c.l.s4 1983009808
    %v5500 = vunpack.c.0.s8 %v5499
    %v5501 = vlaneseq
    %v5502 = vshrl.u32 %v5501, 7
    %v5503 = vsub.s32 %v5500, %v5502
    %v5504 = vrot.slane %v5497, %v5503
    %v5505 = vcombine.low %v5411, %v5412
    %v5507 = vunpack.c.l.s4 1983009808
    %v5508 = vunpack.c.0.s8 %v5507
    %v5509 = vlaneseq
    %v5510 = vshrl.u32 %v5509, 7
    %v5511 = vsub.s32 %v5508, %v5510
    %v5512 = vrot.slane %v5505, %v5511
    %v5513 = vcombine.low %v5488, %v5496
    %v5514 = vcombine.high %v5488, %v5496
    %v5516 = vunpack.c.l.s4 1934713408
    %v5517 = vunpack.c.0.s8 %v5516
    %v5518 = vlaneseq
    %v5519 = vshrl.u32 %v5518, 7
    %v5520 = vsub.s32 %v5517, %v5519
    %v5521 = vrot.slane %v5513, %v5520
    %v5523 = vunpack.c.l.s4 1934713408
    %v5524 = vunpack.c.0.s8 %v5523
    %v5525 = vlaneseq
    %v5526 = vshrl.u32 %v5525, 7
    %v5527 = vsub.s32 %v5524, %v5526
    %v5528 = vrot.slane %v5514, %v5527
    %v5529 = vcombine.low %v5504, %v5512
    %v5530 = vcombine.high %v5504, %v5512
    %v5532 = vunpack.c.l.s4 1934713408
    %v5533 = vunpack.c.0.s8 %v5532
    %v5534 = vlaneseq
    %v5535 = vshrl.u32 %v5534, 7
    %v5536 = vsub.s32 %v5533, %v5535
    %v5537 = vrot.slane %v5529, %v5536
    %v5539 = vunpack.c.l.s4 1934713408
    %v5540 = vunpack.c.0.s8 %v5539
    %v5541 = vlaneseq
    %v5542 = vshrl.u32 %v5541, 7
    %v5543 = vsub.s32 %v5540, %v5542
    %v5544 = vrot.slane %v5530, %v5543
    %v5545 = vcombine.low %v5521, %v5537
    %v5546 = vcombine.high %v5521, %v5537
    %v5547 = vcombine.low %v5528, %v5544
    %v5548 = vcombine.high %v5528, %v5544
    %v5549 = vcombine.low %v5453, %v5460
    %v5551 = vunpack.c.l.s4 1983009808
    %v5552 = vunpack.c.0.s8 %v5551
    %v5553 = vlaneseq
    %v5554 = vshrl.u32 %v5553, 7
    %v5555 = vsub.s32 %v5552, %v5554
    %v5556 = vrot.slane %v5549, %v5555
    %v5557 = vcombine.low %v5477, %v5478
    %v5559 = vunpack.c.l.s4 1983009808
    %v5560 = vunpack.c.0.s8 %v5559
    %v5561 = vlaneseq
    %v5562 = vshrl.u32 %v5561, 7
    %v5563 = vsub.s32 %v5560, %v5562
    %v5564 = vrot.slane %v5557, %v5563
    %v5565 = vcombine.low %v5469, %v5476
    %v5567 = vunpack.c.l.s4 1983009808
    %v5568 = vunpack.c.0.s8 %v5567
    %v5569 = vlaneseq
    %v5570 = vshrl.u32 %v5569, 7
    %v5571 = vsub.s32 %v5568, %v5570
    %v5572 = vrot.slane %v5565, %v5571
    %v5573 = vcombine.low %v5479, %v5480
    %v5575 = vunpack.c.l.s4 1983009808
    %v5576 = vunpack.c.0.s8 %v5575
    %v5577 = vlaneseq
    %v5578 = vshrl.u32 %v5577, 7
    %v5579 = vsub.s32 %v5576, %v5578
    %v5580 = vrot.slane %v5573, %v5579
    %v5581 = vcombine.low %v5556, %v5564
    %v5582 = vcombine.high %v5556, %v5564
    %v5584 = vunpack.c.l.s4 1934713408
    %v5585 = vunpack.c.0.s8 %v5584
    %v5586 = vlaneseq
    %v5587 = vshrl.u32 %v5586, 7
    %v5588 = vsub.s32 %v5585, %v5587
    %v5589 = vrot.slane %v5581, %v5588
    %v5591 = vunpack.c.l.s4 1934713408
    %v5592 = vunpack.c.0.s8 %v5591
    %v5593 = vlaneseq
    %v5594 = vshrl.u32 %v5593, 7
    %v5595 = vsub.s32 %v5592, %v5594
    %v5596 = vrot.slane %v5582, %v5595
    %v5597 = vcombine.low %v5572, %v5580
    %v5598 = vcombine.high %v5572, %v5580
    %v5600 = vunpack.c.l.s4 1934713408
    %v5601 = vunpack.c.0.s8 %v5600
    %v5602 = vlaneseq
    %v5603 = vshrl.u32 %v5602, 7
    %v5604 = vsub.s32 %v5601, %v5603
    %v5605 = vrot.slane %v5597, %v5604
    %v5607 = vunpack.c.l.s4 1934713408
    %v5608 = vunpack.c.0.s8 %v5607
    %v5609 = vlaneseq
    %v5610 = vshrl.u32 %v5609, 7
    %v5611 = vsub.s32 %v5608, %v5610
    %v5612 = vrot.slane %v5598, %v5611
    %v5613 = vcombine.low %v5589, %v5605
    %v5614 = vcombine.high %v5589, %v5605
    %v5615 = vcombine.low %v5596, %v5612
    %v5616 = vcombine.high %v5596, %v5612
    %5619 = vrot.lane.b32.xlu0 %v5546, 8
    %v5620 = vpop.permute.xlu0 %5619
    %5621 = vrot.lane.b32.xlu0 %v5614, 8
    %v5622 = vpop.permute.xlu0 %5621
    %5627 = vrot.lane.b32.xlu0 %v5547, 16
    %v5628 = vpop.permute.xlu0 %5627
    %5629 = vrot.lane.b32.xlu0 %v5615, 16
    %v5630 = vpop.permute.xlu0 %5629
    %5635 = vrot.lane.b32.xlu0 %v5548, 24
    %v5636 = vpop.permute.xlu0 %5635
    %5637 = vrot.lane.b32.xlu0 %v5616, 24
    %v5638 = vpop.permute.xlu0 %5637
    %v5641 = vsel %vm1030, %v5545, %v5620
    %v5642 = vsel %vm1030, %v5613, %v5622
    %v5643 = vsel %vm2617, %v5641, %v5628
    %v5644 = vsel %vm2617, %v5642, %v5630
    %v5645 = vsel %vm2620, %v5643, %v5636
    %v5646 = vsel %vm2620, %v5644, %v5638
    %5651 = vrot.lane.b32.xlu0 %v51, 32
    %v5652 = vpop.permute.xlu0 %5651
    %5653 = vrot.lane.b32.xlu0 %v52, 32
    %v5654 = vpop.permute.xlu0 %5653
    %5655 = vrot.lane.b32.xlu0 %v53, 32
    %v5656 = vpop.permute.xlu0 %5655
    %5657 = vrot.lane.b32.xlu0 %v54, 32
    %v5658 = vpop.permute.xlu0 %5657
    %5664 = vrot.lane.b32.xlu0 %v3091, 32
    %v5665 = vpop.permute.xlu0 %5664
    %v5668 = vsel %vm64, %v5645, 0
    %v5671 = vsel %vm64, %v5646, 0
    %5673 = vmatprep.subr.mxu0 0.0
    %5674 = vmatpush1.msra.mxu0 0.0
    %5675 = vmatprep.subr.mxu0 0.0
    %5676 = vmatpush1.msra.mxu0 0.0
    %5677 = vmatprep.subr.mxu0 0.0
    %5678 = vmatpush1.msra.mxu0 0.0
    %5679 = vmatprep.subr.mxu0 0.0
    %5680 = vmatpush1.msra.mxu0 0.0
    %5681 = vmatprep.subr.mxu0 0.0
    %5682 = vmatpush1.msra.mxu0 0.0
    %5683 = vmatprep.subr.mxu0 0.0
    %5684 = vmatpush1.msra.mxu0 0.0
    %5685 = vmatprep.subr.mxu0 0.0
    %5686 = vmatpush1.msra.mxu0 0.0
    %5687 = vmatprep.subr.mxu0 0.0
    %5688 = vmatpush1.msra.mxu0 0.0
    %5689 = vmatprep.subr.mxu0 0.0
    %5690 = vmatpush1.msra.mxu0 0.0
    %5691 = vmatprep.subr.mxu0 0.0
    %5692 = vmatpush1.msra.mxu0 0.0
    %5693 = vmatprep.subr.mxu0 0.0
    %5694 = vmatpush1.msra.mxu0 0.0
    %5695 = vmatprep.subr.mxu0 0.0
    %5696 = vmatpush1.msra.mxu0 0.0
    %5697 = vmatprep.subr.mxu0 0.0
    %5698 = vmatpush1.msra.mxu0 %v5658
    %5699 = vmatprep.subr.mxu0 0.0
    %5700 = vmatpush1.msra.mxu0 %v5656
    %5701 = vmatprep.subr.mxu0 0.0
    %5702 = vmatpush1.msra.mxu0 %v5654
    %5703 = vmatprep.subr.mxu0 0.0
    %5704 = vmatpush1.msra.mxu0 %v5652
    %5705 = vmatprep.subr.mxu0 0.0
    %5706 = vmatpush2.msra.mxu0 0.0
    %5707 = vmatprep.subr.mxu0 0.0
    %5708 = vmatpush2.msra.mxu0 0.0
    %5709 = vmatprep.subr.mxu0 0.0
    %5710 = vmatpush2.msra.mxu0 0.0
    %5711 = vmatprep.subr.mxu0 0.0
    %5712 = vmatpush2.msra.mxu0 0.0
    %5713 = vmatprep.subr.mxu0 0.0
    %5714 = vmatpush2.msra.mxu0 0.0
    %5715 = vmatprep.subr.mxu0 0.0
    %5716 = vmatpush2.msra.mxu0 0.0
    %5717 = vmatprep.subr.mxu0 0.0
    %5718 = vmatpush2.msra.mxu0 0.0
    %5719 = vmatprep.subr.mxu0 0.0
    %5720 = vmatpush2.msra.mxu0 0.0
    %5721 = vmatprep.subr.mxu0 0.0
    %5722 = vmatpush2.msra.mxu0 0.0
    %5723 = vmatprep.subr.mxu0 0.0
    %5724 = vmatpush2.msra.mxu0 0.0
    %5725 = vmatprep.subr.mxu0 0.0
    %5726 = vmatpush2.msra.mxu0 0.0
    %5727 = vmatprep.subr.mxu0 0.0
    %5728 = vmatpush2.msra.mxu0 0.0
    %5729 = vmatprep.subr.mxu0 0.0
    %5730 = vmatpush2.msra.mxu0 0.0
    %5731 = vmatprep.subr.mxu0 0.0
    %5732 = vmatpush2.msra.mxu0 0.0
    %5733 = vmatprep.subr.mxu0 0.0
    %5734 = vmatpush2.msra.mxu0 0.0
    %5735 = vmatprep.subr.mxu0 0.0
    %5736 = vmatpush2.msra.mxu0 0.0
    %5737 = vmatprep.mubr.f32.mxu0 0.0
    %5738 = vmatmul.mubr.f32.gmra.mxu0 %v5668
    %v5739 = vpop.f32.mrf.mxu0
    %v5740 = vadd.f32 %v5665, %v5739
    %v5741 = vpop.f32.mrf.mxu0
    %5742 = vmatprep.mubr.f32.mxu0 0.0
    %5743 = vmatmul.mubr.f32.gmra.mxu0 %v5671
    %v5744 = vpop.f32.mrf.mxu0
    %v5745 = vadd.f32 %v5665, %v5744
    %v5746 = vpop.f32.mrf.mxu0
    %5747 = vdwg.mxu0
    %v5748 = vadd.f32 %v3086, %v5740
    %v5749 = vadd.f32 %v3087, %v5745
    %v5750 = vsel %vm64, %v5748, 0.0
    %5751 = vadd.xlane.f32.xlu0 %v5750
    %v5752 = vpop.xlane.xlu0 %5751
    %v5753 = vsel %vm64, %v5749, 0.0
    %5754 = vadd.xlane.f32.xlu0 %v5753
    %v5755 = vpop.xlane.xlu0 %5754
    %v5756 = vmul.f32 %v5752, %v2732
    %v5757 = vmul.f32 %v5755, %v2732
    %v5758 = vsub.f32 %v5748, %v5756
    %v5759 = vsub.f32 %v5749, %v5757
    %v5760 = vmul.f32 %v5758, %v5758
    %v5761 = vmul.f32 %v5759, %v5759
    %v5762 = vsel %vm64, %v5760, 0.0
    %5763 = vadd.xlane.f32.xlu0 %v5762
    %v5764 = vpop.xlane.xlu0 %5763
    %v5765 = vsel %vm64, %v5761, 0.0
    %5766 = vadd.xlane.f32.xlu0 %v5765
    %v5767 = vpop.xlane.xlu0 %5766
    %v5768 = vmul.f32 %v5764, %v2732
    %v5769 = vmul.f32 %v5767, %v2732
    %v5770 = vadd.f32 %v5768, 1e-05
    %v5771 = vadd.f32 %v5769, 1e-05
    %v5772 = vrsqrt.pop %v5770
    %v5773 = vrsqrt.pop %v5771
    %v5774 = vmul.f32 %v5758, %v5772
    %v5775 = vmul.f32 %v5759, %v5773
    %v5776 = vlaneseq
    %v5777 = vshrl.u32 %v5776, 7
    %v5778 = vsub.s32 1, %v5777
    %v5779 = vrot.slane %v59, %v5778
    %v5780 = vmul.f32 %v5774, %v5779
    %v5781 = vmul.f32 %v5775, %v5779
    %5783 = vrot.lane.b32.xlu0 %v5779, 96
    %v5784 = vpop.permute.xlu0 %5783
    %v5786 = vadd.f32 %v5780, %v5784
    %v5787 = vadd.f32 %v5781, %v5784
    %5788 = vrot.lane.b32.xlu0 %v5779, 64
    %v5789 = vpop.permute.xlu0 %5788
    %v5792 = vsel %vm64, %v5786, 0
    %v5795 = vsel %vm64, %v5787, 0
    %5797 = vmatprep.subr.mxu0 0.0
    %5798 = vmatpush1.msra.mxu0 0.0
    %5799 = vmatprep.subr.mxu0 0.0
    %5800 = vmatpush1.msra.mxu0 0.0
    %5801 = vmatprep.subr.mxu0 0.0
    %5802 = vmatpush1.msra.mxu0 0.0
    %5803 = vmatprep.subr.mxu0 0.0
    %5804 = vmatpush1.msra.mxu0 0.0
    %5805 = vmatprep.subr.mxu0 0.0
    %5806 = vmatpush1.msra.mxu0 0.0
    %5807 = vmatprep.subr.mxu0 0.0
    %5808 = vmatpush1.msra.mxu0 0.0
    %5809 = vmatprep.subr.mxu0 0.0
    %5810 = vmatpush1.msra.mxu0 0.0
    %5811 = vmatprep.subr.mxu0 0.0
    %5812 = vmatpush1.msra.mxu0 0.0
    %5813 = vmatprep.subr.mxu0 0.0
    %5814 = vmatpush1.msra.mxu0 0.0
    %5815 = vmatprep.subr.mxu0 0.0
    %5816 = vmatpush1.msra.mxu0 0.0
    %5817 = vmatprep.subr.mxu0 0.0
    %5818 = vmatpush1.msra.mxu0 0.0
    %5819 = vmatprep.subr.mxu0 0.0
    %5820 = vmatpush1.msra.mxu0 0.0
    %5821 = vmatprep.subr.mxu0 0.0
    %5822 = vmatpush1.msra.mxu0 %v58
    %5823 = vmatprep.subr.mxu0 0.0
    %5824 = vmatpush1.msra.mxu0 %v57
    %5825 = vmatprep.subr.mxu0 0.0
    %5826 = vmatpush1.msra.mxu0 %v56
    %5827 = vmatprep.subr.mxu0 0.0
    %5828 = vmatpush1.msra.mxu0 %v55
    %5829 = vmatprep.subr.mxu0 0.0
    %5830 = vmatpush2.msra.mxu0 0.0
    %5831 = vmatprep.subr.mxu0 0.0
    %5832 = vmatpush2.msra.mxu0 0.0
    %5833 = vmatprep.subr.mxu0 0.0
    %5834 = vmatpush2.msra.mxu0 0.0
    %5835 = vmatprep.subr.mxu0 0.0
    %5836 = vmatpush2.msra.mxu0 0.0
    %5837 = vmatprep.subr.mxu0 0.0
    %5838 = vmatpush2.msra.mxu0 0.0
    %5839 = vmatprep.subr.mxu0 0.0
    %5840 = vmatpush2.msra.mxu0 0.0
    %5841 = vmatprep.subr.mxu0 0.0
    %5842 = vmatpush2.msra.mxu0 0.0
    %5843 = vmatprep.subr.mxu0 0.0
    %5844 = vmatpush2.msra.mxu0 0.0
    %5845 = vmatprep.subr.mxu0 0.0
    %5846 = vmatpush2.msra.mxu0 0.0
    %5847 = vmatprep.subr.mxu0 0.0
    %5848 = vmatpush2.msra.mxu0 0.0
    %5849 = vmatprep.subr.mxu0 0.0
    %5850 = vmatpush2.msra.mxu0 0.0
    %5851 = vmatprep.subr.mxu0 0.0
    %5852 = vmatpush2.msra.mxu0 0.0
    %5853 = vmatprep.subr.mxu0 0.0
    %5854 = vmatpush2.msra.mxu0 0.0
    %5855 = vmatprep.subr.mxu0 0.0
    %5856 = vmatpush2.msra.mxu0 0.0
    %5857 = vmatprep.subr.mxu0 0.0
    %5858 = vmatpush2.msra.mxu0 0.0
    %5859 = vmatprep.subr.mxu0 0.0
    %5860 = vmatpush2.msra.mxu0 0.0
    %5861 = vmatprep.mubr.f32.mxu0 0.0
    %5862 = vmatmul.mubr.f32.gmra.mxu0 %v5792
    %v5863 = vpop.f32.mrf.mxu0
    %v5864 = vadd.f32 %v5789, %v5863
    %v5865 = vpop.f32.mrf.mxu0
    %5866 = vmatprep.mubr.f32.mxu0 0.0
    %5867 = vmatmul.mubr.f32.gmra.mxu0 %v5795
    %v5868 = vpop.f32.mrf.mxu0
    %v5869 = vadd.f32 %v5789, %v5868
    %v5870 = vpop.f32.mrf.mxu0
    %5871 = vdwg.mxu0
    %v5872 = vmax.f32 %v5864, 0.0
    %v5873 = vmax.f32 %v5869, 0.0
    %5876 = vrot.lane.b32.xlu0 %v5872, 96
    %v5877 = vpop.permute.xlu0 %5876
    %5878 = vrot.lane.b32.xlu0 %v5873, 96
    %v5879 = vpop.permute.xlu0 %5878
    %5884 = vrot.lane.b32.xlu0 %v55, 32
    %v5885 = vpop.permute.xlu0 %5884
    %5886 = vrot.lane.b32.xlu0 %v56, 32
    %v5887 = vpop.permute.xlu0 %5886
    %5888 = vrot.lane.b32.xlu0 %v57, 32
    %v5889 = vpop.permute.xlu0 %5888
    %5890 = vrot.lane.b32.xlu0 %v58, 32
    %v5891 = vpop.permute.xlu0 %5890
    %v5896 = vsel %vm64, %v5877, 0
    %v5898 = vsel %vm64, %v5879, 0
    %5900 = vmatprep.subr.mxu0 0.0
    %5901 = vmatpush1.msra.mxu0 0.0
    %5902 = vmatprep.subr.mxu0 0.0
    %5903 = vmatpush1.msra.mxu0 0.0
    %5904 = vmatprep.subr.mxu0 0.0
    %5905 = vmatpush1.msra.mxu0 0.0
    %5906 = vmatprep.subr.mxu0 0.0
    %5907 = vmatpush1.msra.mxu0 0.0
    %5908 = vmatprep.subr.mxu0 0.0
    %5909 = vmatpush1.msra.mxu0 0.0
    %5910 = vmatprep.subr.mxu0 0.0
    %5911 = vmatpush1.msra.mxu0 0.0
    %5912 = vmatprep.subr.mxu0 0.0
    %5913 = vmatpush1.msra.mxu0 0.0
    %5914 = vmatprep.subr.mxu0 0.0
    %5915 = vmatpush1.msra.mxu0 0.0
    %5916 = vmatprep.subr.mxu0 0.0
    %5917 = vmatpush1.msra.mxu0 0.0
    %5918 = vmatprep.subr.mxu0 0.0
    %5919 = vmatpush1.msra.mxu0 0.0
    %5920 = vmatprep.subr.mxu0 0.0
    %5921 = vmatpush1.msra.mxu0 0.0
    %5922 = vmatprep.subr.mxu0 0.0
    %5923 = vmatpush1.msra.mxu0 0.0
    %5924 = vmatprep.subr.mxu0 0.0
    %5925 = vmatpush1.msra.mxu0 %v5891
    %5926 = vmatprep.subr.mxu0 0.0
    %5927 = vmatpush1.msra.mxu0 %v5889
    %5928 = vmatprep.subr.mxu0 0.0
    %5929 = vmatpush1.msra.mxu0 %v5887
    %5930 = vmatprep.subr.mxu0 0.0
    %5931 = vmatpush1.msra.mxu0 %v5885
    %5932 = vmatprep.subr.mxu0 0.0
    %5933 = vmatpush2.msra.mxu0 0.0
    %5934 = vmatprep.subr.mxu0 0.0
    %5935 = vmatpush2.msra.mxu0 0.0
    %5936 = vmatprep.subr.mxu0 0.0
    %5937 = vmatpush2.msra.mxu0 0.0
    %5938 = vmatprep.subr.mxu0 0.0
    %5939 = vmatpush2.msra.mxu0 0.0
    %5940 = vmatprep.subr.mxu0 0.0
    %5941 = vmatpush2.msra.mxu0 0.0
    %5942 = vmatprep.subr.mxu0 0.0
    %5943 = vmatpush2.msra.mxu0 0.0
    %5944 = vmatprep.subr.mxu0 0.0
    %5945 = vmatpush2.msra.mxu0 0.0
    %5946 = vmatprep.subr.mxu0 0.0
    %5947 = vmatpush2.msra.mxu0 0.0
    %5948 = vmatprep.subr.mxu0 0.0
    %5949 = vmatpush2.msra.mxu0 0.0
    %5950 = vmatprep.subr.mxu0 0.0
    %5951 = vmatpush2.msra.mxu0 0.0
    %5952 = vmatprep.subr.mxu0 0.0
    %5953 = vmatpush2.msra.mxu0 0.0
    %5954 = vmatprep.subr.mxu0 0.0
    %5955 = vmatpush2.msra.mxu0 0.0
    %5956 = vmatprep.subr.mxu0 0.0
    %5957 = vmatpush2.msra.mxu0 0.0
    %5958 = vmatprep.subr.mxu0 0.0
    %5959 = vmatpush2.msra.mxu0 0.0
    %5960 = vmatprep.subr.mxu0 0.0
    %5961 = vmatpush2.msra.mxu0 0.0
    %5962 = vmatprep.subr.mxu0 0.0
    %5963 = vmatpush2.msra.mxu0 0.0
    %5964 = vmatprep.mubr.f32.mxu0 0.0
    %5965 = vmatmul.mubr.f32.gmra.mxu0 %v5896
    %v5966 = vpop.f32.mrf.mxu0
    %v5967 = vadd.f32 0.0, %v5966
    %v5968 = vpop.f32.mrf.mxu0
    %5969 = vmatprep.mubr.f32.mxu0 0.0
    %5970 = vmatmul.mubr.f32.gmra.mxu0 %v5898
    %v5971 = vpop.f32.mrf.mxu0
    %v5972 = vadd.f32 0.0, %v5971
    %v5973 = vpop.f32.mrf.mxu0
    %5974 = vdwg.mxu0
    %5975 = vrot.lane.b32.xlu0 %v55, 64
    %v5976 = vpop.permute.xlu0 %5975
    %5977 = vrot.lane.b32.xlu0 %v56, 64
    %v5978 = vpop.permute.xlu0 %5977
    %5979 = vrot.lane.b32.xlu0 %v57, 64
    %v5980 = vpop.permute.xlu0 %5979
    %5981 = vrot.lane.b32.xlu0 %v58, 64
    %v5982 = vpop.permute.xlu0 %5981
    %v5987 = vsel %vm64, %v5872, 0
    %v5989 = vsel %vm64, %v5873, 0
    %5991 = vmatprep.subr.mxu0 0.0
    %5992 = vmatpush1.msra.mxu0 0.0
    %5993 = vmatprep.subr.mxu0 0.0
    %5994 = vmatpush1.msra.mxu0 0.0
    %5995 = vmatprep.subr.mxu0 0.0
    %5996 = vmatpush1.msra.mxu0 0.0
    %5997 = vmatprep.subr.mxu0 0.0
    %5998 = vmatpush1.msra.mxu0 0.0
    %5999 = vmatprep.subr.mxu0 0.0
    %6000 = vmatpush1.msra.mxu0 0.0
    %6001 = vmatprep.subr.mxu0 0.0
    %6002 = vmatpush1.msra.mxu0 0.0
    %6003 = vmatprep.subr.mxu0 0.0
    %6004 = vmatpush1.msra.mxu0 0.0
    %6005 = vmatprep.subr.mxu0 0.0
    %6006 = vmatpush1.msra.mxu0 0.0
    %6007 = vmatprep.subr.mxu0 0.0
    %6008 = vmatpush1.msra.mxu0 0.0
    %6009 = vmatprep.subr.mxu0 0.0
    %6010 = vmatpush1.msra.mxu0 0.0
    %6011 = vmatprep.subr.mxu0 0.0
    %6012 = vmatpush1.msra.mxu0 0.0
    %6013 = vmatprep.subr.mxu0 0.0
    %6014 = vmatpush1.msra.mxu0 0.0
    %6015 = vmatprep.subr.mxu0 0.0
    %6016 = vmatpush1.msra.mxu0 %v5982
    %6017 = vmatprep.subr.mxu0 0.0
    %6018 = vmatpush1.msra.mxu0 %v5980
    %6019 = vmatprep.subr.mxu0 0.0
    %6020 = vmatpush1.msra.mxu0 %v5978
    %6021 = vmatprep.subr.mxu0 0.0
    %6022 = vmatpush1.msra.mxu0 %v5976
    %6023 = vmatprep.subr.mxu0 0.0
    %6024 = vmatpush2.msra.mxu0 0.0
    %6025 = vmatprep.subr.mxu0 0.0
    %6026 = vmatpush2.msra.mxu0 0.0
    %6027 = vmatprep.subr.mxu0 0.0
    %6028 = vmatpush2.msra.mxu0 0.0
    %6029 = vmatprep.subr.mxu0 0.0
    %6030 = vmatpush2.msra.mxu0 0.0
    %6031 = vmatprep.subr.mxu0 0.0
    %6032 = vmatpush2.msra.mxu0 0.0
    %6033 = vmatprep.subr.mxu0 0.0
    %6034 = vmatpush2.msra.mxu0 0.0
    %6035 = vmatprep.subr.mxu0 0.0
    %6036 = vmatpush2.msra.mxu0 0.0
    %6037 = vmatprep.subr.mxu0 0.0
    %6038 = vmatpush2.msra.mxu0 0.0
    %6039 = vmatprep.subr.mxu0 0.0
    %6040 = vmatpush2.msra.mxu0 0.0
    %6041 = vmatprep.subr.mxu0 0.0
    %6042 = vmatpush2.msra.mxu0 0.0
    %6043 = vmatprep.subr.mxu0 0.0
    %6044 = vmatpush2.msra.mxu0 0.0
    %6045 = vmatprep.subr.mxu0 0.0
    %6046 = vmatpush2.msra.mxu0 0.0
    %6047 = vmatprep.subr.mxu0 0.0
    %6048 = vmatpush2.msra.mxu0 0.0
    %6049 = vmatprep.subr.mxu0 0.0
    %6050 = vmatpush2.msra.mxu0 0.0
    %6051 = vmatprep.subr.mxu0 0.0
    %6052 = vmatpush2.msra.mxu0 0.0
    %6053 = vmatprep.subr.mxu0 0.0
    %6054 = vmatpush2.msra.mxu0 0.0
    %6055 = vmatprep.mubr.f32.mxu0 0.0
    %6056 = vmatmul.mubr.f32.gmra.mxu0 %v5987
    %v6057 = vpop.f32.mrf.mxu0
    %v6058 = vadd.f32 %v5967, %v6057
    %v6059 = vpop.f32.mrf.mxu0
    %6060 = vmatprep.mubr.f32.mxu0 0.0
    %6061 = vmatmul.mubr.f32.gmra.mxu0 %v5989
    %v6062 = vpop.f32.mrf.mxu0
    %v6063 = vadd.f32 %v5972, %v6062
    %v6064 = vpop.f32.mrf.mxu0
    %6065 = vdwg.mxu0
    %v6066 = vlaneseq
    %v6067 = vshrl.u32 %v6066, 7
    %v6068 = vsub.s32 2, %v6067
    %v6069 = vrot.slane %v59, %v6068
    %v6070 = vadd.f32 %v6058, %v6069
    %v6071 = vadd.f32 %v6063, %v6069
    %v6072 = vadd.f32 %v5786, %v6070
    %v6073 = vadd.f32 %v5787, %v6071
    %v6074 = vsel %vm64, %v6072, 0.0
    %6075 = vadd.xlane.f32.xlu0 %v6074
    %v6076 = vpop.xlane.xlu0 %6075
    %v6077 = vsel %vm64, %v6073, 0.0
    %6078 = vadd.xlane.f32.xlu0 %v6077
    %v6079 = vpop.xlane.xlu0 %6078
    %v6080 = vmul.f32 %v6076, %v2732
    %v6081 = vmul.f32 %v6079, %v2732
    %v6082 = vsub.f32 %v6072, %v6080
    %v6083 = vsub.f32 %v6073, %v6081
    %v6084 = vmul.f32 %v6082, %v6082
    %v6085 = vmul.f32 %v6083, %v6083
    %v6086 = vsel %vm64, %v6084, 0.0
    %6087 = vadd.xlane.f32.xlu0 %v6086
    %v6088 = vpop.xlane.xlu0 %6087
    %v6089 = vsel %vm64, %v6085, 0.0
    %6090 = vadd.xlane.f32.xlu0 %v6089
    %v6091 = vpop.xlane.xlu0 %6090
    %v6092 = vmul.f32 %v6088, %v2732
    %v6093 = vmul.f32 %v6091, %v2732
    %v6094 = vadd.f32 %v6092, 1e-05
    %v6095 = vadd.f32 %v6093, 1e-05
    %v6096 = vrsqrt.pop %v6094
    %v6097 = vrsqrt.pop %v6095
    %v6098 = vmul.f32 %v6082, %v6096
    %v6099 = vmul.f32 %v6083, %v6097
    %6101 = vrot.lane.b32.xlu0 %v6069, 96
    %v6102 = vpop.permute.xlu0 %6101
    %v6104 = vmul.f32 %v6098, %v6102
    %v6105 = vmul.f32 %v6099, %v6102
    %6106 = vrot.lane.b32.xlu0 %v6069, 64
    %v6107 = vpop.permute.xlu0 %6106
    %v6109 = vadd.f32 %v6104, %v6107
    %v6110 = vadd.f32 %v6105, %v6107
    %6111 = vst.msk [vmem:[#allocation7] sm:$0xff] %vm64, %v6109
    %6112 = vst.msk [vmem:[#allocation7 + $0x8] sm:$0xff] %vm64, %v6110
    // Predicated region
    $region18: #{tpu_custom_call.1} parent=1 // pred_check
      _
    $region19: #{tpu_custom_call.1} parent=1 // pred_check_branch
      %6114 = sbr.rel (0) target = $region21
    $region20: #{tpu_custom_call.1} parent=1 // pred_region
      %s6116 = ssub.s32 256, 256
      %6117 = vsyncadd [#allocation4], %s6116
      %s6118 = sshll.u32 [#allocation7], 4
      %s6119 = int_to_ptr.vmem [resolvable:$true] %s6118
      %6124 = dma.vmem_to_hbm [thread:$0]  %s6119, 256, %s2, [#allocation4], 128, 128, 8
    $region21: #{tpu_custom_call.1} parent=1 // pred_fallthru
      _
    // Predicated region
    $region22: #{tpu_custom_call.1} parent=1 // pred_check
      _
    $region23: #{tpu_custom_call.1} parent=1 // pred_check_branch
      %6126 = sbr.rel (0) target = $region25
    $region24: #{tpu_custom_call.1} parent=1 // pred_region
      %6127 = dma.done [#allocation4], 256
    $region25: #{tpu_custom_call.1} parent=1 // pred_fallthru
      _
    %6128 = vsyncpa [#allocation3], 1
    %6129 = vsyncpa [#allocation6], 1
    %6130 = vsyncpa [#allocation4], 1

</llo_original>
